<compile_context>
chip_gen: v7x
topology: tpu7x:2x2x1
jax: 0.10.0
libtpu: 0.0.40
codegen_flags: <defaults>
</compile_context>

<pallas_src>
import functools

import jax
import jax.numpy as jnp
from jax.experimental import pallas as pl
from jax.experimental.pallas import tpu as pltpu


# -----------------------------------------------------------------------------
# Fused kernel: conv stack -> pos enc -> transformer encoder -> pool+classifier
# -----------------------------------------------------------------------------
def _fused_kernel(x_ref,
                  w1_ref, s1_ref, b1_ref,
                  w2_ref, s2_ref, b2_ref,
                  w3_ref, s3_ref, b3_ref,
                  pos_ref,
                  wq_ref, bq_ref, wk_ref, bk_ref, wv_ref, bv_ref,
                  wo_ref, bo_ref, g1_ref, be1_ref,
                  wf1_ref, bf1_ref, wf2_ref, bf2_ref, g2_ref, be2_ref,
                  wc_ref, bc_ref,
                  o_ref,
                  *, n_head):
    x = x_ref[...].astype(jnp.float32)                       # (Bb, L, Cin)
    Bb, L, _ = x.shape
    N = Bb * L

    # position within each sequence, per flattened row (computed once)
    l_idx = jax.lax.broadcasted_iota(jnp.int32, (Bb, L, 1), 1).reshape(N, 1)

    # ---- Conv1d("same") + folded BatchNorm(eval) + ReLU, in-vreg im2col -----
    def conv_bn_relu(x3, w_ref, s_ref, b_ref):
        _, _, cin = x3.shape
        K = w_ref.shape[0] // cin                             # static taps
        P = (K - 1) // 2
        x2 = x3.reshape(N, cin)
        taps = []
        for k in range(K):
            sh = k - P
            if sh == 0:
                taps.append(x2)
            else:
                # rolled[i] = x2[(i + sh) mod N]; cross-sequence / OOB rows are
                # exactly the per-sequence border rows and get masked to zero
                # ("same" padding), so rolling the flattened axis is safe.
                rolled = pltpu.roll(x2, shift=(-sh) % N, axis=0)
                valid = (l_idx + sh >= 0) & (l_idx + sh < L)
                taps.append(jnp.where(valid, rolled, 0.0))
        xw = jnp.concatenate(taps, axis=-1)                   # (N, K*Cin)
        # One deep MXU contraction on the whole batch block (bf16 -> f32 acc).
        y = jnp.dot(xw.astype(jnp.bfloat16), w_ref[...],
                    preferred_element_type=jnp.float32)
        y = y * s_ref[...] + b_ref[...]                       # folded BN (eval)
        return jnp.maximum(y, 0.0).reshape(Bb, L, -1)         # ReLU

    x = conv_bn_relu(x, w1_ref, s1_ref, b1_ref)
    x = conv_bn_relu(x, w2_ref, s2_ref, b2_ref)
    x = conv_bn_relu(x, w3_ref, s3_ref, b3_ref)
    x = x + pos_ref[...]                                      # positional enc.

    # ---- Transformer encoder (post-LN, ReLU FFN, eval) ----------------------
    num_layers = wq_ref.shape[0]
    _, S, D = x.shape
    Dh = D // n_head

    def layernorm(v, g, b, eps=1e-5):
        mu = jnp.mean(v, axis=-1, keepdims=True)
        var = jnp.mean((v - mu) ** 2, axis=-1, keepdims=True)
        return (v - mu) * jax.lax.rsqrt(var + eps) * g + b

    # TODO(synk): if num_layers grows beyond a few, switch this static unroll
    # to lax.fori_loop over the stacked weight refs to bound vreg live ranges.
    for l in range(num_layers):
        xf = x.reshape(N, D).astype(jnp.bfloat16)
        # full-width projections on the flattened (Bb*S, D) block
        # (qk scale already folded into wq / bq at init time)
        q = (jnp.dot(xf, wq_ref[l], preferred_element_type=jnp.float32)
             + bq_ref[l]).reshape(Bb, S, D)
        k = (jnp.dot(xf, wk_ref[l], preferred_element_type=jnp.float32)
             + bk_ref[l]).reshape(Bb, S, D)
        v = (jnp.dot(xf, wv_ref[l], preferred_element_type=jnp.float32)
             + bv_ref[l]).reshape(Bb, S, D)

        # per-head scores / softmax / context, contexts kept in vregs
        ctx = []
        for h in range(n_head):                               # static heads
            lo, hi = h * Dh, (h + 1) * Dh
            s = jnp.einsum("bqd,bkd->bqk",
                           q[..., lo:hi].astype(jnp.bfloat16),
                           k[..., lo:hi].astype(jnp.bfloat16),
                           preferred_element_type=jnp.float32)
            s = s - jnp.max(s, axis=-1, keepdims=True)
            p = jnp.exp(s)
            p = p * pl.reciprocal(jnp.sum(p, axis=-1, keepdims=True),
                                  approx=True)                # EUP, not VALU
            ctx.append(jnp.einsum("bqk,bkd->bqd",
                                  p.astype(jnp.bfloat16),
                                  v[..., lo:hi].astype(jnp.bfloat16),
                                  preferred_element_type=jnp.float32))
        ctx = jnp.concatenate(ctx, axis=-1)                   # (Bb, S, D)

        # ONE full-width output projection over concatenated heads
        attn = (jnp.dot(ctx.reshape(N, D).astype(jnp.bfloat16), wo_ref[l],
                        preferred_element_type=jnp.float32)
                + bo_ref[l]).reshape(Bb, S, D)
        x = layernorm(x + attn, g1_ref[l], be1_ref[l])

        xf = x.reshape(N, D).astype(jnp.bfloat16)
        ff = jnp.dot(xf, wf1_ref[l],
                     preferred_element_type=jnp.float32) + bf1_ref[l]
        ff = jnp.maximum(ff, 0.0).astype(jnp.bfloat16)
        ff = (jnp.dot(ff, wf2_ref[l], preferred_element_type=jnp.float32)
              + bf2_ref[l]).reshape(Bb, S, D)
        x = layernorm(x + ff, g2_ref[l], be2_ref[l])

    # ---- AdaptiveMaxPool1d(1) over sequence + Linear (lane-dense 128 slab) --
    pooled = jnp.max(x, axis=1)                               # (Bb, D)
    logits = jnp.dot(pooled.astype(jnp.bfloat16), wc_ref[...],
                     preferred_element_type=jnp.float32) + bc_ref[...]
    o_ref[:, 0, :] = logits.astype(o_ref.dtype)               # (Bb, 128)


# -----------------------------------------------------------------------------
# Wrapper: single pallas_call, batch-blocked grid (parallel -> v7x megacore)
# -----------------------------------------------------------------------------
def forward(x, params, n_head, num_classes, b_blk=None):
    B, L, Cin = x.shape
    if b_blk is None:
        # Target M = b_blk*L >= 256 so the MXU (2x256x256 on v6e/v7x) is full;
        # >=128 already suffices on v5e.  Larger B keeps grid length >= 2 so
        # both v7x TensorCores get work.
        b_blk = max(1, min(B, pl.cdiv(256, L)))
    Bp = pl.cdiv(B, b_blk) * b_blk
    if Bp != B:
        x = jnp.concatenate(
            [x, jnp.zeros((Bp - B, L, Cin), x.dtype)], axis=0)

    (w1, s1, b1), (w2, s2, b2), (w3, s3, b3) = params["conv"]
    lp = params["layers"]
    nc_pad = params["wc"].shape[1]                            # 128 (lane-dense)

    inputs = [x,
              w1, s1, b1, w2, s2, b2, w3, s3, b3,
              params["pos_enc"],
              lp["wq"], lp["bq"], lp["wk"], lp["bk"], lp["wv"], lp["bv"],
              lp["wo"], lp["bo"], lp["g1"], lp["be1"],
              lp["wf1"], lp["bf1"], lp["wf2"], lp["bf2"], lp["g2"], lp["be2"],
              params["wc"], params["bc"]]

    def full_spec(a):                                         # shared weights
        nd = a.ndim
        return pl.BlockSpec(a.shape, lambda b, _nd=nd: (0,) * _nd)

    in_specs = [pl.BlockSpec((b_blk, L, Cin), lambda b: (b, 0, 0))]
    in_specs += [full_spec(a) for a in inputs[1:]]

    out = pl.pallas_call(
        functools.partial(_fused_kernel, n_head=n_head),
        out_shape=jax.ShapeDtypeStruct((Bp, 1, nc_pad), jnp.float32),
        grid=(Bp // b_blk,),
        in_specs=in_specs,
        out_specs=pl.BlockSpec((b_blk, 1, nc_pad), lambda b: (b, 0, 0)),
        compiler_params=pltpu.CompilerParams(
            dimension_semantics=("parallel",)),               # 2 TCs on v7x
    )(*inputs)
    return out.reshape(Bp, nc_pad)[:B, :num_classes]


# -----------------------------------------------------------------------------
# Deterministic synthetic parameters (eval-mode BN folded, bf16 matmul weights)
# -----------------------------------------------------------------------------
def init_params(key, input_dim, num_classes, seq_len, d_model, n_head,
                num_layers, dim_ff):
    def nrm(k, shape, s=0.05):
        return (s * jax.random.normal(k, shape)).astype(jnp.float32)

    keys = iter(jax.random.split(key, 256))
    p = {}
    eps = 1e-5
    wdt = jnp.bfloat16                                        # MXU operand dtype

    # conv stack: weights pre-reshaped for im2col, BatchNorm folded (eval mode)
    conv_dims = [(5, input_dim, d_model // 4),
                 (3, d_model // 4, d_model // 2),
                 (3, d_model // 2, d_model)]
    p["conv"] = []
    for (K, cin, cout) in conv_dims:
        w = nrm(next(keys), (K, cin, cout), 0.2)
        gamma = 1.0 + nrm(next(keys), (cout,), 0.1)
        beta = nrm(next(keys), (cout,), 0.1)
        run_mean = nrm(next(keys), (cout,), 0.1)
        run_var = 1.0 + jnp.abs(nrm(next(keys), (cout,), 0.1))
        inv_std = gamma / jnp.sqrt(run_var + eps)
        scale = inv_std.reshape(1, cout)
        bias = (beta - run_mean * inv_std).reshape(1, cout)
        p["conv"].append((w.reshape(K * cin, cout).astype(wdt), scale, bias))

    p["pos_enc"] = nrm(next(keys), (1, seq_len, d_model), 0.1)

    # transformer encoder layers, stacked along a leading layer axis
    qk_scale = 1.0 / ((d_model // n_head) ** 0.5)             # folded into wq/bq
    names = ("wq", "bq", "wk", "bk", "wv", "bv", "wo", "bo",
             "g1", "be1", "wf1", "bf1", "wf2", "bf2", "g2", "be2")
    lists = {n: [] for n in names}
    for _ in range(num_layers):
        lists["wq"].append(qk_scale * nrm(next(keys), (d_model, d_model), 0.1))
        lists["bq"].append(qk_scale * nrm(next(keys), (1, d_model), 0.02))
        lists["wk"].append(nrm(next(keys), (d_model, d_model), 0.1))
        lists["bk"].append(nrm(next(keys), (1, d_model), 0.02))
        lists["wv"].append(nrm(next(keys), (d_model, d_model), 0.1))
        lists["bv"].append(nrm(next(keys), (1, d_model), 0.02))
        lists["wo"].append(nrm(next(keys), (d_model, d_model), 0.1))
        lists["bo"].append(nrm(next(keys), (1, d_model), 0.02))
        lists["g1"].append(1.0 + nrm(next(keys), (1, 1, d_model), 0.05))
        lists["be1"].append(nrm(next(keys), (1, 1, d_model), 0.02))
        lists["wf1"].append(nrm(next(keys), (d_model, dim_ff), 0.1))
        lists["bf1"].append(nrm(next(keys), (1, dim_ff), 0.02))
        lists["wf2"].append(nrm(next(keys), (dim_ff, d_model), 0.1))
        lists["bf2"].append(nrm(next(keys), (1, d_model), 0.02))
        lists["g2"].append(1.0 + nrm(next(keys), (1, 1, d_model), 0.05))
        lists["be2"].append(nrm(next(keys), (1, 1, d_model), 0.02))
    matmul_weights = {"wq", "wk", "wv", "wo", "wf1", "wf2"}
    p["layers"] = {
        n: (jnp.stack(v, axis=0).astype(wdt) if n in matmul_weights
            else jnp.stack(v, axis=0))
        for n, v in lists.items()}

    # classifier, zero-padded to a lane-dense 128-wide slab
    nc_pad = 128
    wc = nrm(next(keys), (d_model, num_classes), 0.1)
    bc = nrm(next(keys), (1, num_classes), 0.02)
    p["wc"] = (jnp.zeros((d_model, nc_pad), jnp.float32)
               .at[:, :num_classes].set(wc)).astype(wdt)
    p["bc"] = jnp.zeros((1, nc_pad), jnp.float32).at[0, :num_classes].set(bc[0])
    return p


if __name__ == "__main__":
    # small, module-consistent shapes
    B, input_dim, seq_len = 2, 4, 16
    d_model, n_head, num_layers, dim_ff, num_classes = 32, 4, 2, 64, 5

    key = jax.random.PRNGKey(0)
    kp, kx = jax.random.split(key)
    params = init_params(kp, input_dim, num_classes, seq_len, d_model,
                         n_head, num_layers, dim_ff)
    x = jax.random.normal(kx, (B, seq_len, input_dim), jnp.float32)

    out = forward(x, params, n_head, num_classes)
    out = jax.block_until_ready(out)
    assert out.shape == (B, num_classes) and out.dtype == jnp.float32
    assert bool(jnp.all(jnp.isfinite(out)))
    print("KERNEL_OK")
</pallas_src>

<mosaic_0001>
module attributes {stable_mosaic.version = 11 : i64} {
  func.func @_fused_kernel(%arg0: i32, %arg1: memref<2x16x4xf32, #tpu.memory_space<vmem>>, %arg2: memref<20x8xbf16, #tpu.memory_space<vmem>>, %arg3: memref<1x8xf32, #tpu.memory_space<vmem>>, %arg4: memref<1x8xf32, #tpu.memory_space<vmem>>, %arg5: memref<24x16xbf16, #tpu.memory_space<vmem>>, %arg6: memref<1x16xf32, #tpu.memory_space<vmem>>, %arg7: memref<1x16xf32, #tpu.memory_space<vmem>>, %arg8: memref<48x32xbf16, #tpu.memory_space<vmem>>, %arg9: memref<1x32xf32, #tpu.memory_space<vmem>>, %arg10: memref<1x32xf32, #tpu.memory_space<vmem>>, %arg11: memref<1x16x32xf32, #tpu.memory_space<vmem>>, %arg12: memref<2x32x32xbf16, #tpu.memory_space<vmem>>, %arg13: memref<2x1x32xf32, #tpu.memory_space<vmem>>, %arg14: memref<2x32x32xbf16, #tpu.memory_space<vmem>>, %arg15: memref<2x1x32xf32, #tpu.memory_space<vmem>>, %arg16: memref<2x32x32xbf16, #tpu.memory_space<vmem>>, %arg17: memref<2x1x32xf32, #tpu.memory_space<vmem>>, %arg18: memref<2x32x32xbf16, #tpu.memory_space<vmem>>, %arg19: memref<2x1x32xf32, #tpu.memory_space<vmem>>, %arg20: memref<2x1x1x32xf32, #tpu.memory_space<vmem>>, %arg21: memref<2x1x1x32xf32, #tpu.memory_space<vmem>>, %arg22: memref<2x32x64xbf16, #tpu.memory_space<vmem>>, %arg23: memref<2x1x64xf32, #tpu.memory_space<vmem>>, %arg24: memref<2x64x32xbf16, #tpu.memory_space<vmem>>, %arg25: memref<2x1x32xf32, #tpu.memory_space<vmem>>, %arg26: memref<2x1x1x32xf32, #tpu.memory_space<vmem>>, %arg27: memref<2x1x1x32xf32, #tpu.memory_space<vmem>>, %arg28: memref<32x128xbf16, #tpu.memory_space<vmem>>, %arg29: memref<1x128xf32, #tpu.memory_space<vmem>>, %arg30: memref<2x1x128xf32, #tpu.memory_space<vmem>>) attributes {dimension_semantics = [#tpu.dimension_semantics<parallel>], iteration_bounds = array<i64: 1>, scalar_prefetch = 0 : i64, scratch_operands = 0 : i64, tpu.core_type = #tpu.core_type<tc>, window_params = [{transform_indices = @transform_0, window_bounds = array<i64: 2, 16, 4>}, {pipeline_mode = #tpu.pipeline_mode<synchronous>, transform_indices = @transform_1, window_bounds = array<i64: 20, 8>}, {pipeline_mode = #tpu.pipeline_mode<synchronous>, transform_indices = @transform_2, window_bounds = array<i64: 1, 8>}, {pipeline_mode = #tpu.pipeline_mode<synchronous>, transform_indices = @transform_3, window_bounds = array<i64: 1, 8>}, {pipeline_mode = #tpu.pipeline_mode<synchronous>, transform_indices = @transform_4, window_bounds = array<i64: 24, 16>}, {pipeline_mode = #tpu.pipeline_mode<synchronous>, transform_indices = @transform_5, window_bounds = array<i64: 1, 16>}, {pipeline_mode = #tpu.pipeline_mode<synchronous>, transform_indices = @transform_6, window_bounds = array<i64: 1, 16>}, {pipeline_mode = #tpu.pipeline_mode<synchronous>, transform_indices = @transform_7, window_bounds = array<i64: 48, 32>}, {pipeline_mode = #tpu.pipeline_mode<synchronous>, transform_indices = @transform_8, window_bounds = array<i64: 1, 32>}, {pipeline_mode = #tpu.pipeline_mode<synchronous>, transform_indices = @transform_9, window_bounds = array<i64: 1, 32>}, {pipeline_mode = #tpu.pipeline_mode<synchronous>, transform_indices = @transform_10, window_bounds = array<i64: 1, 16, 32>}, {pipeline_mode = #tpu.pipeline_mode<synchronous>, transform_indices = @transform_11, window_bounds = array<i64: 2, 32, 32>}, {pipeline_mode = #tpu.pipeline_mode<synchronous>, transform_indices = @transform_12, window_bounds = array<i64: 2, 1, 32>}, {pipeline_mode = #tpu.pipeline_mode<synchronous>, transform_indices = @transform_13, window_bounds = array<i64: 2, 32, 32>}, {pipeline_mode = #tpu.pipeline_mode<synchronous>, transform_indices = @transform_14, window_bounds = array<i64: 2, 1, 32>}, {pipeline_mode = #tpu.pipeline_mode<synchronous>, transform_indices = @transform_15, window_bounds = array<i64: 2, 32, 32>}, {pipeline_mode = #tpu.pipeline_mode<synchronous>, transform_indices = @transform_16, window_bounds = array<i64: 2, 1, 32>}, {pipeline_mode = #tpu.pipeline_mode<synchronous>, transform_indices = @transform_17, window_bounds = array<i64: 2, 32, 32>}, {pipeline_mode = #tpu.pipeline_mode<synchronous>, transform_indices = @transform_18, window_bounds = array<i64: 2, 1, 32>}, {pipeline_mode = #tpu.pipeline_mode<synchronous>, transform_indices = @transform_19, window_bounds = array<i64: 2, 1, 1, 32>}, {pipeline_mode = #tpu.pipeline_mode<synchronous>, transform_indices = @transform_20, window_bounds = array<i64: 2, 1, 1, 32>}, {pipeline_mode = #tpu.pipeline_mode<synchronous>, transform_indices = @transform_21, window_bounds = array<i64: 2, 32, 64>}, {pipeline_mode = #tpu.pipeline_mode<synchronous>, transform_indices = @transform_22, window_bounds = array<i64: 2, 1, 64>}, {pipeline_mode = #tpu.pipeline_mode<synchronous>, transform_indices = @transform_23, window_bounds = array<i64: 2, 64, 32>}, {pipeline_mode = #tpu.pipeline_mode<synchronous>, transform_indices = @transform_24, window_bounds = array<i64: 2, 1, 32>}, {pipeline_mode = #tpu.pipeline_mode<synchronous>, transform_indices = @transform_25, window_bounds = array<i64: 2, 1, 1, 32>}, {pipeline_mode = #tpu.pipeline_mode<synchronous>, transform_indices = @transform_26, window_bounds = array<i64: 2, 1, 1, 32>}, {pipeline_mode = #tpu.pipeline_mode<synchronous>, transform_indices = @transform_27, window_bounds = array<i64: 32, 128>}, {pipeline_mode = #tpu.pipeline_mode<synchronous>, transform_indices = @transform_28, window_bounds = array<i64: 1, 128>}, {transform_indices = @transform_29, window_bounds = array<i64: 2, 1, 128>}]} {
    %c0 = arith.constant 0 : index
    %c0_0 = arith.constant 0 : index
    %c0_1 = arith.constant 0 : index
    %0 = vector.load %arg1[%c0, %c0_0, %c0_1] : memref<2x16x4xf32, #tpu.memory_space<vmem>>, vector<2x16x4xf32>
    %1 = tpu.iota {dimensions = array<i32: 1>} : vector<2x16x1xi32>
    %2 = vector.shape_cast %1 : vector<2x16x1xi32> to vector<32x1xi32>
    %3 = vector.shape_cast %0 : vector<2x16x4xf32> to vector<32x4xf32>
    %c2_i32 = arith.constant 2 : i32
    %4 = tpu.dynamic_rotate %3 by %c2_i32 dim 0 : vector<32x4xf32>, i32 -> vector<32x4xf32>
    %c-2_i32 = arith.constant -2 : i32
    %5 = vector.broadcast %c-2_i32 : i32 to vector<32x1xi32>
    %6 = arith.addi %2, %5 : vector<32x1xi32>
    %c0_i32 = arith.constant 0 : i32
    %7 = vector.broadcast %c0_i32 : i32 to vector<32x1xi32>
    %8 = arith.cmpi sge, %6, %7 : vector<32x1xi32>
    %c-2_i32_2 = arith.constant -2 : i32
    %9 = vector.broadcast %c-2_i32_2 : i32 to vector<32x1xi32>
    %10 = arith.addi %2, %9 : vector<32x1xi32>
    %c16_i32 = arith.constant 16 : i32
    %11 = vector.broadcast %c16_i32 : i32 to vector<32x1xi32>
    %12 = arith.cmpi slt, %10, %11 : vector<32x1xi32>
    %13 = arith.andi %8, %12 : vector<32x1xi1>
    %cst = arith.constant 0.000000e+00 : f32
    %14 = vector.shape_cast %13 : vector<32x1xi1> to vector<32x1xi1>
    %15 = vector.broadcast %14 : vector<32x1xi1> to vector<32x4xi1>
    %16 = vector.broadcast %cst : f32 to vector<32x4xf32>
    %17 = arith.select %15, %4, %16 : vector<32x4xi1>, vector<32x4xf32>
    %c1_i32 = arith.constant 1 : i32
    %18 = tpu.dynamic_rotate %3 by %c1_i32 dim 0 : vector<32x4xf32>, i32 -> vector<32x4xf32>
    %c-1_i32 = arith.constant -1 : i32
    %19 = vector.broadcast %c-1_i32 : i32 to vector<32x1xi32>
    %20 = arith.addi %2, %19 : vector<32x1xi32>
    %c0_i32_3 = arith.constant 0 : i32
    %21 = vector.broadcast %c0_i32_3 : i32 to vector<32x1xi32>
    %22 = arith.cmpi sge, %20, %21 : vector<32x1xi32>
    %c-1_i32_4 = arith.constant -1 : i32
    %23 = vector.broadcast %c-1_i32_4 : i32 to vector<32x1xi32>
    %24 = arith.addi %2, %23 : vector<32x1xi32>
    %c16_i32_5 = arith.constant 16 : i32
    %25 = vector.broadcast %c16_i32_5 : i32 to vector<32x1xi32>
    %26 = arith.cmpi slt, %24, %25 : vector<32x1xi32>
    %27 = arith.andi %22, %26 : vector<32x1xi1>
    %cst_6 = arith.constant 0.000000e+00 : f32
    %28 = vector.shape_cast %27 : vector<32x1xi1> to vector<32x1xi1>
    %29 = vector.broadcast %28 : vector<32x1xi1> to vector<32x4xi1>
    %30 = vector.broadcast %cst_6 : f32 to vector<32x4xf32>
    %31 = arith.select %29, %18, %30 : vector<32x4xi1>, vector<32x4xf32>
    %c31_i32 = arith.constant 31 : i32
    %32 = tpu.dynamic_rotate %3 by %c31_i32 dim 0 : vector<32x4xf32>, i32 -> vector<32x4xf32>
    %c1_i32_7 = arith.constant 1 : i32
    %33 = vector.broadcast %c1_i32_7 : i32 to vector<32x1xi32>
    %34 = arith.addi %2, %33 : vector<32x1xi32>
    %c0_i32_8 = arith.constant 0 : i32
    %35 = vector.broadcast %c0_i32_8 : i32 to vector<32x1xi32>
    %36 = arith.cmpi sge, %34, %35 : vector<32x1xi32>
    %c1_i32_9 = arith.constant 1 : i32
    %37 = vector.broadcast %c1_i32_9 : i32 to vector<32x1xi32>
    %38 = arith.addi %2, %37 : vector<32x1xi32>
    %c16_i32_10 = arith.constant 16 : i32
    %39 = vector.broadcast %c16_i32_10 : i32 to vector<32x1xi32>
    %40 = arith.cmpi slt, %38, %39 : vector<32x1xi32>
    %41 = arith.andi %36, %40 : vector<32x1xi1>
    %cst_11 = arith.constant 0.000000e+00 : f32
    %42 = vector.shape_cast %41 : vector<32x1xi1> to vector<32x1xi1>
    %43 = vector.broadcast %42 : vector<32x1xi1> to vector<32x4xi1>
    %44 = vector.broadcast %cst_11 : f32 to vector<32x4xf32>
    %45 = arith.select %43, %32, %44 : vector<32x4xi1>, vector<32x4xf32>
    %c30_i32 = arith.constant 30 : i32
    %46 = tpu.dynamic_rotate %3 by %c30_i32 dim 0 : vector<32x4xf32>, i32 -> vector<32x4xf32>
    %c2_i32_12 = arith.constant 2 : i32
    %47 = vector.broadcast %c2_i32_12 : i32 to vector<32x1xi32>
    %48 = arith.addi %2, %47 : vector<32x1xi32>
    %c0_i32_13 = arith.constant 0 : i32
    %49 = vector.broadcast %c0_i32_13 : i32 to vector<32x1xi32>
    %50 = arith.cmpi sge, %48, %49 : vector<32x1xi32>
    %c2_i32_14 = arith.constant 2 : i32
    %51 = vector.broadcast %c2_i32_14 : i32 to vector<32x1xi32>
    %52 = arith.addi %2, %51 : vector<32x1xi32>
    %c16_i32_15 = arith.constant 16 : i32
    %53 = vector.broadcast %c16_i32_15 : i32 to vector<32x1xi32>
    %54 = arith.cmpi slt, %52, %53 : vector<32x1xi32>
    %55 = arith.andi %50, %54 : vector<32x1xi1>
    %cst_16 = arith.constant 0.000000e+00 : f32
    %56 = vector.shape_cast %55 : vector<32x1xi1> to vector<32x1xi1>
    %57 = vector.broadcast %56 : vector<32x1xi1> to vector<32x4xi1>
    %58 = vector.broadcast %cst_16 : f32 to vector<32x4xf32>
    %59 = arith.select %57, %46, %58 : vector<32x4xi1>, vector<32x4xf32>
    %60 = tpu.concatenate %17, %31, %3, %45, %59 in 1 : vector<32x4xf32>, vector<32x4xf32>, vector<32x4xf32>, vector<32x4xf32>, vector<32x4xf32> -> vector<32x20xf32>
    %61 = arith.truncf %60 : vector<32x20xf32> to vector<32x20xbf16>
    %c0_17 = arith.constant 0 : index
    %c0_18 = arith.constant 0 : index
    %62 = vector.load %arg2[%c0_17, %c0_18] : memref<20x8xbf16, #tpu.memory_space<vmem>>, vector<20x8xbf16>
    %cst_19 = arith.constant dense<0.000000e+00> : vector<32x8xf32>
    %63 = tpu.matmul %61, %62, %cst_19 {dimension_numbers = #tpu.dot_dimension_numbers<[1], [0], [0], [1], [0, 0, 1, 1], [], []>} : vector<32x20xbf16>, vector<20x8xbf16>, vector<32x8xf32> -> vector<32x8xf32>
    %c0_20 = arith.constant 0 : index
    %c0_21 = arith.constant 0 : index
    %64 = vector.load %arg3[%c0_20, %c0_21] : memref<1x8xf32, #tpu.memory_space<vmem>>, vector<1x8xf32>
    %65 = vector.broadcast %64 : vector<1x8xf32> to vector<32x8xf32>
    %66 = arith.mulf %63, %65 : vector<32x8xf32>
    %c0_22 = arith.constant 0 : index
    %c0_23 = arith.constant 0 : index
    %67 = vector.load %arg4[%c0_22, %c0_23] : memref<1x8xf32, #tpu.memory_space<vmem>>, vector<1x8xf32>
    %68 = vector.broadcast %67 : vector<1x8xf32> to vector<32x8xf32>
    %69 = arith.addf %66, %68 : vector<32x8xf32>
    %cst_24 = arith.constant 0.000000e+00 : f32
    %70 = vector.broadcast %cst_24 : f32 to vector<32x8xf32>
    %71 = arith.maximumf %69, %70 : vector<32x8xf32>
    %72 = vector.shape_cast %71 : vector<32x8xf32> to vector<2x16x8xf32>
    %73 = vector.shape_cast %72 : vector<2x16x8xf32> to vector<32x8xf32>
    %c1_i32_25 = arith.constant 1 : i32
    %74 = tpu.dynamic_rotate %73 by %c1_i32_25 dim 0 : vector<32x8xf32>, i32 -> vector<32x8xf32>
    %c-1_i32_26 = arith.constant -1 : i32
    %75 = vector.broadcast %c-1_i32_26 : i32 to vector<32x1xi32>
    %76 = arith.addi %2, %75 : vector<32x1xi32>
    %c0_i32_27 = arith.constant 0 : i32
    %77 = vector.broadcast %c0_i32_27 : i32 to vector<32x1xi32>
    %78 = arith.cmpi sge, %76, %77 : vector<32x1xi32>
    %c-1_i32_28 = arith.constant -1 : i32
    %79 = vector.broadcast %c-1_i32_28 : i32 to vector<32x1xi32>
    %80 = arith.addi %2, %79 : vector<32x1xi32>
    %c16_i32_29 = arith.constant 16 : i32
    %81 = vector.broadcast %c16_i32_29 : i32 to vector<32x1xi32>
    %82 = arith.cmpi slt, %80, %81 : vector<32x1xi32>
    %83 = arith.andi %78, %82 : vector<32x1xi1>
    %cst_30 = arith.constant 0.000000e+00 : f32
    %84 = vector.shape_cast %83 : vector<32x1xi1> to vector<32x1xi1>
    %85 = vector.broadcast %84 : vector<32x1xi1> to vector<32x8xi1>
    %86 = vector.broadcast %cst_30 : f32 to vector<32x8xf32>
    %87 = arith.select %85, %74, %86 : vector<32x8xi1>, vector<32x8xf32>
    %c31_i32_31 = arith.constant 31 : i32
    %88 = tpu.dynamic_rotate %73 by %c31_i32_31 dim 0 : vector<32x8xf32>, i32 -> vector<32x8xf32>
    %c1_i32_32 = arith.constant 1 : i32
    %89 = vector.broadcast %c1_i32_32 : i32 to vector<32x1xi32>
    %90 = arith.addi %2, %89 : vector<32x1xi32>
    %c0_i32_33 = arith.constant 0 : i32
    %91 = vector.broadcast %c0_i32_33 : i32 to vector<32x1xi32>
    %92 = arith.cmpi sge, %90, %91 : vector<32x1xi32>
    %c1_i32_34 = arith.constant 1 : i32
    %93 = vector.broadcast %c1_i32_34 : i32 to vector<32x1xi32>
    %94 = arith.addi %2, %93 : vector<32x1xi32>
    %c16_i32_35 = arith.constant 16 : i32
    %95 = vector.broadcast %c16_i32_35 : i32 to vector<32x1xi32>
    %96 = arith.cmpi slt, %94, %95 : vector<32x1xi32>
    %97 = arith.andi %92, %96 : vector<32x1xi1>
    %cst_36 = arith.constant 0.000000e+00 : f32
    %98 = vector.shape_cast %97 : vector<32x1xi1> to vector<32x1xi1>
    %99 = vector.broadcast %98 : vector<32x1xi1> to vector<32x8xi1>
    %100 = vector.broadcast %cst_36 : f32 to vector<32x8xf32>
    %101 = arith.select %99, %88, %100 : vector<32x8xi1>, vector<32x8xf32>
    %102 = tpu.concatenate %87, %73, %101 in 1 : vector<32x8xf32>, vector<32x8xf32>, vector<32x8xf32> -> vector<32x24xf32>
    %103 = arith.truncf %102 : vector<32x24xf32> to vector<32x24xbf16>
    %c0_37 = arith.constant 0 : index
    %c0_38 = arith.constant 0 : index
    %104 = vector.load %arg5[%c0_37, %c0_38] : memref<24x16xbf16, #tpu.memory_space<vmem>>, vector<24x16xbf16>
    %cst_39 = arith.constant dense<0.000000e+00> : vector<32x16xf32>
    %105 = tpu.matmul %103, %104, %cst_39 {dimension_numbers = #tpu.dot_dimension_numbers<[1], [0], [0], [1], [0, 0, 1, 1], [], []>} : vector<32x24xbf16>, vector<24x16xbf16>, vector<32x16xf32> -> vector<32x16xf32>
    %c0_40 = arith.constant 0 : index
    %c0_41 = arith.constant 0 : index
    %106 = vector.load %arg6[%c0_40, %c0_41] : memref<1x16xf32, #tpu.memory_space<vmem>>, vector<1x16xf32>
    %107 = vector.broadcast %106 : vector<1x16xf32> to vector<32x16xf32>
    %108 = arith.mulf %105, %107 : vector<32x16xf32>
    %c0_42 = arith.constant 0 : index
    %c0_43 = arith.constant 0 : index
    %109 = vector.load %arg7[%c0_42, %c0_43] : memref<1x16xf32, #tpu.memory_space<vmem>>, vector<1x16xf32>
    %110 = vector.broadcast %109 : vector<1x16xf32> to vector<32x16xf32>
    %111 = arith.addf %108, %110 : vector<32x16xf32>
    %cst_44 = arith.constant 0.000000e+00 : f32
    %112 = vector.broadcast %cst_44 : f32 to vector<32x16xf32>
    %113 = arith.maximumf %111, %112 : vector<32x16xf32>
    %114 = vector.shape_cast %113 : vector<32x16xf32> to vector<2x16x16xf32>
    %115 = vector.shape_cast %114 : vector<2x16x16xf32> to vector<32x16xf32>
    %c1_i32_45 = arith.constant 1 : i32
    %116 = tpu.dynamic_rotate %115 by %c1_i32_45 dim 0 : vector<32x16xf32>, i32 -> vector<32x16xf32>
    %c-1_i32_46 = arith.constant -1 : i32
    %117 = vector.broadcast %c-1_i32_46 : i32 to vector<32x1xi32>
    %118 = arith.addi %2, %117 : vector<32x1xi32>
    %c0_i32_47 = arith.constant 0 : i32
    %119 = vector.broadcast %c0_i32_47 : i32 to vector<32x1xi32>
    %120 = arith.cmpi sge, %118, %119 : vector<32x1xi32>
    %c-1_i32_48 = arith.constant -1 : i32
    %121 = vector.broadcast %c-1_i32_48 : i32 to vector<32x1xi32>
    %122 = arith.addi %2, %121 : vector<32x1xi32>
    %c16_i32_49 = arith.constant 16 : i32
    %123 = vector.broadcast %c16_i32_49 : i32 to vector<32x1xi32>
    %124 = arith.cmpi slt, %122, %123 : vector<32x1xi32>
    %125 = arith.andi %120, %124 : vector<32x1xi1>
    %cst_50 = arith.constant 0.000000e+00 : f32
    %126 = vector.shape_cast %125 : vector<32x1xi1> to vector<32x1xi1>
    %127 = vector.broadcast %126 : vector<32x1xi1> to vector<32x16xi1>
    %128 = vector.broadcast %cst_50 : f32 to vector<32x16xf32>
    %129 = arith.select %127, %116, %128 : vector<32x16xi1>, vector<32x16xf32>
    %c31_i32_51 = arith.constant 31 : i32
    %130 = tpu.dynamic_rotate %115 by %c31_i32_51 dim 0 : vector<32x16xf32>, i32 -> vector<32x16xf32>
    %c1_i32_52 = arith.constant 1 : i32
    %131 = vector.broadcast %c1_i32_52 : i32 to vector<32x1xi32>
    %132 = arith.addi %2, %131 : vector<32x1xi32>
    %c0_i32_53 = arith.constant 0 : i32
    %133 = vector.broadcast %c0_i32_53 : i32 to vector<32x1xi32>
    %134 = arith.cmpi sge, %132, %133 : vector<32x1xi32>
    %c1_i32_54 = arith.constant 1 : i32
    %135 = vector.broadcast %c1_i32_54 : i32 to vector<32x1xi32>
    %136 = arith.addi %2, %135 : vector<32x1xi32>
    %c16_i32_55 = arith.constant 16 : i32
    %137 = vector.broadcast %c16_i32_55 : i32 to vector<32x1xi32>
    %138 = arith.cmpi slt, %136, %137 : vector<32x1xi32>
    %139 = arith.andi %134, %138 : vector<32x1xi1>
    %cst_56 = arith.constant 0.000000e+00 : f32
    %140 = vector.shape_cast %139 : vector<32x1xi1> to vector<32x1xi1>
    %141 = vector.broadcast %140 : vector<32x1xi1> to vector<32x16xi1>
    %142 = vector.broadcast %cst_56 : f32 to vector<32x16xf32>
    %143 = arith.select %141, %130, %142 : vector<32x16xi1>, vector<32x16xf32>
    %144 = tpu.concatenate %129, %115, %143 in 1 : vector<32x16xf32>, vector<32x16xf32>, vector<32x16xf32> -> vector<32x48xf32>
    %145 = arith.truncf %144 : vector<32x48xf32> to vector<32x48xbf16>
    %c0_57 = arith.constant 0 : index
    %c0_58 = arith.constant 0 : index
    %146 = vector.load %arg8[%c0_57, %c0_58] : memref<48x32xbf16, #tpu.memory_space<vmem>>, vector<48x32xbf16>
    %cst_59 = arith.constant dense<0.000000e+00> : vector<32x32xf32>
    %147 = tpu.matmul %145, %146, %cst_59 {dimension_numbers = #tpu.dot_dimension_numbers<[1], [0], [0], [1], [0, 0, 1, 1], [], []>} : vector<32x48xbf16>, vector<48x32xbf16>, vector<32x32xf32> -> vector<32x32xf32>
    %c0_60 = arith.constant 0 : index
    %c0_61 = arith.constant 0 : index
    %148 = vector.load %arg9[%c0_60, %c0_61] : memref<1x32xf32, #tpu.memory_space<vmem>>, vector<1x32xf32>
    %149 = vector.broadcast %148 : vector<1x32xf32> to vector<32x32xf32>
    %150 = arith.mulf %147, %149 : vector<32x32xf32>
    %c0_62 = arith.constant 0 : index
    %c0_63 = arith.constant 0 : index
    %151 = vector.load %arg10[%c0_62, %c0_63] : memref<1x32xf32, #tpu.memory_space<vmem>>, vector<1x32xf32>
    %152 = vector.broadcast %151 : vector<1x32xf32> to vector<32x32xf32>
    %153 = arith.addf %150, %152 : vector<32x32xf32>
    %cst_64 = arith.constant 0.000000e+00 : f32
    %154 = vector.broadcast %cst_64 : f32 to vector<32x32xf32>
    %155 = arith.maximumf %153, %154 : vector<32x32xf32>
    %156 = vector.shape_cast %155 : vector<32x32xf32> to vector<2x16x32xf32>
    %c0_65 = arith.constant 0 : index
    %c0_66 = arith.constant 0 : index
    %c0_67 = arith.constant 0 : index
    %157 = vector.load %arg11[%c0_65, %c0_66, %c0_67] : memref<1x16x32xf32, #tpu.memory_space<vmem>>, vector<1x16x32xf32>
    %158 = vector.broadcast %157 : vector<1x16x32xf32> to vector<2x16x32xf32>
    %159 = arith.addf %156, %158 : vector<2x16x32xf32>
    %160 = vector.shape_cast %159 : vector<2x16x32xf32> to vector<32x32xf32>
    %161 = arith.truncf %160 : vector<32x32xf32> to vector<32x32xbf16>
    %c0_68 = arith.constant 0 : index
    %c0_69 = arith.constant 0 : index
    %c0_70 = arith.constant 0 : index
    %162 = vector.load %arg12[%c0_68, %c0_69, %c0_70] : memref<2x32x32xbf16, #tpu.memory_space<vmem>>, vector<1x32x32xbf16>
    %163 = vector.shape_cast %162 : vector<1x32x32xbf16> to vector<32x32xbf16>
    %cst_71 = arith.constant dense<0.000000e+00> : vector<32x32xf32>
    %164 = tpu.matmul %161, %163, %cst_71 {dimension_numbers = #tpu.dot_dimension_numbers<[1], [0], [0], [1], [0, 0, 1, 1], [], []>} : vector<32x32xbf16>, vector<32x32xbf16>, vector<32x32xf32> -> vector<32x32xf32>
    %c0_72 = arith.constant 0 : index
    %c0_73 = arith.constant 0 : index
    %c0_74 = arith.constant 0 : index
    %165 = vector.load %arg13[%c0_72, %c0_73, %c0_74] : memref<2x1x32xf32, #tpu.memory_space<vmem>>, vector<1x1x32xf32>
    %166 = vector.shape_cast %165 : vector<1x1x32xf32> to vector<1x32xf32>
    %167 = vector.broadcast %166 : vector<1x32xf32> to vector<32x32xf32>
    %168 = arith.addf %164, %167 : vector<32x32xf32>
    %169 = vector.shape_cast %168 : vector<32x32xf32> to vector<2x16x32xf32>
    %c0_75 = arith.constant 0 : index
    %c0_76 = arith.constant 0 : index
    %c0_77 = arith.constant 0 : index
    %170 = vector.load %arg14[%c0_75, %c0_76, %c0_77] : memref<2x32x32xbf16, #tpu.memory_space<vmem>>, vector<1x32x32xbf16>
    %171 = vector.shape_cast %170 : vector<1x32x32xbf16> to vector<32x32xbf16>
    %cst_78 = arith.constant dense<0.000000e+00> : vector<32x32xf32>
    %172 = tpu.matmul %161, %171, %cst_78 {dimension_numbers = #tpu.dot_dimension_numbers<[1], [0], [0], [1], [0, 0, 1, 1], [], []>} : vector<32x32xbf16>, vector<32x32xbf16>, vector<32x32xf32> -> vector<32x32xf32>
    %c0_79 = arith.constant 0 : index
    %c0_80 = arith.constant 0 : index
    %c0_81 = arith.constant 0 : index
    %173 = vector.load %arg15[%c0_79, %c0_80, %c0_81] : memref<2x1x32xf32, #tpu.memory_space<vmem>>, vector<1x1x32xf32>
    %174 = vector.shape_cast %173 : vector<1x1x32xf32> to vector<1x32xf32>
    %175 = vector.broadcast %174 : vector<1x32xf32> to vector<32x32xf32>
    %176 = arith.addf %172, %175 : vector<32x32xf32>
    %177 = vector.shape_cast %176 : vector<32x32xf32> to vector<2x16x32xf32>
    %c0_82 = arith.constant 0 : index
    %c0_83 = arith.constant 0 : index
    %c0_84 = arith.constant 0 : index
    %178 = vector.load %arg16[%c0_82, %c0_83, %c0_84] : memref<2x32x32xbf16, #tpu.memory_space<vmem>>, vector<1x32x32xbf16>
    %179 = vector.shape_cast %178 : vector<1x32x32xbf16> to vector<32x32xbf16>
    %cst_85 = arith.constant dense<0.000000e+00> : vector<32x32xf32>
    %180 = tpu.matmul %161, %179, %cst_85 {dimension_numbers = #tpu.dot_dimension_numbers<[1], [0], [0], [1], [0, 0, 1, 1], [], []>} : vector<32x32xbf16>, vector<32x32xbf16>, vector<32x32xf32> -> vector<32x32xf32>
    %c0_86 = arith.constant 0 : index
    %c0_87 = arith.constant 0 : index
    %c0_88 = arith.constant 0 : index
    %181 = vector.load %arg17[%c0_86, %c0_87, %c0_88] : memref<2x1x32xf32, #tpu.memory_space<vmem>>, vector<1x1x32xf32>
    %182 = vector.shape_cast %181 : vector<1x1x32xf32> to vector<1x32xf32>
    %183 = vector.broadcast %182 : vector<1x32xf32> to vector<32x32xf32>
    %184 = arith.addf %180, %183 : vector<32x32xf32>
    %185 = vector.shape_cast %184 : vector<32x32xf32> to vector<2x16x32xf32>
    %186 = vector.extract_strided_slice %169 {offsets = [0, 0, 0], sizes = [2, 16, 8], strides = [1, 1, 1]} : vector<2x16x32xf32> to vector<2x16x8xf32>
    %187 = arith.truncf %186 : vector<2x16x8xf32> to vector<2x16x8xbf16>
    %188 = vector.extract_strided_slice %177 {offsets = [0, 0, 0], sizes = [2, 16, 8], strides = [1, 1, 1]} : vector<2x16x32xf32> to vector<2x16x8xf32>
    %189 = arith.truncf %188 : vector<2x16x8xf32> to vector<2x16x8xbf16>
    "tpu.trace_start"() <{level = 10 : i32, message = "bqd,bkd->bqk"}> : () -> ()
    %cst_89 = arith.constant dense<0.000000e+00> : vector<2x16x16xf32>
    %190 = tpu.matmul %187, %189, %cst_89 {dimension_numbers = #tpu.dot_dimension_numbers<[2], [2], [1], [1], [0, 0, 0, 1, 1, 1], [0], [0]>} : vector<2x16x8xbf16>, vector<2x16x8xbf16>, vector<2x16x16xf32> -> vector<2x16x16xf32>
    "tpu.trace_stop"() : () -> ()
    %cst_90 = arith.constant dense<0xFF800000> : vector<2x16xf32>
    %191 = vector.multi_reduction <maximumf>, %190, %cst_90 [2] : vector<2x16x16xf32> to vector<2x16xf32>
    %192 = vector.shape_cast %191 : vector<2x16xf32> to vector<2x16x1xf32>
    %193 = vector.broadcast %192 : vector<2x16x1xf32> to vector<2x16x16xf32>
    %194 = arith.subf %190, %193 : vector<2x16x16xf32>
    %195 = math.exp %194 : vector<2x16x16xf32>
    %cst_91 = arith.constant dense<0.000000e+00> : vector<2x16xf32>
    %196 = vector.multi_reduction <add>, %195, %cst_91 [2] : vector<2x16x16xf32> to vector<2x16xf32>
    %197 = vector.shape_cast %196 : vector<2x16xf32> to vector<2x16x1xf32>
    %198 = tpu.reciprocal %197 {approx = true} : vector<2x16x1xf32> -> vector<2x16x1xf32>
    %199 = vector.broadcast %198 : vector<2x16x1xf32> to vector<2x16x16xf32>
    %200 = arith.mulf %195, %199 : vector<2x16x16xf32>
    %201 = arith.truncf %200 : vector<2x16x16xf32> to vector<2x16x16xbf16>
    %202 = vector.extract_strided_slice %185 {offsets = [0, 0, 0], sizes = [2, 16, 8], strides = [1, 1, 1]} : vector<2x16x32xf32> to vector<2x16x8xf32>
    %203 = arith.truncf %202 : vector<2x16x8xf32> to vector<2x16x8xbf16>
    "tpu.trace_start"() <{level = 10 : i32, message = "bqk,bkd->bqd"}> : () -> ()
    %cst_92 = arith.constant dense<0.000000e+00> : vector<2x16x8xf32>
    %204 = tpu.matmul %201, %203, %cst_92 {dimension_numbers = #tpu.dot_dimension_numbers<[2], [1], [1], [2], [0, 0, 0, 1, 1, 2], [0], [0]>} : vector<2x16x16xbf16>, vector<2x16x8xbf16>, vector<2x16x8xf32> -> vector<2x16x8xf32>
    "tpu.trace_stop"() : () -> ()
    %205 = vector.extract_strided_slice %169 {offsets = [0, 0, 8], sizes = [2, 16, 8], strides = [1, 1, 1]} : vector<2x16x32xf32> to vector<2x16x8xf32>
    %206 = arith.truncf %205 : vector<2x16x8xf32> to vector<2x16x8xbf16>
    %207 = vector.extract_strided_slice %177 {offsets = [0, 0, 8], sizes = [2, 16, 8], strides = [1, 1, 1]} : vector<2x16x32xf32> to vector<2x16x8xf32>
    %208 = arith.truncf %207 : vector<2x16x8xf32> to vector<2x16x8xbf16>
    "tpu.trace_start"() <{level = 10 : i32, message = "bqd,bkd->bqk"}> : () -> ()
    %cst_93 = arith.constant dense<0.000000e+00> : vector<2x16x16xf32>
    %209 = tpu.matmul %206, %208, %cst_93 {dimension_numbers = #tpu.dot_dimension_numbers<[2], [2], [1], [1], [0, 0, 0, 1, 1, 1], [0], [0]>} : vector<2x16x8xbf16>, vector<2x16x8xbf16>, vector<2x16x16xf32> -> vector<2x16x16xf32>
    "tpu.trace_stop"() : () -> ()
    %cst_94 = arith.constant dense<0xFF800000> : vector<2x16xf32>
    %210 = vector.multi_reduction <maximumf>, %209, %cst_94 [2] : vector<2x16x16xf32> to vector<2x16xf32>
    %211 = vector.shape_cast %210 : vector<2x16xf32> to vector<2x16x1xf32>
    %212 = vector.broadcast %211 : vector<2x16x1xf32> to vector<2x16x16xf32>
    %213 = arith.subf %209, %212 : vector<2x16x16xf32>
    %214 = math.exp %213 : vector<2x16x16xf32>
    %cst_95 = arith.constant dense<0.000000e+00> : vector<2x16xf32>
    %215 = vector.multi_reduction <add>, %214, %cst_95 [2] : vector<2x16x16xf32> to vector<2x16xf32>
    %216 = vector.shape_cast %215 : vector<2x16xf32> to vector<2x16x1xf32>
    %217 = tpu.reciprocal %216 {approx = true} : vector<2x16x1xf32> -> vector<2x16x1xf32>
    %218 = vector.broadcast %217 : vector<2x16x1xf32> to vector<2x16x16xf32>
    %219 = arith.mulf %214, %218 : vector<2x16x16xf32>
    %220 = arith.truncf %219 : vector<2x16x16xf32> to vector<2x16x16xbf16>
    %221 = vector.extract_strided_slice %185 {offsets = [0, 0, 8], sizes = [2, 16, 8], strides = [1, 1, 1]} : vector<2x16x32xf32> to vector<2x16x8xf32>
    %222 = arith.truncf %221 : vector<2x16x8xf32> to vector<2x16x8xbf16>
    "tpu.trace_start"() <{level = 10 : i32, message = "bqk,bkd->bqd"}> : () -> ()
    %cst_96 = arith.constant dense<0.000000e+00> : vector<2x16x8xf32>
    %223 = tpu.matmul %220, %222, %cst_96 {dimension_numbers = #tpu.dot_dimension_numbers<[2], [1], [1], [2], [0, 0, 0, 1, 1, 2], [0], [0]>} : vector<2x16x16xbf16>, vector<2x16x8xbf16>, vector<2x16x8xf32> -> vector<2x16x8xf32>
    "tpu.trace_stop"() : () -> ()
    %224 = vector.extract_strided_slice %169 {offsets = [0, 0, 16], sizes = [2, 16, 8], strides = [1, 1, 1]} : vector<2x16x32xf32> to vector<2x16x8xf32>
    %225 = arith.truncf %224 : vector<2x16x8xf32> to vector<2x16x8xbf16>
    %226 = vector.extract_strided_slice %177 {offsets = [0, 0, 16], sizes = [2, 16, 8], strides = [1, 1, 1]} : vector<2x16x32xf32> to vector<2x16x8xf32>
    %227 = arith.truncf %226 : vector<2x16x8xf32> to vector<2x16x8xbf16>
    "tpu.trace_start"() <{level = 10 : i32, message = "bqd,bkd->bqk"}> : () -> ()
    %cst_97 = arith.constant dense<0.000000e+00> : vector<2x16x16xf32>
    %228 = tpu.matmul %225, %227, %cst_97 {dimension_numbers = #tpu.dot_dimension_numbers<[2], [2], [1], [1], [0, 0, 0, 1, 1, 1], [0], [0]>} : vector<2x16x8xbf16>, vector<2x16x8xbf16>, vector<2x16x16xf32> -> vector<2x16x16xf32>
    "tpu.trace_stop"() : () -> ()
    %cst_98 = arith.constant dense<0xFF800000> : vector<2x16xf32>
    %229 = vector.multi_reduction <maximumf>, %228, %cst_98 [2] : vector<2x16x16xf32> to vector<2x16xf32>
    %230 = vector.shape_cast %229 : vector<2x16xf32> to vector<2x16x1xf32>
    %231 = vector.broadcast %230 : vector<2x16x1xf32> to vector<2x16x16xf32>
    %232 = arith.subf %228, %231 : vector<2x16x16xf32>
    %233 = math.exp %232 : vector<2x16x16xf32>
    %cst_99 = arith.constant dense<0.000000e+00> : vector<2x16xf32>
    %234 = vector.multi_reduction <add>, %233, %cst_99 [2] : vector<2x16x16xf32> to vector<2x16xf32>
    %235 = vector.shape_cast %234 : vector<2x16xf32> to vector<2x16x1xf32>
    %236 = tpu.reciprocal %235 {approx = true} : vector<2x16x1xf32> -> vector<2x16x1xf32>
    %237 = vector.broadcast %236 : vector<2x16x1xf32> to vector<2x16x16xf32>
    %238 = arith.mulf %233, %237 : vector<2x16x16xf32>
    %239 = arith.truncf %238 : vector<2x16x16xf32> to vector<2x16x16xbf16>
    %240 = vector.extract_strided_slice %185 {offsets = [0, 0, 16], sizes = [2, 16, 8], strides = [1, 1, 1]} : vector<2x16x32xf32> to vector<2x16x8xf32>
    %241 = arith.truncf %240 : vector<2x16x8xf32> to vector<2x16x8xbf16>
    "tpu.trace_start"() <{level = 10 : i32, message = "bqk,bkd->bqd"}> : () -> ()
    %cst_100 = arith.constant dense<0.000000e+00> : vector<2x16x8xf32>
    %242 = tpu.matmul %239, %241, %cst_100 {dimension_numbers = #tpu.dot_dimension_numbers<[2], [1], [1], [2], [0, 0, 0, 1, 1, 2], [0], [0]>} : vector<2x16x16xbf16>, vector<2x16x8xbf16>, vector<2x16x8xf32> -> vector<2x16x8xf32>
    "tpu.trace_stop"() : () -> ()
    %243 = vector.extract_strided_slice %169 {offsets = [0, 0, 24], sizes = [2, 16, 8], strides = [1, 1, 1]} : vector<2x16x32xf32> to vector<2x16x8xf32>
    %244 = arith.truncf %243 : vector<2x16x8xf32> to vector<2x16x8xbf16>
    %245 = vector.extract_strided_slice %177 {offsets = [0, 0, 24], sizes = [2, 16, 8], strides = [1, 1, 1]} : vector<2x16x32xf32> to vector<2x16x8xf32>
    %246 = arith.truncf %245 : vector<2x16x8xf32> to vector<2x16x8xbf16>
    "tpu.trace_start"() <{level = 10 : i32, message = "bqd,bkd->bqk"}> : () -> ()
    %cst_101 = arith.constant dense<0.000000e+00> : vector<2x16x16xf32>
    %247 = tpu.matmul %244, %246, %cst_101 {dimension_numbers = #tpu.dot_dimension_numbers<[2], [2], [1], [1], [0, 0, 0, 1, 1, 1], [0], [0]>} : vector<2x16x8xbf16>, vector<2x16x8xbf16>, vector<2x16x16xf32> -> vector<2x16x16xf32>
    "tpu.trace_stop"() : () -> ()
    %cst_102 = arith.constant dense<0xFF800000> : vector<2x16xf32>
    %248 = vector.multi_reduction <maximumf>, %247, %cst_102 [2] : vector<2x16x16xf32> to vector<2x16xf32>
    %249 = vector.shape_cast %248 : vector<2x16xf32> to vector<2x16x1xf32>
    %250 = vector.broadcast %249 : vector<2x16x1xf32> to vector<2x16x16xf32>
    %251 = arith.subf %247, %250 : vector<2x16x16xf32>
    %252 = math.exp %251 : vector<2x16x16xf32>
    %cst_103 = arith.constant dense<0.000000e+00> : vector<2x16xf32>
    %253 = vector.multi_reduction <add>, %252, %cst_103 [2] : vector<2x16x16xf32> to vector<2x16xf32>
    %254 = vector.shape_cast %253 : vector<2x16xf32> to vector<2x16x1xf32>
    %255 = tpu.reciprocal %254 {approx = true} : vector<2x16x1xf32> -> vector<2x16x1xf32>
    %256 = vector.broadcast %255 : vector<2x16x1xf32> to vector<2x16x16xf32>
    %257 = arith.mulf %252, %256 : vector<2x16x16xf32>
    %258 = arith.truncf %257 : vector<2x16x16xf32> to vector<2x16x16xbf16>
    %259 = vector.extract_strided_slice %185 {offsets = [0, 0, 24], sizes = [2, 16, 8], strides = [1, 1, 1]} : vector<2x16x32xf32> to vector<2x16x8xf32>
    %260 = arith.truncf %259 : vector<2x16x8xf32> to vector<2x16x8xbf16>
    "tpu.trace_start"() <{level = 10 : i32, message = "bqk,bkd->bqd"}> : () -> ()
    %cst_104 = arith.constant dense<0.000000e+00> : vector<2x16x8xf32>
    %261 = tpu.matmul %258, %260, %cst_104 {dimension_numbers = #tpu.dot_dimension_numbers<[2], [1], [1], [2], [0, 0, 0, 1, 1, 2], [0], [0]>} : vector<2x16x16xbf16>, vector<2x16x8xbf16>, vector<2x16x8xf32> -> vector<2x16x8xf32>
    "tpu.trace_stop"() : () -> ()
    %262 = tpu.concatenate %204, %223, %242, %261 in 2 : vector<2x16x8xf32>, vector<2x16x8xf32>, vector<2x16x8xf32>, vector<2x16x8xf32> -> vector<2x16x32xf32>
    %263 = vector.shape_cast %262 : vector<2x16x32xf32> to vector<32x32xf32>
    %264 = arith.truncf %263 : vector<32x32xf32> to vector<32x32xbf16>
    %c0_105 = arith.constant 0 : index
    %c0_106 = arith.constant 0 : index
    %c0_107 = arith.constant 0 : index
    %265 = vector.load %arg18[%c0_105, %c0_106, %c0_107] : memref<2x32x32xbf16, #tpu.memory_space<vmem>>, vector<1x32x32xbf16>
    %266 = vector.shape_cast %265 : vector<1x32x32xbf16> to vector<32x32xbf16>
    %cst_108 = arith.constant dense<0.000000e+00> : vector<32x32xf32>
    %267 = tpu.matmul %264, %266, %cst_108 {dimension_numbers = #tpu.dot_dimension_numbers<[1], [0], [0], [1], [0, 0, 1, 1], [], []>} : vector<32x32xbf16>, vector<32x32xbf16>, vector<32x32xf32> -> vector<32x32xf32>
    %c0_109 = arith.constant 0 : index
    %c0_110 = arith.constant 0 : index
    %c0_111 = arith.constant 0 : index
    %268 = vector.load %arg19[%c0_109, %c0_110, %c0_111] : memref<2x1x32xf32, #tpu.memory_space<vmem>>, vector<1x1x32xf32>
    %269 = vector.shape_cast %268 : vector<1x1x32xf32> to vector<1x32xf32>
    %270 = vector.broadcast %269 : vector<1x32xf32> to vector<32x32xf32>
    %271 = arith.addf %267, %270 : vector<32x32xf32>
    %272 = vector.shape_cast %271 : vector<32x32xf32> to vector<2x16x32xf32>
    %273 = arith.addf %159, %272 : vector<2x16x32xf32>
    %c0_112 = arith.constant 0 : index
    %c0_113 = arith.constant 0 : index
    %c0_114 = arith.constant 0 : index
    %c0_115 = arith.constant 0 : index
    %274 = vector.load %arg20[%c0_112, %c0_113, %c0_114, %c0_115] : memref<2x1x1x32xf32, #tpu.memory_space<vmem>>, vector<1x1x1x32xf32>
    %275 = vector.shape_cast %274 : vector<1x1x1x32xf32> to vector<1x1x32xf32>
    %c0_116 = arith.constant 0 : index
    %c0_117 = arith.constant 0 : index
    %c0_118 = arith.constant 0 : index
    %c0_119 = arith.constant 0 : index
    %276 = vector.load %arg21[%c0_116, %c0_117, %c0_118, %c0_119] : memref<2x1x1x32xf32, #tpu.memory_space<vmem>>, vector<1x1x1x32xf32>
    %277 = vector.shape_cast %276 : vector<1x1x1x32xf32> to vector<1x1x32xf32>
    %cst_120 = arith.constant dense<0.000000e+00> : vector<2x16xf32>
    %278 = vector.multi_reduction <add>, %273, %cst_120 [2] : vector<2x16x32xf32> to vector<2x16xf32>
    %279 = vector.shape_cast %278 : vector<2x16xf32> to vector<2x16x1xf32>
    %cst_121 = arith.constant 3.200000e+01 : f32
    %280 = vector.broadcast %cst_121 : f32 to vector<2x16x1xf32>
    %281 = arith.divf %279, %280 : vector<2x16x1xf32>
    %282 = vector.broadcast %281 : vector<2x16x1xf32> to vector<2x16x32xf32>
    %283 = arith.subf %273, %282 : vector<2x16x32xf32>
    %284 = arith.mulf %283, %283 : vector<2x16x32xf32>
    %cst_122 = arith.constant dense<0.000000e+00> : vector<2x16xf32>
    %285 = vector.multi_reduction <add>, %284, %cst_122 [2] : vector<2x16x32xf32> to vector<2x16xf32>
    %286 = vector.shape_cast %285 : vector<2x16xf32> to vector<2x16x1xf32>
    %cst_123 = arith.constant 3.200000e+01 : f32
    %287 = vector.broadcast %cst_123 : f32 to vector<2x16x1xf32>
    %288 = arith.divf %286, %287 : vector<2x16x1xf32>
    %289 = vector.broadcast %281 : vector<2x16x1xf32> to vector<2x16x32xf32>
    %290 = arith.subf %273, %289 : vector<2x16x32xf32>
    %cst_124 = arith.constant 9.99999974E-6 : f32
    %291 = vector.broadcast %cst_124 : f32 to vector<2x16x1xf32>
    %292 = arith.addf %288, %291 : vector<2x16x1xf32>
    %293 = math.rsqrt %292 : vector<2x16x1xf32>
    %294 = vector.broadcast %293 : vector<2x16x1xf32> to vector<2x16x32xf32>
    %295 = arith.mulf %290, %294 : vector<2x16x32xf32>
    %296 = vector.broadcast %275 : vector<1x1x32xf32> to vector<2x16x32xf32>
    %297 = arith.mulf %295, %296 : vector<2x16x32xf32>
    %298 = vector.broadcast %277 : vector<1x1x32xf32> to vector<2x16x32xf32>
    %299 = arith.addf %297, %298 : vector<2x16x32xf32>
    %300 = vector.shape_cast %299 : vector<2x16x32xf32> to vector<32x32xf32>
    %301 = arith.truncf %300 : vector<32x32xf32> to vector<32x32xbf16>
    %c0_125 = arith.constant 0 : index
    %c0_126 = arith.constant 0 : index
    %c0_127 = arith.constant 0 : index
    %302 = vector.load %arg22[%c0_125, %c0_126, %c0_127] : memref<2x32x64xbf16, #tpu.memory_space<vmem>>, vector<1x32x64xbf16>
    %303 = vector.shape_cast %302 : vector<1x32x64xbf16> to vector<32x64xbf16>
    %cst_128 = arith.constant dense<0.000000e+00> : vector<32x64xf32>
    %304 = tpu.matmul %301, %303, %cst_128 {dimension_numbers = #tpu.dot_dimension_numbers<[1], [0], [0], [1], [0, 0, 1, 1], [], []>} : vector<32x32xbf16>, vector<32x64xbf16>, vector<32x64xf32> -> vector<32x64xf32>
    %c0_129 = arith.constant 0 : index
    %c0_130 = arith.constant 0 : index
    %c0_131 = arith.constant 0 : index
    %305 = vector.load %arg23[%c0_129, %c0_130, %c0_131] : memref<2x1x64xf32, #tpu.memory_space<vmem>>, vector<1x1x64xf32>
    %306 = vector.shape_cast %305 : vector<1x1x64xf32> to vector<1x64xf32>
    %307 = vector.broadcast %306 : vector<1x64xf32> to vector<32x64xf32>
    %308 = arith.addf %304, %307 : vector<32x64xf32>
    %cst_132 = arith.constant 0.000000e+00 : f32
    %309 = vector.broadcast %cst_132 : f32 to vector<32x64xf32>
    %310 = arith.maximumf %308, %309 : vector<32x64xf32>
    %311 = arith.truncf %310 : vector<32x64xf32> to vector<32x64xbf16>
    %c0_133 = arith.constant 0 : index
    %c0_134 = arith.constant 0 : index
    %c0_135 = arith.constant 0 : index
    %312 = vector.load %arg24[%c0_133, %c0_134, %c0_135] : memref<2x64x32xbf16, #tpu.memory_space<vmem>>, vector<1x64x32xbf16>
    %313 = vector.shape_cast %312 : vector<1x64x32xbf16> to vector<64x32xbf16>
    %cst_136 = arith.constant dense<0.000000e+00> : vector<32x32xf32>
    %314 = tpu.matmul %311, %313, %cst_136 {dimension_numbers = #tpu.dot_dimension_numbers<[1], [0], [0], [1], [0, 0, 1, 1], [], []>} : vector<32x64xbf16>, vector<64x32xbf16>, vector<32x32xf32> -> vector<32x32xf32>
    %c0_137 = arith.constant 0 : index
    %c0_138 = arith.constant 0 : index
    %c0_139 = arith.constant 0 : index
    %315 = vector.load %arg25[%c0_137, %c0_138, %c0_139] : memref<2x1x32xf32, #tpu.memory_space<vmem>>, vector<1x1x32xf32>
    %316 = vector.shape_cast %315 : vector<1x1x32xf32> to vector<1x32xf32>
    %317 = vector.broadcast %316 : vector<1x32xf32> to vector<32x32xf32>
    %318 = arith.addf %314, %317 : vector<32x32xf32>
    %319 = vector.shape_cast %318 : vector<32x32xf32> to vector<2x16x32xf32>
    %320 = arith.addf %299, %319 : vector<2x16x32xf32>
    %c0_140 = arith.constant 0 : index
    %c0_141 = arith.constant 0 : index
    %c0_142 = arith.constant 0 : index
    %c0_143 = arith.constant 0 : index
    %321 = vector.load %arg26[%c0_140, %c0_141, %c0_142, %c0_143] : memref<2x1x1x32xf32, #tpu.memory_space<vmem>>, vector<1x1x1x32xf32>
    %322 = vector.shape_cast %321 : vector<1x1x1x32xf32> to vector<1x1x32xf32>
    %c0_144 = arith.constant 0 : index
    %c0_145 = arith.constant 0 : index
    %c0_146 = arith.constant 0 : index
    %c0_147 = arith.constant 0 : index
    %323 = vector.load %arg27[%c0_144, %c0_145, %c0_146, %c0_147] : memref<2x1x1x32xf32, #tpu.memory_space<vmem>>, vector<1x1x1x32xf32>
    %324 = vector.shape_cast %323 : vector<1x1x1x32xf32> to vector<1x1x32xf32>
    %cst_148 = arith.constant dense<0.000000e+00> : vector<2x16xf32>
    %325 = vector.multi_reduction <add>, %320, %cst_148 [2] : vector<2x16x32xf32> to vector<2x16xf32>
    %326 = vector.shape_cast %325 : vector<2x16xf32> to vector<2x16x1xf32>
    %cst_149 = arith.constant 3.200000e+01 : f32
    %327 = vector.broadcast %cst_149 : f32 to vector<2x16x1xf32>
    %328 = arith.divf %326, %327 : vector<2x16x1xf32>
    %329 = vector.broadcast %328 : vector<2x16x1xf32> to vector<2x16x32xf32>
    %330 = arith.subf %320, %329 : vector<2x16x32xf32>
    %331 = arith.mulf %330, %330 : vector<2x16x32xf32>
    %cst_150 = arith.constant dense<0.000000e+00> : vector<2x16xf32>
    %332 = vector.multi_reduction <add>, %331, %cst_150 [2] : vector<2x16x32xf32> to vector<2x16xf32>
    %333 = vector.shape_cast %332 : vector<2x16xf32> to vector<2x16x1xf32>
    %cst_151 = arith.constant 3.200000e+01 : f32
    %334 = vector.broadcast %cst_151 : f32 to vector<2x16x1xf32>
    %335 = arith.divf %333, %334 : vector<2x16x1xf32>
    %336 = vector.broadcast %328 : vector<2x16x1xf32> to vector<2x16x32xf32>
    %337 = arith.subf %320, %336 : vector<2x16x32xf32>
    %cst_152 = arith.constant 9.99999974E-6 : f32
    %338 = vector.broadcast %cst_152 : f32 to vector<2x16x1xf32>
    %339 = arith.addf %335, %338 : vector<2x16x1xf32>
    %340 = math.rsqrt %339 : vector<2x16x1xf32>
    %341 = vector.broadcast %340 : vector<2x16x1xf32> to vector<2x16x32xf32>
    %342 = arith.mulf %337, %341 : vector<2x16x32xf32>
    %343 = vector.broadcast %322 : vector<1x1x32xf32> to vector<2x16x32xf32>
    %344 = arith.mulf %342, %343 : vector<2x16x32xf32>
    %345 = vector.broadcast %324 : vector<1x1x32xf32> to vector<2x16x32xf32>
    %346 = arith.addf %344, %345 : vector<2x16x32xf32>
    %347 = vector.shape_cast %346 : vector<2x16x32xf32> to vector<32x32xf32>
    %348 = arith.truncf %347 : vector<32x32xf32> to vector<32x32xbf16>
    %c1 = arith.constant 1 : index
    %c0_153 = arith.constant 0 : index
    %c0_154 = arith.constant 0 : index
    %349 = vector.load %arg12[%c1, %c0_153, %c0_154] : memref<2x32x32xbf16, #tpu.memory_space<vmem>>, vector<1x32x32xbf16>
    %350 = vector.shape_cast %349 : vector<1x32x32xbf16> to vector<32x32xbf16>
    %cst_155 = arith.constant dense<0.000000e+00> : vector<32x32xf32>
    %351 = tpu.matmul %348, %350, %cst_155 {dimension_numbers = #tpu.dot_dimension_numbers<[1], [0], [0], [1], [0, 0, 1, 1], [], []>} : vector<32x32xbf16>, vector<32x32xbf16>, vector<32x32xf32> -> vector<32x32xf32>
    %c1_156 = arith.constant 1 : index
    %c0_157 = arith.constant 0 : index
    %c0_158 = arith.constant 0 : index
    %352 = vector.load %arg13[%c1_156, %c0_157, %c0_158] : memref<2x1x32xf32, #tpu.memory_space<vmem>>, vector<1x1x32xf32>
    %353 = vector.shape_cast %352 : vector<1x1x32xf32> to vector<1x32xf32>
    %354 = vector.broadcast %353 : vector<1x32xf32> to vector<32x32xf32>
    %355 = arith.addf %351, %354 : vector<32x32xf32>
    %356 = vector.shape_cast %355 : vector<32x32xf32> to vector<2x16x32xf32>
    %c1_159 = arith.constant 1 : index
    %c0_160 = arith.constant 0 : index
    %c0_161 = arith.constant 0 : index
    %357 = vector.load %arg14[%c1_159, %c0_160, %c0_161] : memref<2x32x32xbf16, #tpu.memory_space<vmem>>, vector<1x32x32xbf16>
    %358 = vector.shape_cast %357 : vector<1x32x32xbf16> to vector<32x32xbf16>
    %cst_162 = arith.constant dense<0.000000e+00> : vector<32x32xf32>
    %359 = tpu.matmul %348, %358, %cst_162 {dimension_numbers = #tpu.dot_dimension_numbers<[1], [0], [0], [1], [0, 0, 1, 1], [], []>} : vector<32x32xbf16>, vector<32x32xbf16>, vector<32x32xf32> -> vector<32x32xf32>
    %c1_163 = arith.constant 1 : index
    %c0_164 = arith.constant 0 : index
    %c0_165 = arith.constant 0 : index
    %360 = vector.load %arg15[%c1_163, %c0_164, %c0_165] : memref<2x1x32xf32, #tpu.memory_space<vmem>>, vector<1x1x32xf32>
    %361 = vector.shape_cast %360 : vector<1x1x32xf32> to vector<1x32xf32>
    %362 = vector.broadcast %361 : vector<1x32xf32> to vector<32x32xf32>
    %363 = arith.addf %359, %362 : vector<32x32xf32>
    %364 = vector.shape_cast %363 : vector<32x32xf32> to vector<2x16x32xf32>
    %c1_166 = arith.constant 1 : index
    %c0_167 = arith.constant 0 : index
    %c0_168 = arith.constant 0 : index
    %365 = vector.load %arg16[%c1_166, %c0_167, %c0_168] : memref<2x32x32xbf16, #tpu.memory_space<vmem>>, vector<1x32x32xbf16>
    %366 = vector.shape_cast %365 : vector<1x32x32xbf16> to vector<32x32xbf16>
    %cst_169 = arith.constant dense<0.000000e+00> : vector<32x32xf32>
    %367 = tpu.matmul %348, %366, %cst_169 {dimension_numbers = #tpu.dot_dimension_numbers<[1], [0], [0], [1], [0, 0, 1, 1], [], []>} : vector<32x32xbf16>, vector<32x32xbf16>, vector<32x32xf32> -> vector<32x32xf32>
    %c1_170 = arith.constant 1 : index
    %c0_171 = arith.constant 0 : index
    %c0_172 = arith.constant 0 : index
    %368 = vector.load %arg17[%c1_170, %c0_171, %c0_172] : memref<2x1x32xf32, #tpu.memory_space<vmem>>, vector<1x1x32xf32>
    %369 = vector.shape_cast %368 : vector<1x1x32xf32> to vector<1x32xf32>
    %370 = vector.broadcast %369 : vector<1x32xf32> to vector<32x32xf32>
    %371 = arith.addf %367, %370 : vector<32x32xf32>
    %372 = vector.shape_cast %371 : vector<32x32xf32> to vector<2x16x32xf32>
    %373 = vector.extract_strided_slice %356 {offsets = [0, 0, 0], sizes = [2, 16, 8], strides = [1, 1, 1]} : vector<2x16x32xf32> to vector<2x16x8xf32>
    %374 = arith.truncf %373 : vector<2x16x8xf32> to vector<2x16x8xbf16>
    %375 = vector.extract_strided_slice %364 {offsets = [0, 0, 0], sizes = [2, 16, 8], strides = [1, 1, 1]} : vector<2x16x32xf32> to vector<2x16x8xf32>
    %376 = arith.truncf %375 : vector<2x16x8xf32> to vector<2x16x8xbf16>
    "tpu.trace_start"() <{level = 10 : i32, message = "bqd,bkd->bqk"}> : () -> ()
    %cst_173 = arith.constant dense<0.000000e+00> : vector<2x16x16xf32>
    %377 = tpu.matmul %374, %376, %cst_173 {dimension_numbers = #tpu.dot_dimension_numbers<[2], [2], [1], [1], [0, 0, 0, 1, 1, 1], [0], [0]>} : vector<2x16x8xbf16>, vector<2x16x8xbf16>, vector<2x16x16xf32> -> vector<2x16x16xf32>
    "tpu.trace_stop"() : () -> ()
    %cst_174 = arith.constant dense<0xFF800000> : vector<2x16xf32>
    %378 = vector.multi_reduction <maximumf>, %377, %cst_174 [2] : vector<2x16x16xf32> to vector<2x16xf32>
    %379 = vector.shape_cast %378 : vector<2x16xf32> to vector<2x16x1xf32>
    %380 = vector.broadcast %379 : vector<2x16x1xf32> to vector<2x16x16xf32>
    %381 = arith.subf %377, %380 : vector<2x16x16xf32>
    %382 = math.exp %381 : vector<2x16x16xf32>
    %cst_175 = arith.constant dense<0.000000e+00> : vector<2x16xf32>
    %383 = vector.multi_reduction <add>, %382, %cst_175 [2] : vector<2x16x16xf32> to vector<2x16xf32>
    %384 = vector.shape_cast %383 : vector<2x16xf32> to vector<2x16x1xf32>
    %385 = tpu.reciprocal %384 {approx = true} : vector<2x16x1xf32> -> vector<2x16x1xf32>
    %386 = vector.broadcast %385 : vector<2x16x1xf32> to vector<2x16x16xf32>
    %387 = arith.mulf %382, %386 : vector<2x16x16xf32>
    %388 = arith.truncf %387 : vector<2x16x16xf32> to vector<2x16x16xbf16>
    %389 = vector.extract_strided_slice %372 {offsets = [0, 0, 0], sizes = [2, 16, 8], strides = [1, 1, 1]} : vector<2x16x32xf32> to vector<2x16x8xf32>
    %390 = arith.truncf %389 : vector<2x16x8xf32> to vector<2x16x8xbf16>
    "tpu.trace_start"() <{level = 10 : i32, message = "bqk,bkd->bqd"}> : () -> ()
    %cst_176 = arith.constant dense<0.000000e+00> : vector<2x16x8xf32>
    %391 = tpu.matmul %388, %390, %cst_176 {dimension_numbers = #tpu.dot_dimension_numbers<[2], [1], [1], [2], [0, 0, 0, 1, 1, 2], [0], [0]>} : vector<2x16x16xbf16>, vector<2x16x8xbf16>, vector<2x16x8xf32> -> vector<2x16x8xf32>
    "tpu.trace_stop"() : () -> ()
    %392 = vector.extract_strided_slice %356 {offsets = [0, 0, 8], sizes = [2, 16, 8], strides = [1, 1, 1]} : vector<2x16x32xf32> to vector<2x16x8xf32>
    %393 = arith.truncf %392 : vector<2x16x8xf32> to vector<2x16x8xbf16>
    %394 = vector.extract_strided_slice %364 {offsets = [0, 0, 8], sizes = [2, 16, 8], strides = [1, 1, 1]} : vector<2x16x32xf32> to vector<2x16x8xf32>
    %395 = arith.truncf %394 : vector<2x16x8xf32> to vector<2x16x8xbf16>
    "tpu.trace_start"() <{level = 10 : i32, message = "bqd,bkd->bqk"}> : () -> ()
    %cst_177 = arith.constant dense<0.000000e+00> : vector<2x16x16xf32>
    %396 = tpu.matmul %393, %395, %cst_177 {dimension_numbers = #tpu.dot_dimension_numbers<[2], [2], [1], [1], [0, 0, 0, 1, 1, 1], [0], [0]>} : vector<2x16x8xbf16>, vector<2x16x8xbf16>, vector<2x16x16xf32> -> vector<2x16x16xf32>
    "tpu.trace_stop"() : () -> ()
    %cst_178 = arith.constant dense<0xFF800000> : vector<2x16xf32>
    %397 = vector.multi_reduction <maximumf>, %396, %cst_178 [2] : vector<2x16x16xf32> to vector<2x16xf32>
    %398 = vector.shape_cast %397 : vector<2x16xf32> to vector<2x16x1xf32>
    %399 = vector.broadcast %398 : vector<2x16x1xf32> to vector<2x16x16xf32>
    %400 = arith.subf %396, %399 : vector<2x16x16xf32>
    %401 = math.exp %400 : vector<2x16x16xf32>
    %cst_179 = arith.constant dense<0.000000e+00> : vector<2x16xf32>
    %402 = vector.multi_reduction <add>, %401, %cst_179 [2] : vector<2x16x16xf32> to vector<2x16xf32>
    %403 = vector.shape_cast %402 : vector<2x16xf32> to vector<2x16x1xf32>
    %404 = tpu.reciprocal %403 {approx = true} : vector<2x16x1xf32> -> vector<2x16x1xf32>
    %405 = vector.broadcast %404 : vector<2x16x1xf32> to vector<2x16x16xf32>
    %406 = arith.mulf %401, %405 : vector<2x16x16xf32>
    %407 = arith.truncf %406 : vector<2x16x16xf32> to vector<2x16x16xbf16>
    %408 = vector.extract_strided_slice %372 {offsets = [0, 0, 8], sizes = [2, 16, 8], strides = [1, 1, 1]} : vector<2x16x32xf32> to vector<2x16x8xf32>
    %409 = arith.truncf %408 : vector<2x16x8xf32> to vector<2x16x8xbf16>
    "tpu.trace_start"() <{level = 10 : i32, message = "bqk,bkd->bqd"}> : () -> ()
    %cst_180 = arith.constant dense<0.000000e+00> : vector<2x16x8xf32>
    %410 = tpu.matmul %407, %409, %cst_180 {dimension_numbers = #tpu.dot_dimension_numbers<[2], [1], [1], [2], [0, 0, 0, 1, 1, 2], [0], [0]>} : vector<2x16x16xbf16>, vector<2x16x8xbf16>, vector<2x16x8xf32> -> vector<2x16x8xf32>
    "tpu.trace_stop"() : () -> ()
    %411 = vector.extract_strided_slice %356 {offsets = [0, 0, 16], sizes = [2, 16, 8], strides = [1, 1, 1]} : vector<2x16x32xf32> to vector<2x16x8xf32>
    %412 = arith.truncf %411 : vector<2x16x8xf32> to vector<2x16x8xbf16>
    %413 = vector.extract_strided_slice %364 {offsets = [0, 0, 16], sizes = [2, 16, 8], strides = [1, 1, 1]} : vector<2x16x32xf32> to vector<2x16x8xf32>
    %414 = arith.truncf %413 : vector<2x16x8xf32> to vector<2x16x8xbf16>
    "tpu.trace_start"() <{level = 10 : i32, message = "bqd,bkd->bqk"}> : () -> ()
    %cst_181 = arith.constant dense<0.000000e+00> : vector<2x16x16xf32>
    %415 = tpu.matmul %412, %414, %cst_181 {dimension_numbers = #tpu.dot_dimension_numbers<[2], [2], [1], [1], [0, 0, 0, 1, 1, 1], [0], [0]>} : vector<2x16x8xbf16>, vector<2x16x8xbf16>, vector<2x16x16xf32> -> vector<2x16x16xf32>
    "tpu.trace_stop"() : () -> ()
    %cst_182 = arith.constant dense<0xFF800000> : vector<2x16xf32>
    %416 = vector.multi_reduction <maximumf>, %415, %cst_182 [2] : vector<2x16x16xf32> to vector<2x16xf32>
    %417 = vector.shape_cast %416 : vector<2x16xf32> to vector<2x16x1xf32>
    %418 = vector.broadcast %417 : vector<2x16x1xf32> to vector<2x16x16xf32>
    %419 = arith.subf %415, %418 : vector<2x16x16xf32>
    %420 = math.exp %419 : vector<2x16x16xf32>
    %cst_183 = arith.constant dense<0.000000e+00> : vector<2x16xf32>
    %421 = vector.multi_reduction <add>, %420, %cst_183 [2] : vector<2x16x16xf32> to vector<2x16xf32>
    %422 = vector.shape_cast %421 : vector<2x16xf32> to vector<2x16x1xf32>
    %423 = tpu.reciprocal %422 {approx = true} : vector<2x16x1xf32> -> vector<2x16x1xf32>
    %424 = vector.broadcast %423 : vector<2x16x1xf32> to vector<2x16x16xf32>
    %425 = arith.mulf %420, %424 : vector<2x16x16xf32>
    %426 = arith.truncf %425 : vector<2x16x16xf32> to vector<2x16x16xbf16>
    %427 = vector.extract_strided_slice %372 {offsets = [0, 0, 16], sizes = [2, 16, 8], strides = [1, 1, 1]} : vector<2x16x32xf32> to vector<2x16x8xf32>
    %428 = arith.truncf %427 : vector<2x16x8xf32> to vector<2x16x8xbf16>
    "tpu.trace_start"() <{level = 10 : i32, message = "bqk,bkd->bqd"}> : () -> ()
    %cst_184 = arith.constant dense<0.000000e+00> : vector<2x16x8xf32>
    %429 = tpu.matmul %426, %428, %cst_184 {dimension_numbers = #tpu.dot_dimension_numbers<[2], [1], [1], [2], [0, 0, 0, 1, 1, 2], [0], [0]>} : vector<2x16x16xbf16>, vector<2x16x8xbf16>, vector<2x16x8xf32> -> vector<2x16x8xf32>
    "tpu.trace_stop"() : () -> ()
    %430 = vector.extract_strided_slice %356 {offsets = [0, 0, 24], sizes = [2, 16, 8], strides = [1, 1, 1]} : vector<2x16x32xf32> to vector<2x16x8xf32>
    %431 = arith.truncf %430 : vector<2x16x8xf32> to vector<2x16x8xbf16>
    %432 = vector.extract_strided_slice %364 {offsets = [0, 0, 24], sizes = [2, 16, 8], strides = [1, 1, 1]} : vector<2x16x32xf32> to vector<2x16x8xf32>
    %433 = arith.truncf %432 : vector<2x16x8xf32> to vector<2x16x8xbf16>
    "tpu.trace_start"() <{level = 10 : i32, message = "bqd,bkd->bqk"}> : () -> ()
    %cst_185 = arith.constant dense<0.000000e+00> : vector<2x16x16xf32>
    %434 = tpu.matmul %431, %433, %cst_185 {dimension_numbers = #tpu.dot_dimension_numbers<[2], [2], [1], [1], [0, 0, 0, 1, 1, 1], [0], [0]>} : vector<2x16x8xbf16>, vector<2x16x8xbf16>, vector<2x16x16xf32> -> vector<2x16x16xf32>
    "tpu.trace_stop"() : () -> ()
    %cst_186 = arith.constant dense<0xFF800000> : vector<2x16xf32>
    %435 = vector.multi_reduction <maximumf>, %434, %cst_186 [2] : vector<2x16x16xf32> to vector<2x16xf32>
    %436 = vector.shape_cast %435 : vector<2x16xf32> to vector<2x16x1xf32>
    %437 = vector.broadcast %436 : vector<2x16x1xf32> to vector<2x16x16xf32>
    %438 = arith.subf %434, %437 : vector<2x16x16xf32>
    %439 = math.exp %438 : vector<2x16x16xf32>
    %cst_187 = arith.constant dense<0.000000e+00> : vector<2x16xf32>
    %440 = vector.multi_reduction <add>, %439, %cst_187 [2] : vector<2x16x16xf32> to vector<2x16xf32>
    %441 = vector.shape_cast %440 : vector<2x16xf32> to vector<2x16x1xf32>
    %442 = tpu.reciprocal %441 {approx = true} : vector<2x16x1xf32> -> vector<2x16x1xf32>
    %443 = vector.broadcast %442 : vector<2x16x1xf32> to vector<2x16x16xf32>
    %444 = arith.mulf %439, %443 : vector<2x16x16xf32>
    %445 = arith.truncf %444 : vector<2x16x16xf32> to vector<2x16x16xbf16>
    %446 = vector.extract_strided_slice %372 {offsets = [0, 0, 24], sizes = [2, 16, 8], strides = [1, 1, 1]} : vector<2x16x32xf32> to vector<2x16x8xf32>
    %447 = arith.truncf %446 : vector<2x16x8xf32> to vector<2x16x8xbf16>
    "tpu.trace_start"() <{level = 10 : i32, message = "bqk,bkd->bqd"}> : () -> ()
    %cst_188 = arith.constant dense<0.000000e+00> : vector<2x16x8xf32>
    %448 = tpu.matmul %445, %447, %cst_188 {dimension_numbers = #tpu.dot_dimension_numbers<[2], [1], [1], [2], [0, 0, 0, 1, 1, 2], [0], [0]>} : vector<2x16x16xbf16>, vector<2x16x8xbf16>, vector<2x16x8xf32> -> vector<2x16x8xf32>
    "tpu.trace_stop"() : () -> ()
    %449 = tpu.concatenate %391, %410, %429, %448 in 2 : vector<2x16x8xf32>, vector<2x16x8xf32>, vector<2x16x8xf32>, vector<2x16x8xf32> -> vector<2x16x32xf32>
    %450 = vector.shape_cast %449 : vector<2x16x32xf32> to vector<32x32xf32>
    %451 = arith.truncf %450 : vector<32x32xf32> to vector<32x32xbf16>
    %c1_189 = arith.constant 1 : index
    %c0_190 = arith.constant 0 : index
    %c0_191 = arith.constant 0 : index
    %452 = vector.load %arg18[%c1_189, %c0_190, %c0_191] : memref<2x32x32xbf16, #tpu.memory_space<vmem>>, vector<1x32x32xbf16>
    %453 = vector.shape_cast %452 : vector<1x32x32xbf16> to vector<32x32xbf16>
    %cst_192 = arith.constant dense<0.000000e+00> : vector<32x32xf32>
    %454 = tpu.matmul %451, %453, %cst_192 {dimension_numbers = #tpu.dot_dimension_numbers<[1], [0], [0], [1], [0, 0, 1, 1], [], []>} : vector<32x32xbf16>, vector<32x32xbf16>, vector<32x32xf32> -> vector<32x32xf32>
    %c1_193 = arith.constant 1 : index
    %c0_194 = arith.constant 0 : index
    %c0_195 = arith.constant 0 : index
    %455 = vector.load %arg19[%c1_193, %c0_194, %c0_195] : memref<2x1x32xf32, #tpu.memory_space<vmem>>, vector<1x1x32xf32>
    %456 = vector.shape_cast %455 : vector<1x1x32xf32> to vector<1x32xf32>
    %457 = vector.broadcast %456 : vector<1x32xf32> to vector<32x32xf32>
    %458 = arith.addf %454, %457 : vector<32x32xf32>
    %459 = vector.shape_cast %458 : vector<32x32xf32> to vector<2x16x32xf32>
    %460 = arith.addf %346, %459 : vector<2x16x32xf32>
    %c1_196 = arith.constant 1 : index
    %c0_197 = arith.constant 0 : index
    %c0_198 = arith.constant 0 : index
    %c0_199 = arith.constant 0 : index
    %461 = vector.load %arg20[%c1_196, %c0_197, %c0_198, %c0_199] : memref<2x1x1x32xf32, #tpu.memory_space<vmem>>, vector<1x1x1x32xf32>
    %462 = vector.shape_cast %461 : vector<1x1x1x32xf32> to vector<1x1x32xf32>
    %c1_200 = arith.constant 1 : index
    %c0_201 = arith.constant 0 : index
    %c0_202 = arith.constant 0 : index
    %c0_203 = arith.constant 0 : index
    %463 = vector.load %arg21[%c1_200, %c0_201, %c0_202, %c0_203] : memref<2x1x1x32xf32, #tpu.memory_space<vmem>>, vector<1x1x1x32xf32>
    %464 = vector.shape_cast %463 : vector<1x1x1x32xf32> to vector<1x1x32xf32>
    %cst_204 = arith.constant dense<0.000000e+00> : vector<2x16xf32>
    %465 = vector.multi_reduction <add>, %460, %cst_204 [2] : vector<2x16x32xf32> to vector<2x16xf32>
    %466 = vector.shape_cast %465 : vector<2x16xf32> to vector<2x16x1xf32>
    %cst_205 = arith.constant 3.200000e+01 : f32
    %467 = vector.broadcast %cst_205 : f32 to vector<2x16x1xf32>
    %468 = arith.divf %466, %467 : vector<2x16x1xf32>
    %469 = vector.broadcast %468 : vector<2x16x1xf32> to vector<2x16x32xf32>
    %470 = arith.subf %460, %469 : vector<2x16x32xf32>
    %471 = arith.mulf %470, %470 : vector<2x16x32xf32>
    %cst_206 = arith.constant dense<0.000000e+00> : vector<2x16xf32>
    %472 = vector.multi_reduction <add>, %471, %cst_206 [2] : vector<2x16x32xf32> to vector<2x16xf32>
    %473 = vector.shape_cast %472 : vector<2x16xf32> to vector<2x16x1xf32>
    %cst_207 = arith.constant 3.200000e+01 : f32
    %474 = vector.broadcast %cst_207 : f32 to vector<2x16x1xf32>
    %475 = arith.divf %473, %474 : vector<2x16x1xf32>
    %476 = vector.broadcast %468 : vector<2x16x1xf32> to vector<2x16x32xf32>
    %477 = arith.subf %460, %476 : vector<2x16x32xf32>
    %cst_208 = arith.constant 9.99999974E-6 : f32
    %478 = vector.broadcast %cst_208 : f32 to vector<2x16x1xf32>
    %479 = arith.addf %475, %478 : vector<2x16x1xf32>
    %480 = math.rsqrt %479 : vector<2x16x1xf32>
    %481 = vector.broadcast %480 : vector<2x16x1xf32> to vector<2x16x32xf32>
    %482 = arith.mulf %477, %481 : vector<2x16x32xf32>
    %483 = vector.broadcast %462 : vector<1x1x32xf32> to vector<2x16x32xf32>
    %484 = arith.mulf %482, %483 : vector<2x16x32xf32>
    %485 = vector.broadcast %464 : vector<1x1x32xf32> to vector<2x16x32xf32>
    %486 = arith.addf %484, %485 : vector<2x16x32xf32>
    %487 = vector.shape_cast %486 : vector<2x16x32xf32> to vector<32x32xf32>
    %488 = arith.truncf %487 : vector<32x32xf32> to vector<32x32xbf16>
    %c1_209 = arith.constant 1 : index
    %c0_210 = arith.constant 0 : index
    %c0_211 = arith.constant 0 : index
    %489 = vector.load %arg22[%c1_209, %c0_210, %c0_211] : memref<2x32x64xbf16, #tpu.memory_space<vmem>>, vector<1x32x64xbf16>
    %490 = vector.shape_cast %489 : vector<1x32x64xbf16> to vector<32x64xbf16>
    %cst_212 = arith.constant dense<0.000000e+00> : vector<32x64xf32>
    %491 = tpu.matmul %488, %490, %cst_212 {dimension_numbers = #tpu.dot_dimension_numbers<[1], [0], [0], [1], [0, 0, 1, 1], [], []>} : vector<32x32xbf16>, vector<32x64xbf16>, vector<32x64xf32> -> vector<32x64xf32>
    %c1_213 = arith.constant 1 : index
    %c0_214 = arith.constant 0 : index
    %c0_215 = arith.constant 0 : index
    %492 = vector.load %arg23[%c1_213, %c0_214, %c0_215] : memref<2x1x64xf32, #tpu.memory_space<vmem>>, vector<1x1x64xf32>
    %493 = vector.shape_cast %492 : vector<1x1x64xf32> to vector<1x64xf32>
    %494 = vector.broadcast %493 : vector<1x64xf32> to vector<32x64xf32>
    %495 = arith.addf %491, %494 : vector<32x64xf32>
    %cst_216 = arith.constant 0.000000e+00 : f32
    %496 = vector.broadcast %cst_216 : f32 to vector<32x64xf32>
    %497 = arith.maximumf %495, %496 : vector<32x64xf32>
    %498 = arith.truncf %497 : vector<32x64xf32> to vector<32x64xbf16>
    %c1_217 = arith.constant 1 : index
    %c0_218 = arith.constant 0 : index
    %c0_219 = arith.constant 0 : index
    %499 = vector.load %arg24[%c1_217, %c0_218, %c0_219] : memref<2x64x32xbf16, #tpu.memory_space<vmem>>, vector<1x64x32xbf16>
    %500 = vector.shape_cast %499 : vector<1x64x32xbf16> to vector<64x32xbf16>
    %cst_220 = arith.constant dense<0.000000e+00> : vector<32x32xf32>
    %501 = tpu.matmul %498, %500, %cst_220 {dimension_numbers = #tpu.dot_dimension_numbers<[1], [0], [0], [1], [0, 0, 1, 1], [], []>} : vector<32x64xbf16>, vector<64x32xbf16>, vector<32x32xf32> -> vector<32x32xf32>
    %c1_221 = arith.constant 1 : index
    %c0_222 = arith.constant 0 : index
    %c0_223 = arith.constant 0 : index
    %502 = vector.load %arg25[%c1_221, %c0_222, %c0_223] : memref<2x1x32xf32, #tpu.memory_space<vmem>>, vector<1x1x32xf32>
    %503 = vector.shape_cast %502 : vector<1x1x32xf32> to vector<1x32xf32>
    %504 = vector.broadcast %503 : vector<1x32xf32> to vector<32x32xf32>
    %505 = arith.addf %501, %504 : vector<32x32xf32>
    %506 = vector.shape_cast %505 : vector<32x32xf32> to vector<2x16x32xf32>
    %507 = arith.addf %486, %506 : vector<2x16x32xf32>
    %c1_224 = arith.constant 1 : index
    %c0_225 = arith.constant 0 : index
    %c0_226 = arith.constant 0 : index
    %c0_227 = arith.constant 0 : index
    %508 = vector.load %arg26[%c1_224, %c0_225, %c0_226, %c0_227] : memref<2x1x1x32xf32, #tpu.memory_space<vmem>>, vector<1x1x1x32xf32>
    %509 = vector.shape_cast %508 : vector<1x1x1x32xf32> to vector<1x1x32xf32>
    %c1_228 = arith.constant 1 : index
    %c0_229 = arith.constant 0 : index
    %c0_230 = arith.constant 0 : index
    %c0_231 = arith.constant 0 : index
    %510 = vector.load %arg27[%c1_228, %c0_229, %c0_230, %c0_231] : memref<2x1x1x32xf32, #tpu.memory_space<vmem>>, vector<1x1x1x32xf32>
    %511 = vector.shape_cast %510 : vector<1x1x1x32xf32> to vector<1x1x32xf32>
    %cst_232 = arith.constant dense<0.000000e+00> : vector<2x16xf32>
    %512 = vector.multi_reduction <add>, %507, %cst_232 [2] : vector<2x16x32xf32> to vector<2x16xf32>
    %513 = vector.shape_cast %512 : vector<2x16xf32> to vector<2x16x1xf32>
    %cst_233 = arith.constant 3.200000e+01 : f32
    %514 = vector.broadcast %cst_233 : f32 to vector<2x16x1xf32>
    %515 = arith.divf %513, %514 : vector<2x16x1xf32>
    %516 = vector.broadcast %515 : vector<2x16x1xf32> to vector<2x16x32xf32>
    %517 = arith.subf %507, %516 : vector<2x16x32xf32>
    %518 = arith.mulf %517, %517 : vector<2x16x32xf32>
    %cst_234 = arith.constant dense<0.000000e+00> : vector<2x16xf32>
    %519 = vector.multi_reduction <add>, %518, %cst_234 [2] : vector<2x16x32xf32> to vector<2x16xf32>
    %520 = vector.shape_cast %519 : vector<2x16xf32> to vector<2x16x1xf32>
    %cst_235 = arith.constant 3.200000e+01 : f32
    %521 = vector.broadcast %cst_235 : f32 to vector<2x16x1xf32>
    %522 = arith.divf %520, %521 : vector<2x16x1xf32>
    %523 = vector.broadcast %515 : vector<2x16x1xf32> to vector<2x16x32xf32>
    %524 = arith.subf %507, %523 : vector<2x16x32xf32>
    %cst_236 = arith.constant 9.99999974E-6 : f32
    %525 = vector.broadcast %cst_236 : f32 to vector<2x16x1xf32>
    %526 = arith.addf %522, %525 : vector<2x16x1xf32>
    %527 = math.rsqrt %526 : vector<2x16x1xf32>
    %528 = vector.broadcast %527 : vector<2x16x1xf32> to vector<2x16x32xf32>
    %529 = arith.mulf %524, %528 : vector<2x16x32xf32>
    %530 = vector.broadcast %509 : vector<1x1x32xf32> to vector<2x16x32xf32>
    %531 = arith.mulf %529, %530 : vector<2x16x32xf32>
    %532 = vector.broadcast %511 : vector<1x1x32xf32> to vector<2x16x32xf32>
    %533 = arith.addf %531, %532 : vector<2x16x32xf32>
    %cst_237 = arith.constant dense<0xFF800000> : vector<2x32xf32>
    %534 = vector.multi_reduction <maximumf>, %533, %cst_237 [1] : vector<2x16x32xf32> to vector<2x32xf32>
    %535 = arith.truncf %534 : vector<2x32xf32> to vector<2x32xbf16>
    %c0_238 = arith.constant 0 : index
    %c0_239 = arith.constant 0 : index
    %536 = vector.load %arg28[%c0_238, %c0_239] : memref<32x128xbf16, #tpu.memory_space<vmem>>, vector<32x128xbf16>
    %cst_240 = arith.constant dense<0.000000e+00> : vector<2x128xf32>
    %537 = tpu.matmul %535, %536, %cst_240 {dimension_numbers = #tpu.dot_dimension_numbers<[1], [0], [0], [1], [0, 0, 1, 1], [], []>} : vector<2x32xbf16>, vector<32x128xbf16>, vector<2x128xf32> -> vector<2x128xf32>
    %c0_241 = arith.constant 0 : index
    %c0_242 = arith.constant 0 : index
    %538 = vector.load %arg29[%c0_241, %c0_242] : memref<1x128xf32, #tpu.memory_space<vmem>>, vector<1x128xf32>
    %539 = vector.broadcast %538 : vector<1x128xf32> to vector<2x128xf32>
    %540 = arith.addf %537, %539 : vector<2x128xf32>
    %c0_243 = arith.constant 0 : index
    %c0_244 = arith.constant 0 : index
    %c0_245 = arith.constant 0 : index
    %541 = vector.load %arg30[%c0_243, %c0_244, %c0_245] : memref<2x1x128xf32, #tpu.memory_space<vmem>>, vector<2x1x128xf32>
    %542 = vector.shape_cast %541 : vector<2x1x128xf32> to vector<2x128xf32>
    %543 = vector.shape_cast %540 : vector<2x128xf32> to vector<2x1x128xf32>
    tpu.vector_store %arg30[%c0_243, %c0_244, %c0_245], %543 {strides = array<i32>} : memref<2x1x128xf32, #tpu.memory_space<vmem>>, vector<2x1x128xf32>,
    return
  }
  func.func @transform_0(%arg0: i32) -> (i32, i32, i32) {
    %c0_i32 = arith.constant 0 : i32
    %c0_i32_0 = arith.constant 0 : i32
    %c0_i32_1 = arith.constant 0 : i32
    return %arg0, %c0_i32, %c0_i32_0 : i32, i32, i32
  }
  func.func @transform_1(%arg0: i32) -> (i32, i32) {
    %c0_i32 = arith.constant 0 : i32
    %c0_i32_0 = arith.constant 0 : i32
    %c0_i32_1 = arith.constant 0 : i32
    return %c0_i32, %c0_i32_0 : i32, i32
  }
  func.func @transform_2(%arg0: i32) -> (i32, i32) {
    %c0_i32 = arith.constant 0 : i32
    %c0_i32_0 = arith.constant 0 : i32
    %c0_i32_1 = arith.constant 0 : i32
    return %c0_i32, %c0_i32_0 : i32, i32
  }
  func.func @transform_3(%arg0: i32) -> (i32, i32) {
    %c0_i32 = arith.constant 0 : i32
    %c0_i32_0 = arith.constant 0 : i32
    %c0_i32_1 = arith.constant 0 : i32
    return %c0_i32, %c0_i32_0 : i32, i32
  }
  func.func @transform_4(%arg0: i32) -> (i32, i32) {
    %c0_i32 = arith.constant 0 : i32
    %c0_i32_0 = arith.constant 0 : i32
    %c0_i32_1 = arith.constant 0 : i32
    return %c0_i32, %c0_i32_0 : i32, i32
  }
  func.func @transform_5(%arg0: i32) -> (i32, i32) {
    %c0_i32 = arith.constant 0 : i32
    %c0_i32_0 = arith.constant 0 : i32
    %c0_i32_1 = arith.constant 0 : i32
    return %c0_i32, %c0_i32_0 : i32, i32
  }
  func.func @transform_6(%arg0: i32) -> (i32, i32) {
    %c0_i32 = arith.constant 0 : i32
    %c0_i32_0 = arith.constant 0 : i32
    %c0_i32_1 = arith.constant 0 : i32
    return %c0_i32, %c0_i32_0 : i32, i32
  }
  func.func @transform_7(%arg0: i32) -> (i32, i32) {
    %c0_i32 = arith.constant 0 : i32
    %c0_i32_0 = arith.constant 0 : i32
    %c0_i32_1 = arith.constant 0 : i32
    return %c0_i32, %c0_i32_0 : i32, i32
  }
  func.func @transform_8(%arg0: i32) -> (i32, i32) {
    %c0_i32 = arith.constant 0 : i32
    %c0_i32_0 = arith.constant 0 : i32
    %c0_i32_1 = arith.constant 0 : i32
    return %c0_i32, %c0_i32_0 : i32, i32
  }
  func.func @transform_9(%arg0: i32) -> (i32, i32) {
    %c0_i32 = arith.constant 0 : i32
    %c0_i32_0 = arith.constant 0 : i32
    %c0_i32_1 = arith.constant 0 : i32
    return %c0_i32, %c0_i32_0 : i32, i32
  }
  func.func @transform_10(%arg0: i32) -> (i32, i32, i32) {
    %c0_i32 = arith.constant 0 : i32
    %c0_i32_0 = arith.constant 0 : i32
    %c0_i32_1 = arith.constant 0 : i32
    %c0_i32_2 = arith.constant 0 : i32
    return %c0_i32, %c0_i32_0, %c0_i32_1 : i32, i32, i32
  }
  func.func @transform_11(%arg0: i32) -> (i32, i32, i32) {
    %c0_i32 = arith.constant 0 : i32
    %c0_i32_0 = arith.constant 0 : i32
    %c0_i32_1 = arith.constant 0 : i32
    %c0_i32_2 = arith.constant 0 : i32
    return %c0_i32, %c0_i32_0, %c0_i32_1 : i32, i32, i32
  }
  func.func @transform_12(%arg0: i32) -> (i32, i32, i32) {
    %c0_i32 = arith.constant 0 : i32
    %c0_i32_0 = arith.constant 0 : i32
    %c0_i32_1 = arith.constant 0 : i32
    %c0_i32_2 = arith.constant 0 : i32
    return %c0_i32, %c0_i32_0, %c0_i32_1 : i32, i32, i32
  }
  func.func @transform_13(%arg0: i32) -> (i32, i32, i32) {
    %c0_i32 = arith.constant 0 : i32
    %c0_i32_0 = arith.constant 0 : i32
    %c0_i32_1 = arith.constant 0 : i32
    %c0_i32_2 = arith.constant 0 : i32
    return %c0_i32, %c0_i32_0, %c0_i32_1 : i32, i32, i32
  }
  func.func @transform_14(%arg0: i32) -> (i32, i32, i32) {
    %c0_i32 = arith.constant 0 : i32
    %c0_i32_0 = arith.constant 0 : i32
    %c0_i32_1 = arith.constant 0 : i32
    %c0_i32_2 = arith.constant 0 : i32
    return %c0_i32, %c0_i32_0, %c0_i32_1 : i32, i32, i32
  }
  func.func @transform_15(%arg0: i32) -> (i32, i32, i32) {
    %c0_i32 = arith.constant 0 : i32
    %c0_i32_0 = arith.constant 0 : i32
    %c0_i32_1 = arith.constant 0 : i32
    %c0_i32_2 = arith.constant 0 : i32
    return %c0_i32, %c0_i32_0, %c0_i32_1 : i32, i32, i32
  }
  func.func @transform_16(%arg0: i32) -> (i32, i32, i32) {
    %c0_i32 = arith.constant 0 : i32
    %c0_i32_0 = arith.constant 0 : i32
    %c0_i32_1 = arith.constant 0 : i32
    %c0_i32_2 = arith.constant 0 : i32
    return %c0_i32, %c0_i32_0, %c0_i32_1 : i32, i32, i32
  }
  func.func @transform_17(%arg0: i32) -> (i32, i32, i32) {
    %c0_i32 = arith.constant 0 : i32
    %c0_i32_0 = arith.constant 0 : i32
    %c0_i32_1 = arith.constant 0 : i32
    %c0_i32_2 = arith.constant 0 : i32
    return %c0_i32, %c0_i32_0, %c0_i32_1 : i32, i32, i32
  }
  func.func @transform_18(%arg0: i32) -> (i32, i32, i32) {
    %c0_i32 = arith.constant 0 : i32
    %c0_i32_0 = arith.constant 0 : i32
    %c0_i32_1 = arith.constant 0 : i32
    %c0_i32_2 = arith.constant 0 : i32
    return %c0_i32, %c0_i32_0, %c0_i32_1 : i32, i32, i32
  }
  func.func @transform_19(%arg0: i32) -> (i32, i32, i32, i32) {
    %c0_i32 = arith.constant 0 : i32
    %c0_i32_0 = arith.constant 0 : i32
    %c0_i32_1 = arith.constant 0 : i32
    %c0_i32_2 = arith.constant 0 : i32
    %c0_i32_3 = arith.constant 0 : i32
    return %c0_i32, %c0_i32_0, %c0_i32_1, %c0_i32_2 : i32, i32, i32, i32
  }
  func.func @transform_20(%arg0: i32) -> (i32, i32, i32, i32) {
    %c0_i32 = arith.constant 0 : i32
    %c0_i32_0 = arith.constant 0 : i32
    %c0_i32_1 = arith.constant 0 : i32
    %c0_i32_2 = arith.constant 0 : i32
    %c0_i32_3 = arith.constant 0 : i32
    return %c0_i32, %c0_i32_0, %c0_i32_1, %c0_i32_2 : i32, i32, i32, i32
  }
  func.func @transform_21(%arg0: i32) -> (i32, i32, i32) {
    %c0_i32 = arith.constant 0 : i32
    %c0_i32_0 = arith.constant 0 : i32
    %c0_i32_1 = arith.constant 0 : i32
    %c0_i32_2 = arith.constant 0 : i32
    return %c0_i32, %c0_i32_0, %c0_i32_1 : i32, i32, i32
  }
  func.func @transform_22(%arg0: i32) -> (i32, i32, i32) {
    %c0_i32 = arith.constant 0 : i32
    %c0_i32_0 = arith.constant 0 : i32
    %c0_i32_1 = arith.constant 0 : i32
    %c0_i32_2 = arith.constant 0 : i32
    return %c0_i32, %c0_i32_0, %c0_i32_1 : i32, i32, i32
  }
  func.func @transform_23(%arg0: i32) -> (i32, i32, i32) {
    %c0_i32 = arith.constant 0 : i32
    %c0_i32_0 = arith.constant 0 : i32
    %c0_i32_1 = arith.constant 0 : i32
    %c0_i32_2 = arith.constant 0 : i32
    return %c0_i32, %c0_i32_0, %c0_i32_1 : i32, i32, i32
  }
  func.func @transform_24(%arg0: i32) -> (i32, i32, i32) {
    %c0_i32 = arith.constant 0 : i32
    %c0_i32_0 = arith.constant 0 : i32
    %c0_i32_1 = arith.constant 0 : i32
    %c0_i32_2 = arith.constant 0 : i32
    return %c0_i32, %c0_i32_0, %c0_i32_1 : i32, i32, i32
  }
  func.func @transform_25(%arg0: i32) -> (i32, i32, i32, i32) {
    %c0_i32 = arith.constant 0 : i32
    %c0_i32_0 = arith.constant 0 : i32
    %c0_i32_1 = arith.constant 0 : i32
    %c0_i32_2 = arith.constant 0 : i32
    %c0_i32_3 = arith.constant 0 : i32
    return %c0_i32, %c0_i32_0, %c0_i32_1, %c0_i32_2 : i32, i32, i32, i32
  }
  func.func @transform_26(%arg0: i32) -> (i32, i32, i32, i32) {
    %c0_i32 = arith.constant 0 : i32
    %c0_i32_0 = arith.constant 0 : i32
    %c0_i32_1 = arith.constant 0 : i32
    %c0_i32_2 = arith.constant 0 : i32
    %c0_i32_3 = arith.constant 0 : i32
    return %c0_i32, %c0_i32_0, %c0_i32_1, %c0_i32_2 : i32, i32, i32, i32
  }
  func.func @transform_27(%arg0: i32) -> (i32, i32) {
    %c0_i32 = arith.constant 0 : i32
    %c0_i32_0 = arith.constant 0 : i32
    %c0_i32_1 = arith.constant 0 : i32
    return %c0_i32, %c0_i32_0 : i32, i32
  }
  func.func @transform_28(%arg0: i32) -> (i32, i32) {
    %c0_i32 = arith.constant 0 : i32
    %c0_i32_0 = arith.constant 0 : i32
    %c0_i32_1 = arith.constant 0 : i32
    return %c0_i32, %c0_i32_0 : i32, i32
  }
  func.func @transform_29(%arg0: i32) -> (i32, i32, i32) {
    %c0_i32 = arith.constant 0 : i32
    %c0_i32_0 = arith.constant 0 : i32
    %c0_i32_1 = arith.constant 0 : i32
    return %arg0, %c0_i32, %c0_i32_0 : i32, i32, i32
  }
}

</mosaic_0001>

<llo_original>
// kernel: tpu_custom_call.1
$region0: #{tpu_custom_call.1}
  #allocation0 [shape = 'u32[]', space=smem, size = 0x4, offset = 0x4, fixed_abs, tag = 'smem constant byte address 0x4 - core index']
  #allocation1 [shape = 'u32[144,128]{1,0:T(1,128)}', space=vmem, size = 0x12000, scoped, tag = 'internal scratch']
  %s0 = inlined_call_operand.smem [shape: u32[30], index: -1, kind: input, shape index: {}]
  %s1 = sld [smem:[%s0]]
  %s2 = scalar_lea.smem %s0, 1
  %s3 = sld [smem:[%s2]]
  %s4 = scalar_lea.smem %s0, 2
  %s5 = sld [smem:[%s4]]
  %s6 = scalar_lea.smem %s0, 3
  %s7 = sld [smem:[%s6]]
  %s8 = scalar_lea.smem %s0, 4
  %s9 = sld [smem:[%s8]]
  %s10 = scalar_lea.smem %s0, 5
  %s11 = sld [smem:[%s10]]
  %s12 = scalar_lea.smem %s0, 6
  %s13 = sld [smem:[%s12]]
  %s14 = scalar_lea.smem %s0, 7
  %s15 = sld [smem:[%s14]]
  %s16 = scalar_lea.smem %s0, 8
  %s17 = sld [smem:[%s16]]
  %s18 = scalar_lea.smem %s0, 9
  %s19 = sld [smem:[%s18]]
  %s20 = scalar_lea.smem %s0, 10
  %s21 = sld [smem:[%s20]]
  %s22 = scalar_lea.smem %s0, 11
  %s23 = sld [smem:[%s22]]
  %s24 = scalar_lea.smem %s0, 12
  %s25 = sld [smem:[%s24]]
  %s26 = scalar_lea.smem %s0, 13
  %s27 = sld [smem:[%s26]]
  %s28 = scalar_lea.smem %s0, 14
  %s29 = sld [smem:[%s28]]
  %s30 = scalar_lea.smem %s0, 15
  %s31 = sld [smem:[%s30]]
  %s32 = scalar_lea.smem %s0, 16
  %s33 = sld [smem:[%s32]]
  %s34 = scalar_lea.smem %s0, 17
  %s35 = sld [smem:[%s34]]
  %s36 = scalar_lea.smem %s0, 18
  %s37 = sld [smem:[%s36]]
  %s38 = scalar_lea.smem %s0, 19
  %s39 = sld [smem:[%s38]]
  %s40 = scalar_lea.smem %s0, 20
  %s41 = sld [smem:[%s40]]
  %s42 = scalar_lea.smem %s0, 21
  %s43 = sld [smem:[%s42]]
  %s44 = scalar_lea.smem %s0, 22
  %s45 = sld [smem:[%s44]]
  %s46 = scalar_lea.smem %s0, 23
  %s47 = sld [smem:[%s46]]
  %s48 = scalar_lea.smem %s0, 24
  %s49 = sld [smem:[%s48]]
  %s50 = scalar_lea.smem %s0, 25
  %s51 = sld [smem:[%s50]]
  %s52 = scalar_lea.smem %s0, 26
  %s53 = sld [smem:[%s52]]
  %s54 = scalar_lea.smem %s0, 27
  %s55 = sld [smem:[%s54]]
  %s56 = scalar_lea.smem %s0, 28
  %s57 = sld [smem:[%s56]]
  %s58 = scalar_lea.smem %s0, 29
  %s59 = sld [smem:[%s58]]
  %s60 = sld [smem:[#allocation0]]
  $region146: #{tpu_custom_call.1} parent=0
    _
  %s62 = ssub.s32 1, %s60
  %s63 = scalar_select 0, %s62, %s60
  $region1: #{tpu_custom_call.1} parent=0
    #allocation2 [shape = 'u8[512]{0}', space=vmem, size = 0x400, scoped, tag = 'input window, operand 2, single buffered']
    #allocation3 [shape = 's32[1]{0}', space=sflag, size = 0x4, scoped, tag = 'scoped memory for tpu_custom_call.1']
    #allocation4 [shape = 's32[1]{0}', space=sflag, size = 0x4, scoped, tag = 'scoped memory for tpu_custom_call.1']
    #allocation5 [shape = 'u8[512]{0}', space=vmem, size = 0x400, scoped, tag = 'input window, operand 3, single buffered']
    #allocation6 [shape = 's32[1]{0}', space=sflag, size = 0x4, scoped, tag = 'scoped memory for tpu_custom_call.1']
    #allocation7 [shape = 'u8[512]{0}', space=vmem, size = 0x400, scoped, tag = 'input window, operand 5, single buffered']
    #allocation8 [shape = 'u8[512]{0}', space=vmem, size = 0x400, scoped, tag = 'input window, operand 6, single buffered']
    #allocation9 [shape = 's32[1]{0}', space=sflag, size = 0x4, scoped, tag = 'scoped memory for tpu_custom_call.1']
    #allocation10 [shape = 'u8[512]{0}', space=vmem, size = 0x400, scoped, tag = 'input window, operand 8, single buffered']
    #allocation11 [shape = 'u8[1024]{0}', space=vmem, size = 0x400, scoped, tag = 'output window, operand 0, single buffered']
    %64 = vsyncpa [#allocation3], 0
    %65 = vsyncpa [#allocation6], 0
    %66 = vsyncpa [#allocation9], 0
    %67 = vsyncpa [#allocation4], 0
    // Predicated region
    $region2: #{tpu_custom_call.1} parent=1 // pred_check
      _
    $region3: #{tpu_custom_call.1} parent=1 // pred_check_branch
      %69 = sbr.rel (0) target = $region5
    $region4: #{tpu_custom_call.1} parent=1 // pred_region
      _
    $region5: #{tpu_custom_call.1} parent=1 // pred_fallthru
      _
    // Predicated region
    $region6: #{tpu_custom_call.1} parent=1 // pred_check
      _
    $region7: #{tpu_custom_call.1} parent=1 // pred_check_branch
      %71 = sbr.rel (0) target = $region9
    $region8: #{tpu_custom_call.1} parent=1 // pred_region
      _
    $region9: #{tpu_custom_call.1} parent=1 // pred_fallthru
      _
    // Predicated region
    $region10: #{tpu_custom_call.1} parent=1 // pred_check
      _
    $region11: #{tpu_custom_call.1} parent=1 // pred_check_branch
      %73 = sbr.rel (0) target = $region13
    $region12: #{tpu_custom_call.1} parent=1 // pred_region
      %s75 = ssub.s32 16, 16
      %76 = vsyncadd [#allocation3], %s75
      %s78 = sshll.u32 [#allocation2], 4
      %s79 = int_to_ptr.vmem [resolvable:$true] %s78
      %81 = dma.hbm_to_vmem [thread:$0]  %s5, 16, %s79, [#allocation3]
    $region13: #{tpu_custom_call.1} parent=1 // pred_fallthru
      _
    // Predicated region
    $region14: #{tpu_custom_call.1} parent=1 // pred_check
      _
    $region15: #{tpu_custom_call.1} parent=1 // pred_check_branch
      %83 = sbr.rel (0) target = $region17
    $region16: #{tpu_custom_call.1} parent=1 // pred_region
      %s85 = ssub.s32 16, 16
      %86 = vsyncadd [#allocation6], %s85
      %s88 = sshll.u32 [#allocation5], 4
      %s89 = int_to_ptr.vmem [resolvable:$true] %s88
      %91 = dma.hbm_to_vmem [thread:$0]  %s7, 16, %s89, [#allocation6]
    $region17: #{tpu_custom_call.1} parent=1 // pred_fallthru
      _
    // Predicated region
    $region18: #{tpu_custom_call.1} parent=1 // pred_check
      _
    $region19: #{tpu_custom_call.1} parent=1 // pred_check_branch
      %93 = sbr.rel (0) target = $region21
    $region20: #{tpu_custom_call.1} parent=1 // pred_region
      _
    $region21: #{tpu_custom_call.1} parent=1 // pred_fallthru
      _
    // Predicated region
    $region22: #{tpu_custom_call.1} parent=1 // pred_check
      _
    $region23: #{tpu_custom_call.1} parent=1 // pred_check_branch
      %95 = sbr.rel (0) target = $region25
    $region24: #{tpu_custom_call.1} parent=1 // pred_region
      %s97 = ssub.s32 16, 16
      %98 = vsyncadd [#allocation6], %s97
      %s100 = sshll.u32 [#allocation7], 4
      %s101 = int_to_ptr.vmem [resolvable:$true] %s100
      %103 = dma.hbm_to_vmem [thread:$0]  %s11, 16, %s101, [#allocation6]
    $region25: #{tpu_custom_call.1} parent=1 // pred_fallthru
      _
    // Predicated region
    $region26: #{tpu_custom_call.1} parent=1 // pred_check
      _
    $region27: #{tpu_custom_call.1} parent=1 // pred_check_branch
      %105 = sbr.rel (0) target = $region29
    $region28: #{tpu_custom_call.1} parent=1 // pred_region
      %s107 = ssub.s32 16, 16
      %108 = vsyncadd [#allocation9], %s107
      %s110 = sshll.u32 [#allocation8], 4
      %s111 = int_to_ptr.vmem [resolvable:$true] %s110
      %113 = dma.hbm_to_vmem [thread:$0]  %s13, 16, %s111, [#allocation9]
    $region29: #{tpu_custom_call.1} parent=1 // pred_fallthru
      _
    // Predicated region
    $region30: #{tpu_custom_call.1} parent=1 // pred_check
      _
    $region31: #{tpu_custom_call.1} parent=1 // pred_check_branch
      %115 = sbr.rel (0) target = $region33
    $region32: #{tpu_custom_call.1} parent=1 // pred_region
      _
    $region33: #{tpu_custom_call.1} parent=1 // pred_fallthru
      _
    // Predicated region
    $region34: #{tpu_custom_call.1} parent=1 // pred_check
      _
    $region35: #{tpu_custom_call.1} parent=1 // pred_check_branch
      %117 = sbr.rel (0) target = $region37
    $region36: #{tpu_custom_call.1} parent=1 // pred_region
      %s119 = ssub.s32 16, 16
      %120 = vsyncadd [#allocation9], %s119
      %s122 = sshll.u32 [#allocation10], 4
      %s123 = int_to_ptr.vmem [resolvable:$true] %s122
      %125 = dma.hbm_to_vmem [thread:$0]  %s17, 16, %s123, [#allocation9]
    $region37: #{tpu_custom_call.1} parent=1 // pred_fallthru
      _
    // Predicated region
    $region38: #{tpu_custom_call.1} parent=1 // pred_check
      _
    $region39: #{tpu_custom_call.1} parent=1 // pred_check_branch
      %127 = sbr.rel (0) target = $region41
    $region40: #{tpu_custom_call.1} parent=1 // pred_region
      _
    $region41: #{tpu_custom_call.1} parent=1 // pred_fallthru
      _
    // Predicated region
    $region42: #{tpu_custom_call.1} parent=1 // pred_check
      _
    $region43: #{tpu_custom_call.1} parent=1 // pred_check_branch
      %129 = sbr.rel (0) target = $region45
    $region44: #{tpu_custom_call.1} parent=1 // pred_region
      _
    $region45: #{tpu_custom_call.1} parent=1 // pred_fallthru
      _
    // Predicated region
    $region46: #{tpu_custom_call.1} parent=1 // pred_check
      _
    $region47: #{tpu_custom_call.1} parent=1 // pred_check_branch
      %131 = sbr.rel (0) target = $region49
    $region48: #{tpu_custom_call.1} parent=1 // pred_region
      _
    $region49: #{tpu_custom_call.1} parent=1 // pred_fallthru
      _
    // Predicated region
    $region50: #{tpu_custom_call.1} parent=1 // pred_check
      _
    $region51: #{tpu_custom_call.1} parent=1 // pred_check_branch
      %133 = sbr.rel (0) target = $region53
    $region52: #{tpu_custom_call.1} parent=1 // pred_region
      _
    $region53: #{tpu_custom_call.1} parent=1 // pred_fallthru
      _
    // Predicated region
    $region54: #{tpu_custom_call.1} parent=1 // pred_check
      _
    $region55: #{tpu_custom_call.1} parent=1 // pred_check_branch
      %135 = sbr.rel (0) target = $region57
    $region56: #{tpu_custom_call.1} parent=1 // pred_region
      _
    $region57: #{tpu_custom_call.1} parent=1 // pred_fallthru
      _
    // Predicated region
    $region58: #{tpu_custom_call.1} parent=1 // pred_check
      _
    $region59: #{tpu_custom_call.1} parent=1 // pred_check_branch
      %137 = sbr.rel (0) target = $region61
    $region60: #{tpu_custom_call.1} parent=1 // pred_region
      _
    $region61: #{tpu_custom_call.1} parent=1 // pred_fallthru
      _
    // Predicated region
    $region62: #{tpu_custom_call.1} parent=1 // pred_check
      _
    $region63: #{tpu_custom_call.1} parent=1 // pred_check_branch
      %139 = sbr.rel (0) target = $region65
    $region64: #{tpu_custom_call.1} parent=1 // pred_region
      _
    $region65: #{tpu_custom_call.1} parent=1 // pred_fallthru
      _
    // Predicated region
    $region66: #{tpu_custom_call.1} parent=1 // pred_check
      _
    $region67: #{tpu_custom_call.1} parent=1 // pred_check_branch
      %141 = sbr.rel (0) target = $region69
    $region68: #{tpu_custom_call.1} parent=1 // pred_region
      _
    $region69: #{tpu_custom_call.1} parent=1 // pred_fallthru
      _
    // Predicated region
    $region70: #{tpu_custom_call.1} parent=1 // pred_check
      _
    $region71: #{tpu_custom_call.1} parent=1 // pred_check_branch
      %143 = sbr.rel (0) target = $region73
    $region72: #{tpu_custom_call.1} parent=1 // pred_region
      _
    $region73: #{tpu_custom_call.1} parent=1 // pred_fallthru
      _
    // Predicated region
    $region74: #{tpu_custom_call.1} parent=1 // pred_check
      _
    $region75: #{tpu_custom_call.1} parent=1 // pred_check_branch
      %145 = sbr.rel (0) target = $region77
    $region76: #{tpu_custom_call.1} parent=1 // pred_region
      _
    $region77: #{tpu_custom_call.1} parent=1 // pred_fallthru
      _
    // Predicated region
    $region78: #{tpu_custom_call.1} parent=1 // pred_check
      _
    $region79: #{tpu_custom_call.1} parent=1 // pred_check_branch
      %147 = sbr.rel (0) target = $region81
    $region80: #{tpu_custom_call.1} parent=1 // pred_region
      _
    $region81: #{tpu_custom_call.1} parent=1 // pred_fallthru
      _
    // Predicated region
    $region82: #{tpu_custom_call.1} parent=1 // pred_check
      _
    $region83: #{tpu_custom_call.1} parent=1 // pred_check_branch
      %149 = sbr.rel (0) target = $region85
    $region84: #{tpu_custom_call.1} parent=1 // pred_region
      _
    $region85: #{tpu_custom_call.1} parent=1 // pred_fallthru
      _
    // Predicated region
    $region86: #{tpu_custom_call.1} parent=1 // pred_check
      _
    $region87: #{tpu_custom_call.1} parent=1 // pred_check_branch
      %151 = sbr.rel (0) target = $region89
    $region88: #{tpu_custom_call.1} parent=1 // pred_region
      _
    $region89: #{tpu_custom_call.1} parent=1 // pred_fallthru
      _
    // Predicated region
    $region90: #{tpu_custom_call.1} parent=1 // pred_check
      _
    $region91: #{tpu_custom_call.1} parent=1 // pred_check_branch
      %153 = sbr.rel (0) target = $region93
    $region92: #{tpu_custom_call.1} parent=1 // pred_region
      _
    $region93: #{tpu_custom_call.1} parent=1 // pred_fallthru
      _
    // Predicated region
    $region94: #{tpu_custom_call.1} parent=1 // pred_check
      _
    $region95: #{tpu_custom_call.1} parent=1 // pred_check_branch
      %155 = sbr.rel (0) target = $region97
    $region96: #{tpu_custom_call.1} parent=1 // pred_region
      _
    $region97: #{tpu_custom_call.1} parent=1 // pred_fallthru
      _
    // Predicated region
    $region98: #{tpu_custom_call.1} parent=1 // pred_check
      _
    $region99: #{tpu_custom_call.1} parent=1 // pred_check_branch
      %157 = sbr.rel (0) target = $region101
    $region100: #{tpu_custom_call.1} parent=1 // pred_region
      _
    $region101: #{tpu_custom_call.1} parent=1 // pred_fallthru
      _
    // Predicated region
    $region102: #{tpu_custom_call.1} parent=1 // pred_check
      _
    $region103: #{tpu_custom_call.1} parent=1 // pred_check_branch
      %159 = sbr.rel (0) target = $region105
    $region104: #{tpu_custom_call.1} parent=1 // pred_region
      _
    $region105: #{tpu_custom_call.1} parent=1 // pred_fallthru
      _
    // Predicated region
    $region106: #{tpu_custom_call.1} parent=1 // pred_check
      _
    $region107: #{tpu_custom_call.1} parent=1 // pred_check_branch
      %161 = sbr.rel (0) target = $region109
    $region108: #{tpu_custom_call.1} parent=1 // pred_region
      _
    $region109: #{tpu_custom_call.1} parent=1 // pred_fallthru
      _
    // Predicated region
    $region110: #{tpu_custom_call.1} parent=1 // pred_check
      _
    $region111: #{tpu_custom_call.1} parent=1 // pred_check_branch
      %163 = sbr.rel (0) target = $region113
    $region112: #{tpu_custom_call.1} parent=1 // pred_region
      _
    $region113: #{tpu_custom_call.1} parent=1 // pred_fallthru
      _
    // Predicated region
    $region114: #{tpu_custom_call.1} parent=1 // pred_check
      _
    $region115: #{tpu_custom_call.1} parent=1 // pred_check_branch
      %165 = sbr.rel (0) target = $region117
    $region116: #{tpu_custom_call.1} parent=1 // pred_region
      _
    $region117: #{tpu_custom_call.1} parent=1 // pred_fallthru
      _
    // Predicated region
    $region118: #{tpu_custom_call.1} parent=1 // pred_check
      _
    $region119: #{tpu_custom_call.1} parent=1 // pred_check_branch
      %167 = sbr.rel (0) target = $region121
    $region120: #{tpu_custom_call.1} parent=1 // pred_region
      %168 = dma.done [#allocation3], 16
    $region121: #{tpu_custom_call.1} parent=1 // pred_fallthru
      _
    // Predicated region
    $region122: #{tpu_custom_call.1} parent=1 // pred_check
      _
    $region123: #{tpu_custom_call.1} parent=1 // pred_check_branch
      %170 = sbr.rel (0) target = $region125
    $region124: #{tpu_custom_call.1} parent=1 // pred_region
      %171 = dma.done [#allocation6], 16
    $region125: #{tpu_custom_call.1} parent=1 // pred_fallthru
      _
    // Predicated region
    $region126: #{tpu_custom_call.1} parent=1 // pred_check
      _
    $region127: #{tpu_custom_call.1} parent=1 // pred_check_branch
      %173 = sbr.rel (0) target = $region129
    $region128: #{tpu_custom_call.1} parent=1 // pred_region
      %174 = dma.done [#allocation6], 16
    $region129: #{tpu_custom_call.1} parent=1 // pred_fallthru
      _
    // Predicated region
    $region130: #{tpu_custom_call.1} parent=1 // pred_check
      _
    $region131: #{tpu_custom_call.1} parent=1 // pred_check_branch
      %176 = sbr.rel (0) target = $region133
    $region132: #{tpu_custom_call.1} parent=1 // pred_region
      %177 = dma.done [#allocation9], 16
    $region133: #{tpu_custom_call.1} parent=1 // pred_fallthru
      _
    // Predicated region
    $region134: #{tpu_custom_call.1} parent=1 // pred_check
      _
    $region135: #{tpu_custom_call.1} parent=1 // pred_check_branch
      %179 = sbr.rel (0) target = $region137
    $region136: #{tpu_custom_call.1} parent=1 // pred_region
      %180 = dma.done [#allocation9], 16
    $region137: #{tpu_custom_call.1} parent=1 // pred_fallthru
      _
    %v182 = vld [vmem:[%s1] sm:$0xff]
    %v183 = vld [vmem:[%s1 + $0x8] sm:$0xff]
    %v184 = vld [vmem:[%s1 + $0x10] sm:$0xff]
    %v185 = vld [vmem:[%s1 + $0x18] sm:$0xff]
    %v186 = vlaneseq
    %v187 = vshrl.u32 %v186, 7
    %v188 = vadd.s32 %v187, 8
    %v189 = vrot.slane %v182, 6
    %v190 = vrot.slane %v183, 6
    %v191 = vrot.slane %v184, 6
    %v192 = vrot.slane %v185, 6
    %vm193 = vcmp.lt.s32.totalorder %v187, 2
    %v194 = vsel %vm193, %v191, %v192
    %v195 = vsel %vm193, %v190, %v191
    %v196 = vsel %vm193, %v189, %v190
    %v197 = vsel %vm193, %v192, %v189
    %v198 = vadd.s32 %v187, 4294967294
    %v199 = vadd.s32 %v188, 4294967294
    %vm200 = vcmp.ge.s32.totalorder %v198, 0
    %vm201 = vcmp.ge.s32.totalorder %v199, 0
    %vm202 = vcmp.lt.s32.totalorder %v198, 16
    %vm203 = vcmp.lt.s32.totalorder %v199, 16
    %vm204 = vmand %vm200, %vm202
    %vm205 = vmand %vm201, %vm203
    %v206 = vsel %vm204, 1, 0
    %v207 = vsel %vm205, 1, 0
    %vm208 = vcmp.eq.s32.totalorder %v206, 1
    %vm209 = vcmp.eq.s32.totalorder %v207, 1
    %v210 = vsel %vm208, %v197, 0.0
    %v211 = vsel %vm209, %v196, 0.0
    %v212 = vsel %vm208, %v195, 0.0
    %v213 = vsel %vm209, %v194, 0.0
    %v214 = vrot.slane %v182, 7
    %v215 = vrot.slane %v183, 7
    %v216 = vrot.slane %v184, 7
    %v217 = vrot.slane %v185, 7
    %vm218 = vcmp.lt.s32.totalorder %v187, 1
    %v219 = vsel %vm218, %v216, %v217
    %v220 = vsel %vm218, %v215, %v216
    %v221 = vsel %vm218, %v214, %v215
    %v222 = vsel %vm218, %v217, %v214
    %v223 = vadd.s32 %v187, 4294967295
    %v224 = vadd.s32 %v188, 4294967295
    %vm225 = vcmp.ge.s32.totalorder %v223, 0
    %vm226 = vcmp.ge.s32.totalorder %v224, 0
    %vm227 = vcmp.lt.s32.totalorder %v223, 16
    %vm228 = vcmp.lt.s32.totalorder %v224, 16
    %vm229 = vmand %vm225, %vm227
    %vm230 = vmand %vm226, %vm228
    %v231 = vsel %vm229, 1, 0
    %v232 = vsel %vm230, 1, 0
    %vm233 = vcmp.eq.s32.totalorder %v231, 1
    %vm234 = vcmp.eq.s32.totalorder %v232, 1
    %v235 = vsel %vm233, %v222, 0.0
    %v236 = vsel %vm234, %v221, 0.0
    %v237 = vsel %vm233, %v220, 0.0
    %v238 = vsel %vm234, %v219, 0.0
    %v239 = vrot.slane %v182, 1
    %v240 = vrot.slane %v183, 1
    %v241 = vrot.slane %v184, 1
    %v242 = vrot.slane %v185, 1
    %vm243 = vcmp.lt.s32.totalorder %v187, 7
    %v244 = vsel %vm243, %v241, %v242
    %v245 = vsel %vm243, %v240, %v241
    %v246 = vsel %vm243, %v239, %v240
    %v247 = vsel %vm243, %v242, %v239
    %v248 = vadd.s32 %v187, 1
    %v249 = vadd.s32 %v188, 1
    %vm250 = vcmp.ge.s32.totalorder %v248, 0
    %vm251 = vcmp.ge.s32.totalorder %v249, 0
    %vm252 = vcmp.lt.s32.totalorder %v248, 16
    %vm253 = vcmp.lt.s32.totalorder %v249, 16
    %vm254 = vmand %vm250, %vm252
    %vm255 = vmand %vm251, %vm253
    %v256 = vsel %vm254, 1, 0
    %v257 = vsel %vm255, 1, 0
    %vm258 = vcmp.eq.s32.totalorder %v256, 1
    %vm259 = vcmp.eq.s32.totalorder %v257, 1
    %v260 = vsel %vm258, %v246, 0.0
    %v261 = vsel %vm259, %v245, 0.0
    %v262 = vsel %vm258, %v244, 0.0
    %v263 = vsel %vm259, %v247, 0.0
    %v264 = vrot.slane %v182, 2
    %v265 = vrot.slane %v183, 2
    %v266 = vrot.slane %v184, 2
    %v267 = vrot.slane %v185, 2
    %vm268 = vcmp.lt.s32.totalorder %v187, 6
    %v269 = vsel %vm268, %v266, %v267
    %v270 = vsel %vm268, %v265, %v266
    %v271 = vsel %vm268, %v264, %v265
    %v272 = vsel %vm268, %v267, %v264
    %v273 = vadd.s32 %v187, 2
    %v274 = vadd.s32 %v188, 2
    %vm275 = vcmp.ge.s32.totalorder %v273, 0
    %vm276 = vcmp.ge.s32.totalorder %v274, 0
    %vm277 = vcmp.lt.s32.totalorder %v273, 16
    %vm278 = vcmp.lt.s32.totalorder %v274, 16
    %vm279 = vmand %vm275, %vm277
    %vm280 = vmand %vm276, %vm278
    %v281 = vsel %vm279, 1, 0
    %v282 = vsel %vm280, 1, 0
    %vm283 = vcmp.eq.s32.totalorder %v281, 1
    %vm284 = vcmp.eq.s32.totalorder %v282, 1
    %v285 = vsel %vm283, %v271, 0.0
    %v286 = vsel %vm284, %v270, 0.0
    %v287 = vsel %vm283, %v269, 0.0
    %v288 = vsel %vm284, %v272, 0.0
    %293 = vrot.lane.b32.xlu0 %v235, 4
    %v294 = vpop.permute.xlu0 %293
    %295 = vrot.lane.b32.xlu0 %v236, 4
    %v296 = vpop.permute.xlu0 %295
    %297 = vrot.lane.b32.xlu0 %v237, 4
    %v298 = vpop.permute.xlu0 %297
    %299 = vrot.lane.b32.xlu0 %v238, 4
    %v300 = vpop.permute.xlu0 %299
    %309 = vrot.lane.b32.xlu0 %v182, 8
    %v310 = vpop.permute.xlu0 %309
    %311 = vrot.lane.b32.xlu0 %v183, 8
    %v312 = vpop.permute.xlu0 %311
    %313 = vrot.lane.b32.xlu0 %v184, 8
    %v314 = vpop.permute.xlu0 %313
    %315 = vrot.lane.b32.xlu0 %v185, 8
    %v316 = vpop.permute.xlu0 %315
    %325 = vrot.lane.b32.xlu0 %v260, 12
    %v326 = vpop.permute.xlu0 %325
    %327 = vrot.lane.b32.xlu0 %v261, 12
    %v328 = vpop.permute.xlu0 %327
    %329 = vrot.lane.b32.xlu0 %v262, 12
    %v330 = vpop.permute.xlu0 %329
    %331 = vrot.lane.b32.xlu0 %v263, 12
    %v332 = vpop.permute.xlu0 %331
    %341 = vrot.lane.b32.xlu0 %v285, 16
    %v342 = vpop.permute.xlu0 %341
    %343 = vrot.lane.b32.xlu0 %v286, 16
    %v344 = vpop.permute.xlu0 %343
    %345 = vrot.lane.b32.xlu0 %v287, 16
    %v346 = vpop.permute.xlu0 %345
    %347 = vrot.lane.b32.xlu0 %v288, 16
    %v348 = vpop.permute.xlu0 %347
    %vm353 = vcmask 31744
    %v354 = vsel %vm353, %v210, %v294
    %v355 = vsel %vm353, %v211, %v296
    %v356 = vsel %vm353, %v212, %v298
    %v357 = vsel %vm353, %v213, %v300
    %vm358 = vcmask 64512
    %v359 = vsel %vm358, %v354, %v310
    %v360 = vsel %vm358, %v355, %v312
    %v361 = vsel %vm358, %v356, %v314
    %v362 = vsel %vm358, %v357, %v316
    %vm363 = vcmask 97280
    %v364 = vsel %vm363, %v359, %v326
    %v365 = vsel %vm363, %v360, %v328
    %v366 = vsel %vm363, %v361, %v330
    %v367 = vsel %vm363, %v362, %v332
    %vm368 = vcmask 130048
    %v369 = vsel %vm368, %v364, %v342
    %v370 = vsel %vm368, %v365, %v344
    %v371 = vsel %vm368, %v366, %v346
    %v372 = vsel %vm368, %v367, %v348
    %v373 = vpack.c.bf16 %v370, %v369
    %v374 = vpack.c.bf16 %v372, %v371
    %v375 = vld [vmem:[%s3] sm:$0xf]
    %v376 = vld [vmem:[%s3 + $0x4] sm:$0xf]
    %v377 = vld [vmem:[%s3 + $0x8] sm:$0x3]
    %v381 = vunpack.c.l.b16 %v375
    %v382 = vunpack.c.l.b16 %v376
    %v383 = vunpack.c.l.b16 %v377
    %v384 = vpack.c.b16 %v382, %v381
    %v385 = vpack.c.b16 %v383, %v383
    %vm387 = vcmask 162816
    %v389 = vsel %vm387, %v373, 0
    %v392 = vsel %vm387, %v374, 0
    %vm394 = vcmask 1041408
    %v396 = vsel %vm394, %v385, 0
    %398 = vmatprep.subr.bf16.mxu0 0
    %399 = vmatpush1.bf16.msra.mxu0 %v384
    %400 = vmatprep.subr.bf16.mxu0 0
    %401 = vmatpush1.bf16.msra.mxu0 %v396
    %402 = vmatprep.subr.bf16.mxu0 0
    %403 = vmatpush1.bf16.msra.mxu0 0
    %404 = vmatprep.subr.bf16.mxu0 0
    %405 = vmatpush1.bf16.msra.mxu0 0
    %406 = vmatprep.subr.bf16.mxu0 0
    %407 = vmatpush1.bf16.msra.mxu0 0
    %408 = vmatprep.subr.bf16.mxu0 0
    %409 = vmatpush1.bf16.msra.mxu0 0
    %410 = vmatprep.subr.bf16.mxu0 0
    %411 = vmatpush1.bf16.msra.mxu0 0
    %412 = vmatprep.subr.bf16.mxu0 0
    %413 = vmatpush1.bf16.msra.mxu0 0
    %414 = vmatprep.subr.bf16.mxu0 0
    %415 = vmatpush1.bf16.msra.mxu0 0
    %416 = vmatprep.subr.bf16.mxu0 0
    %417 = vmatpush1.bf16.msra.mxu0 0
    %418 = vmatprep.subr.bf16.mxu0 0
    %419 = vmatpush1.bf16.msra.mxu0 0
    %420 = vmatprep.subr.bf16.mxu0 0
    %421 = vmatpush1.bf16.msra.mxu0 0
    %422 = vmatprep.subr.bf16.mxu0 0
    %423 = vmatpush1.bf16.msra.mxu0 0
    %424 = vmatprep.subr.bf16.mxu0 0
    %425 = vmatpush1.bf16.msra.mxu0 0
    %426 = vmatprep.subr.bf16.mxu0 0
    %427 = vmatpush1.bf16.msra.mxu0 0
    %428 = vmatprep.subr.bf16.mxu0 0
    %429 = vmatpush1.bf16.msra.mxu0 0
    %430 = vmatprep.mubr.bf16.mxu0 0
    %431 = vmatmul.mubr.bf16.gmra.mrb[0].mxu0 %v389
    %v432 = vpop.f32.mrb[0].mxu0
    %v433 = vadd.f32 0.0, %v432
    %v434 = vpop.f32.mrb[0].mxu0
    %v435 = vpop.f32.mrb[0].mxu0
    %v436 = vadd.f32 0.0, %v435
    %v437 = vpop.f32.mrb[0].mxu0
    %438 = vmatprep.mubr.bf16.mxu0 0
    %439 = vmatmul.mubr.bf16.gmra.mrb[0].mxu0 %v392
    %v440 = vpop.f32.mrb[0].mxu0
    %v441 = vadd.f32 0.0, %v440
    %v442 = vpop.f32.mrb[0].mxu0
    %v443 = vpop.f32.mrb[0].mxu0
    %v444 = vadd.f32 0.0, %v443
    %v445 = vpop.f32.mrb[0].mxu0
    %446 = vdwg.mxu0
    %v447 = vld [vmem:[#allocation2] sm:$0x1]
    %v449 = vlaneseq
    %v450 = vshrl.u32 %v449, 7
    %v451 = vsub.s32 0, %v450
    %v452 = vrot.slane %v447, %v451
    %v454 = vmul.f32 %v433, %v452
    %v455 = vmul.f32 %v436, %v452
    %v456 = vmul.f32 %v441, %v452
    %v457 = vmul.f32 %v444, %v452
    %v458 = vld [vmem:[#allocation5] sm:$0x1]
    %v460 = vlaneseq
    %v461 = vshrl.u32 %v460, 7
    %v462 = vsub.s32 0, %v461
    %v463 = vrot.slane %v458, %v462
    %v465 = vadd.f32 %v454, %v463
    %v466 = vadd.f32 %v455, %v463
    %v467 = vadd.f32 %v456, %v463
    %v468 = vadd.f32 %v457, %v463
    %v469 = vmax.f32 %v465, 0.0
    %v470 = vmax.f32 %v466, 0.0
    %v471 = vmax.f32 %v467, 0.0
    %v472 = vmax.f32 %v468, 0.0
    %v473 = vrot.slane %v469, 7
    %v474 = vrot.slane %v470, 7
    %v475 = vrot.slane %v471, 7
    %v476 = vrot.slane %v472, 7
    %v477 = vsel %vm218, %v475, %v476
    %v478 = vsel %vm218, %v474, %v475
    %v479 = vsel %vm218, %v473, %v474
    %v480 = vsel %vm218, %v476, %v473
    %v481 = vsel %vm233, %v480, 0.0
    %v482 = vsel %vm234, %v479, 0.0
    %v483 = vsel %vm233, %v478, 0.0
    %v484 = vsel %vm234, %v477, 0.0
    %v485 = vrot.slane %v469, 1
    %v486 = vrot.slane %v470, 1
    %v487 = vrot.slane %v471, 1
    %v488 = vrot.slane %v472, 1
    %v489 = vsel %vm243, %v487, %v488
    %v490 = vsel %vm243, %v486, %v487
    %v491 = vsel %vm243, %v485, %v486
    %v492 = vsel %vm243, %v488, %v485
    %v493 = vsel %vm258, %v491, 0.0
    %v494 = vsel %vm259, %v490, 0.0
    %v495 = vsel %vm258, %v489, 0.0
    %v496 = vsel %vm259, %v492, 0.0
    %501 = vrot.lane.b32.xlu0 %v469, 8
    %v502 = vpop.permute.xlu0 %501
    %503 = vrot.lane.b32.xlu0 %v470, 8
    %v504 = vpop.permute.xlu0 %503
    %505 = vrot.lane.b32.xlu0 %v471, 8
    %v506 = vpop.permute.xlu0 %505
    %507 = vrot.lane.b32.xlu0 %v472, 8
    %v508 = vpop.permute.xlu0 %507
    %517 = vrot.lane.b32.xlu0 %v493, 16
    %v518 = vpop.permute.xlu0 %517
    %519 = vrot.lane.b32.xlu0 %v494, 16
    %v520 = vpop.permute.xlu0 %519
    %521 = vrot.lane.b32.xlu0 %v495, 16
    %v522 = vpop.permute.xlu0 %521
    %523 = vrot.lane.b32.xlu0 %v496, 16
    %v524 = vpop.permute.xlu0 %523
    %v529 = vsel %vm358, %v481, %v502
    %v530 = vsel %vm358, %v482, %v504
    %v531 = vsel %vm358, %v483, %v506
    %v532 = vsel %vm358, %v484, %v508
    %v533 = vsel %vm368, %v529, %v518
    %v534 = vsel %vm368, %v530, %v520
    %v535 = vsel %vm368, %v531, %v522
    %v536 = vsel %vm368, %v532, %v524
    %v537 = vpack.c.bf16 %v534, %v533
    %v538 = vpack.c.bf16 %v536, %v535
    %v539 = vld [vmem:[%s9] sm:$0xf]
    %v540 = vld [vmem:[%s9 + $0x4] sm:$0xf]
    %v541 = vld [vmem:[%s9 + $0x8] sm:$0xf]
    %v545 = vunpack.c.l.b16 %v539
    %v546 = vunpack.c.l.b16 %v540
    %v547 = vunpack.c.l.b16 %v541
    %v548 = vpack.c.b16 %v546, %v545
    %v549 = vpack.c.b16 %v547, %v547
    %vm551 = vcmask 195584
    %v553 = vsel %vm551, %v537, 0
    %v556 = vsel %vm551, %v538, 0
    %vm558 = vcmask 1043456
    %v560 = vsel %vm558, %v549, 0
    %562 = vmatprep.subr.bf16.mxu0 0
    %563 = vmatpush1.bf16.msra.mxu0 %v548
    %564 = vmatprep.subr.bf16.mxu0 0
    %565 = vmatpush1.bf16.msra.mxu0 %v560
    %566 = vmatprep.subr.bf16.mxu0 0
    %567 = vmatpush1.bf16.msra.mxu0 0
    %568 = vmatprep.subr.bf16.mxu0 0
    %569 = vmatpush1.bf16.msra.mxu0 0
    %570 = vmatprep.subr.bf16.mxu0 0
    %571 = vmatpush1.bf16.msra.mxu0 0
    %572 = vmatprep.subr.bf16.mxu0 0
    %573 = vmatpush1.bf16.msra.mxu0 0
    %574 = vmatprep.subr.bf16.mxu0 0
    %575 = vmatpush1.bf16.msra.mxu0 0
    %576 = vmatprep.subr.bf16.mxu0 0
    %577 = vmatpush1.bf16.msra.mxu0 0
    %578 = vmatprep.subr.bf16.mxu0 0
    %579 = vmatpush1.bf16.msra.mxu0 0
    %580 = vmatprep.subr.bf16.mxu0 0
    %581 = vmatpush1.bf16.msra.mxu0 0
    %582 = vmatprep.subr.bf16.mxu0 0
    %583 = vmatpush1.bf16.msra.mxu0 0
    %584 = vmatprep.subr.bf16.mxu0 0
    %585 = vmatpush1.bf16.msra.mxu0 0
    %586 = vmatprep.subr.bf16.mxu0 0
    %587 = vmatpush1.bf16.msra.mxu0 0
    %588 = vmatprep.subr.bf16.mxu0 0
    %589 = vmatpush1.bf16.msra.mxu0 0
    %590 = vmatprep.subr.bf16.mxu0 0
    %591 = vmatpush1.bf16.msra.mxu0 0
    %592 = vmatprep.subr.bf16.mxu0 0
    %593 = vmatpush1.bf16.msra.mxu0 0
    %594 = vmatprep.mubr.bf16.mxu0 0
    %595 = vmatmul.mubr.bf16.gmra.mrb[0].mxu0 %v553
    %v596 = vpop.f32.mrb[0].mxu0
    %v597 = vadd.f32 0.0, %v596
    %v598 = vpop.f32.mrb[0].mxu0
    %v599 = vpop.f32.mrb[0].mxu0
    %v600 = vadd.f32 0.0, %v599
    %v601 = vpop.f32.mrb[0].mxu0
    %602 = vmatprep.mubr.bf16.mxu0 0
    %603 = vmatmul.mubr.bf16.gmra.mrb[0].mxu0 %v556
    %v604 = vpop.f32.mrb[0].mxu0
    %v605 = vadd.f32 0.0, %v604
    %v606 = vpop.f32.mrb[0].mxu0
    %v607 = vpop.f32.mrb[0].mxu0
    %v608 = vadd.f32 0.0, %v607
    %v609 = vpop.f32.mrb[0].mxu0
    %610 = vdwg.mxu0
    %v611 = vld [vmem:[#allocation7] sm:$0x1]
    %v613 = vlaneseq
    %v614 = vshrl.u32 %v613, 7
    %v615 = vsub.s32 0, %v614
    %v616 = vrot.slane %v611, %v615
    %v618 = vmul.f32 %v597, %v616
    %v619 = vmul.f32 %v600, %v616
    %v620 = vmul.f32 %v605, %v616
    %v621 = vmul.f32 %v608, %v616
    %v622 = vld [vmem:[#allocation8] sm:$0x1]
    %v624 = vlaneseq
    %v625 = vshrl.u32 %v624, 7
    %v626 = vsub.s32 0, %v625
    %v627 = vrot.slane %v622, %v626
    %v629 = vadd.f32 %v618, %v627
    %v630 = vadd.f32 %v619, %v627
    %v631 = vadd.f32 %v620, %v627
    %v632 = vadd.f32 %v621, %v627
    %v633 = vmax.f32 %v629, 0.0
    %v634 = vmax.f32 %v630, 0.0
    %v635 = vmax.f32 %v631, 0.0
    %v636 = vmax.f32 %v632, 0.0
    %v637 = vrot.slane %v633, 7
    %v638 = vrot.slane %v634, 7
    %v639 = vrot.slane %v635, 7
    %v640 = vrot.slane %v636, 7
    %v641 = vsel %vm218, %v639, %v640
    %v642 = vsel %vm218, %v638, %v639
    %v643 = vsel %vm218, %v637, %v638
    %v644 = vsel %vm218, %v640, %v637
    %v645 = vsel %vm233, %v644, 0.0
    %v646 = vsel %vm234, %v643, 0.0
    %v647 = vsel %vm233, %v642, 0.0
    %v648 = vsel %vm234, %v641, 0.0
    %v649 = vrot.slane %v633, 1
    %v650 = vrot.slane %v634, 1
    %v651 = vrot.slane %v635, 1
    %v652 = vrot.slane %v636, 1
    %v653 = vsel %vm243, %v651, %v652
    %v654 = vsel %vm243, %v650, %v651
    %v655 = vsel %vm243, %v649, %v650
    %v656 = vsel %vm243, %v652, %v649
    %v657 = vsel %vm258, %v655, 0.0
    %v658 = vsel %vm259, %v654, 0.0
    %v659 = vsel %vm258, %v653, 0.0
    %v660 = vsel %vm259, %v656, 0.0
    %665 = vrot.lane.b32.xlu0 %v633, 16
    %v666 = vpop.permute.xlu0 %665
    %667 = vrot.lane.b32.xlu0 %v634, 16
    %v668 = vpop.permute.xlu0 %667
    %669 = vrot.lane.b32.xlu0 %v635, 16
    %v670 = vpop.permute.xlu0 %669
    %671 = vrot.lane.b32.xlu0 %v636, 16
    %v672 = vpop.permute.xlu0 %671
    %681 = vrot.lane.b32.xlu0 %v657, 32
    %v682 = vpop.permute.xlu0 %681
    %683 = vrot.lane.b32.xlu0 %v658, 32
    %v684 = vpop.permute.xlu0 %683
    %685 = vrot.lane.b32.xlu0 %v659, 32
    %v686 = vpop.permute.xlu0 %685
    %687 = vrot.lane.b32.xlu0 %v660, 32
    %v688 = vpop.permute.xlu0 %687
    %v693 = vsel %vm368, %v645, %v666
    %v694 = vsel %vm368, %v646, %v668
    %v695 = vsel %vm368, %v647, %v670
    %v696 = vsel %vm368, %v648, %v672
    %vm697 = vcmask 261120
    %v698 = vsel %vm697, %v693, %v682
    %v699 = vsel %vm697, %v694, %v684
    %v700 = vsel %vm697, %v695, %v686
    %v701 = vsel %vm697, %v696, %v688
    %v702 = vpack.c.bf16 %v699, %v698
    %v703 = vpack.c.bf16 %v701, %v700
    %v704 = vld [vmem:[%s15] sm:$0xf]
    %v705 = vld [vmem:[%s15 + $0x4] sm:$0xf]
    %v706 = vld [vmem:[%s15 + $0x8] sm:$0xf]
    %v707 = vld [vmem:[%s15 + $0xc] sm:$0xf]
    %v708 = vld [vmem:[%s15 + $0x10] sm:$0xf]
    %v709 = vld [vmem:[%s15 + $0x14] sm:$0xf]
    %v716 = vunpack.c.l.b16 %v704
    %v717 = vunpack.c.l.b16 %v705
    %v718 = vunpack.c.l.b16 %v706
    %v719 = vunpack.c.l.b16 %v707
    %v720 = vunpack.c.l.b16 %v708
    %v721 = vunpack.c.l.b16 %v709
    %v722 = vpack.c.b16 %v717, %v716
    %v723 = vpack.c.b16 %v719, %v718
    %v724 = vpack.c.b16 %v721, %v720
    %vm728 = vcmask 392192
    %v730 = vsel %vm728, %v702, 0
    %v733 = vsel %vm728, %v703, 0
    %735 = vmatprep.subr.bf16.mxu0 0
    %736 = vmatpush1.bf16.msra.mxu0 %v722
    %737 = vmatprep.subr.bf16.mxu0 0
    %738 = vmatpush1.bf16.msra.mxu0 %v723
    %739 = vmatprep.subr.bf16.mxu0 0
    %740 = vmatpush1.bf16.msra.mxu0 %v724
    %741 = vmatprep.subr.bf16.mxu0 0
    %742 = vmatpush1.bf16.msra.mxu0 0
    %743 = vmatprep.subr.bf16.mxu0 0
    %744 = vmatpush1.bf16.msra.mxu0 0
    %745 = vmatprep.subr.bf16.mxu0 0
    %746 = vmatpush1.bf16.msra.mxu0 0
    %747 = vmatprep.subr.bf16.mxu0 0
    %748 = vmatpush1.bf16.msra.mxu0 0
    %749 = vmatprep.subr.bf16.mxu0 0
    %750 = vmatpush1.bf16.msra.mxu0 0
    %751 = vmatprep.subr.bf16.mxu0 0
    %752 = vmatpush1.bf16.msra.mxu0 0
    %753 = vmatprep.subr.bf16.mxu0 0
    %754 = vmatpush1.bf16.msra.mxu0 0
    %755 = vmatprep.subr.bf16.mxu0 0
    %756 = vmatpush1.bf16.msra.mxu0 0
    %757 = vmatprep.subr.bf16.mxu0 0
    %758 = vmatpush1.bf16.msra.mxu0 0
    %759 = vmatprep.subr.bf16.mxu0 0
    %760 = vmatpush1.bf16.msra.mxu0 0
    %761 = vmatprep.subr.bf16.mxu0 0
    %762 = vmatpush1.bf16.msra.mxu0 0
    %763 = vmatprep.subr.bf16.mxu0 0
    %764 = vmatpush1.bf16.msra.mxu0 0
    %765 = vmatprep.subr.bf16.mxu0 0
    %766 = vmatpush1.bf16.msra.mxu0 0
    %767 = vmatprep.mubr.bf16.mxu0 0
    %768 = vmatmul.mubr.bf16.gmra.mrb[0].mxu0 %v730
    %v769 = vpop.f32.mrb[0].mxu0
    %v770 = vadd.f32 0.0, %v769
    %v771 = vpop.f32.mrb[0].mxu0
    %v772 = vpop.f32.mrb[0].mxu0
    %v773 = vadd.f32 0.0, %v772
    %v774 = vpop.f32.mrb[0].mxu0
    %775 = vmatprep.mubr.bf16.mxu0 0
    %776 = vmatmul.mubr.bf16.gmra.mrb[0].mxu0 %v733
    %v777 = vpop.f32.mrb[0].mxu0
    %v778 = vadd.f32 0.0, %v777
    %v779 = vpop.f32.mrb[0].mxu0
    %v780 = vpop.f32.mrb[0].mxu0
    %v781 = vadd.f32 0.0, %v780
    %v782 = vpop.f32.mrb[0].mxu0
    %783 = vdwg.mxu0
    %v784 = vld [vmem:[#allocation10] sm:$0x1]
    %v786 = vlaneseq
    %v787 = vshrl.u32 %v786, 7
    %v788 = vsub.s32 0, %v787
    %v789 = vrot.slane %v784, %v788
    %v791 = vmul.f32 %v770, %v789
    %v792 = vmul.f32 %v773, %v789
    %v793 = vmul.f32 %v778, %v789
    %v794 = vmul.f32 %v781, %v789
    %v795 = vld [vmem:[%s19] sm:$0x1]
    %v797 = vlaneseq
    %v798 = vshrl.u32 %v797, 7
    %v799 = vsub.s32 0, %v798
    %v800 = vrot.slane %v795, %v799
    %v802 = vadd.f32 %v791, %v800
    %v803 = vadd.f32 %v792, %v800
    %v804 = vadd.f32 %v793, %v800
    %v805 = vadd.f32 %v794, %v800
    %v806 = vmax.f32 %v802, 0.0
    %v807 = vmax.f32 %v803, 0.0
    %v808 = vmax.f32 %v804, 0.0
    %v809 = vmax.f32 %v805, 0.0
    %v810 = vld [vmem:[%s21] sm:$0xff]
    %v811 = vld [vmem:[%s21 + $0x8] sm:$0xff]
    %v812 = vadd.f32 %v806, %v810
    %v813 = vadd.f32 %v807, %v811
    %v814 = vadd.f32 %v808, %v810
    %v815 = vadd.f32 %v809, %v811
    %v816 = vpack.c.bf16 %v813, %v812
    %v817 = vpack.c.bf16 %v815, %v814
    %v818 = vld [vmem:[%s23] sm:$0xf]
    %v819 = vld [vmem:[%s23 + $0x4] sm:$0xf]
    %v820 = vld [vmem:[%s23 + $0x8] sm:$0xf]
    %v821 = vld [vmem:[%s23 + $0xc] sm:$0xf]
    %v822 = vld [vmem:[%s25] sm:$0x1]
    %v824 = vlaneseq
    %v825 = vshrl.u32 %v824, 7
    %v826 = vsub.s32 0, %v825
    %v827 = vrot.slane %v822, %v826
    %v833 = vunpack.c.l.b16 %v818
    %v834 = vunpack.c.l.b16 %v819
    %v835 = vunpack.c.l.b16 %v820
    %v836 = vunpack.c.l.b16 %v821
    %v837 = vpack.c.b16 %v834, %v833
    %v838 = vpack.c.b16 %v836, %v835
    %v842 = vsel %vm697, %v816, 0
    %v845 = vsel %vm697, %v817, 0
    %847 = vmatprep.subr.bf16.mxu0 0
    %848 = vmatpush1.bf16.msra.mxu0 %v837
    %849 = vmatprep.subr.bf16.mxu0 0
    %850 = vmatpush1.bf16.msra.mxu0 %v838
    %851 = vmatprep.subr.bf16.mxu0 0
    %852 = vmatpush1.bf16.msra.mxu0 0
    %853 = vmatprep.subr.bf16.mxu0 0
    %854 = vmatpush1.bf16.msra.mxu0 0
    %855 = vmatprep.subr.bf16.mxu0 0
    %856 = vmatpush1.bf16.msra.mxu0 0
    %857 = vmatprep.subr.bf16.mxu0 0
    %858 = vmatpush1.bf16.msra.mxu0 0
    %859 = vmatprep.subr.bf16.mxu0 0
    %860 = vmatpush1.bf16.msra.mxu0 0
    %861 = vmatprep.subr.bf16.mxu0 0
    %862 = vmatpush1.bf16.msra.mxu0 0
    %863 = vmatprep.subr.bf16.mxu0 0
    %864 = vmatpush1.bf16.msra.mxu0 0
    %865 = vmatprep.subr.bf16.mxu0 0
    %866 = vmatpush1.bf16.msra.mxu0 0
    %867 = vmatprep.subr.bf16.mxu0 0
    %868 = vmatpush1.bf16.msra.mxu0 0
    %869 = vmatprep.subr.bf16.mxu0 0
    %870 = vmatpush1.bf16.msra.mxu0 0
    %871 = vmatprep.subr.bf16.mxu0 0
    %872 = vmatpush1.bf16.msra.mxu0 0
    %873 = vmatprep.subr.bf16.mxu0 0
    %874 = vmatpush1.bf16.msra.mxu0 0
    %875 = vmatprep.subr.bf16.mxu0 0
    %876 = vmatpush1.bf16.msra.mxu0 0
    %877 = vmatprep.subr.bf16.mxu0 0
    %878 = vmatpush1.bf16.msra.mxu0 0
    %879 = vmatprep.mubr.bf16.mxu0 0
    %880 = vmatmul.mubr.bf16.gmra.mrb[0].mxu0 %v842
    %v881 = vpop.f32.mrb[0].mxu0
    %v882 = vadd.f32 %v827, %v881
    %v883 = vpop.f32.mrb[0].mxu0
    %v884 = vpop.f32.mrb[0].mxu0
    %v885 = vadd.f32 %v827, %v884
    %v886 = vpop.f32.mrb[0].mxu0
    %887 = vmatprep.mubr.bf16.mxu0 0
    %888 = vmatmul.mubr.bf16.gmra.mrb[0].mxu0 %v845
    %v889 = vpop.f32.mrb[0].mxu0
    %v890 = vadd.f32 %v827, %v889
    %v891 = vpop.f32.mrb[0].mxu0
    %v892 = vpop.f32.mrb[0].mxu0
    %v893 = vadd.f32 %v827, %v892
    %v894 = vpop.f32.mrb[0].mxu0
    %895 = vdwg.mxu0
    %v896 = vld [vmem:[%s27] sm:$0xf]
    %v897 = vld [vmem:[%s27 + $0x4] sm:$0xf]
    %v898 = vld [vmem:[%s27 + $0x8] sm:$0xf]
    %v899 = vld [vmem:[%s27 + $0xc] sm:$0xf]
    %v900 = vld [vmem:[%s29] sm:$0x1]
    %v902 = vlaneseq
    %v903 = vshrl.u32 %v902, 7
    %v904 = vsub.s32 0, %v903
    %v905 = vrot.slane %v900, %v904
    %v911 = vunpack.c.l.b16 %v896
    %v912 = vunpack.c.l.b16 %v897
    %v913 = vunpack.c.l.b16 %v898
    %v914 = vunpack.c.l.b16 %v899
    %v915 = vpack.c.b16 %v912, %v911
    %v916 = vpack.c.b16 %v914, %v913
    %919 = vmatprep.subr.bf16.mxu0 0
    %920 = vmatpush1.bf16.msra.mxu0 %v915
    %921 = vmatprep.subr.bf16.mxu0 0
    %922 = vmatpush1.bf16.msra.mxu0 %v916
    %923 = vmatprep.subr.bf16.mxu0 0
    %924 = vmatpush1.bf16.msra.mxu0 0
    %925 = vmatprep.subr.bf16.mxu0 0
    %926 = vmatpush1.bf16.msra.mxu0 0
    %927 = vmatprep.subr.bf16.mxu0 0
    %928 = vmatpush1.bf16.msra.mxu0 0
    %929 = vmatprep.subr.bf16.mxu0 0
    %930 = vmatpush1.bf16.msra.mxu0 0
    %931 = vmatprep.subr.bf16.mxu0 0
    %932 = vmatpush1.bf16.msra.mxu0 0
    %933 = vmatprep.subr.bf16.mxu0 0
    %934 = vmatpush1.bf16.msra.mxu0 0
    %935 = vmatprep.subr.bf16.mxu0 0
    %936 = vmatpush1.bf16.msra.mxu0 0
    %937 = vmatprep.subr.bf16.mxu0 0
    %938 = vmatpush1.bf16.msra.mxu0 0
    %939 = vmatprep.subr.bf16.mxu0 0
    %940 = vmatpush1.bf16.msra.mxu0 0
    %941 = vmatprep.subr.bf16.mxu0 0
    %942 = vmatpush1.bf16.msra.mxu0 0
    %943 = vmatprep.subr.bf16.mxu0 0
    %944 = vmatpush1.bf16.msra.mxu0 0
    %945 = vmatprep.subr.bf16.mxu0 0
    %946 = vmatpush1.bf16.msra.mxu0 0
    %947 = vmatprep.subr.bf16.mxu0 0
    %948 = vmatpush1.bf16.msra.mxu0 0
    %949 = vmatprep.subr.bf16.mxu0 0
    %950 = vmatpush1.bf16.msra.mxu0 0
    %951 = vmatprep.mubr.bf16.mxu0 0
    %952 = vmatmul.mubr.bf16.gmra.mrb[0].mxu0 %v842
    %v953 = vpop.f32.mrb[0].mxu0
    %v954 = vadd.f32 %v905, %v953
    %v955 = vpop.f32.mrb[0].mxu0
    %v956 = vpop.f32.mrb[0].mxu0
    %v957 = vadd.f32 %v905, %v956
    %v958 = vpop.f32.mrb[0].mxu0
    %959 = vmatprep.mubr.bf16.mxu0 0
    %960 = vmatmul.mubr.bf16.gmra.mrb[0].mxu0 %v845
    %v961 = vpop.f32.mrb[0].mxu0
    %v962 = vadd.f32 %v905, %v961
    %v963 = vpop.f32.mrb[0].mxu0
    %v964 = vpop.f32.mrb[0].mxu0
    %v965 = vadd.f32 %v905, %v964
    %v966 = vpop.f32.mrb[0].mxu0
    %967 = vdwg.mxu0
    %v968 = vld [vmem:[%s31] sm:$0xf]
    %v969 = vld [vmem:[%s31 + $0x4] sm:$0xf]
    %v970 = vld [vmem:[%s31 + $0x8] sm:$0xf]
    %v971 = vld [vmem:[%s31 + $0xc] sm:$0xf]
    %v972 = vld [vmem:[%s33] sm:$0x1]
    %v974 = vlaneseq
    %v975 = vshrl.u32 %v974, 7
    %v976 = vsub.s32 0, %v975
    %v977 = vrot.slane %v972, %v976
    %v983 = vunpack.c.l.b16 %v968
    %v984 = vunpack.c.l.b16 %v969
    %v985 = vunpack.c.l.b16 %v970
    %v986 = vunpack.c.l.b16 %v971
    %v987 = vpack.c.b16 %v984, %v983
    %v988 = vpack.c.b16 %v986, %v985
    %991 = vmatprep.subr.bf16.mxu0 0
    %992 = vmatpush1.bf16.msra.mxu0 %v987
    %993 = vmatprep.subr.bf16.mxu0 0
    %994 = vmatpush1.bf16.msra.mxu0 %v988
    %995 = vmatprep.subr.bf16.mxu0 0
    %996 = vmatpush1.bf16.msra.mxu0 0
    %997 = vmatprep.subr.bf16.mxu0 0
    %998 = vmatpush1.bf16.msra.mxu0 0
    %999 = vmatprep.subr.bf16.mxu0 0
    %1000 = vmatpush1.bf16.msra.mxu0 0
    %1001 = vmatprep.subr.bf16.mxu0 0
    %1002 = vmatpush1.bf16.msra.mxu0 0
    %1003 = vmatprep.subr.bf16.mxu0 0
    %1004 = vmatpush1.bf16.msra.mxu0 0
    %1005 = vmatprep.subr.bf16.mxu0 0
    %1006 = vmatpush1.bf16.msra.mxu0 0
    %1007 = vmatprep.subr.bf16.mxu0 0
    %1008 = vmatpush1.bf16.msra.mxu0 0
    %1009 = vmatprep.subr.bf16.mxu0 0
    %1010 = vmatpush1.bf16.msra.mxu0 0
    %1011 = vmatprep.subr.bf16.mxu0 0
    %1012 = vmatpush1.bf16.msra.mxu0 0
    %1013 = vmatprep.subr.bf16.mxu0 0
    %1014 = vmatpush1.bf16.msra.mxu0 0
    %1015 = vmatprep.subr.bf16.mxu0 0
    %1016 = vmatpush1.bf16.msra.mxu0 0
    %1017 = vmatprep.subr.bf16.mxu0 0
    %1018 = vmatpush1.bf16.msra.mxu0 0
    %1019 = vmatprep.subr.bf16.mxu0 0
    %1020 = vmatpush1.bf16.msra.mxu0 0
    %1021 = vmatprep.subr.bf16.mxu0 0
    %1022 = vmatpush1.bf16.msra.mxu0 0
    %1023 = vmatprep.mubr.bf16.mxu0 0
    %1024 = vmatmul.mubr.bf16.gmra.mrb[0].mxu0 %v842
    %v1025 = vpop.f32.mrb[0].mxu0
    %v1026 = vadd.f32 %v977, %v1025
    %v1027 = vpop.f32.mrb[0].mxu0
    %v1028 = vpop.f32.mrb[0].mxu0
    %v1029 = vadd.f32 %v977, %v1028
    %v1030 = vpop.f32.mrb[0].mxu0
    %1031 = vmatprep.mubr.bf16.mxu0 0
    %1032 = vmatmul.mubr.bf16.gmra.mrb[0].mxu0 %v845
    %v1033 = vpop.f32.mrb[0].mxu0
    %v1034 = vadd.f32 %v977, %v1033
    %v1035 = vpop.f32.mrb[0].mxu0
    %v1036 = vpop.f32.mrb[0].mxu0
    %v1037 = vadd.f32 %v977, %v1036
    %v1038 = vpop.f32.mrb[0].mxu0
    %1039 = vdwg.mxu0
    %v1040 = vpack.c.bf16 %v885, %v882
    %v1041 = vpack.c.bf16 %v893, %v890
    %v1042 = vpack.c.bf16 %v957, %v954
    %v1043 = vpack.c.bf16 %v965, %v962
    %v1045 = vsel %vm358, %v1040, 0
    %v1048 = vsel %vm358, %v1042, 0
    %1050 = vmatprep.subr.bf16.mxu0 0
    %1051 = vmatpush1.bf16.xpose.msra.mxu0 %v1048
    %1052 = vmatprep.subr.bf16.mxu0 0
    %1053 = vmatpush1.bf16.xpose.msra.mxu0 0
    %1054 = vmatprep.subr.bf16.mxu0 0
    %1055 = vmatpush1.bf16.xpose.msra.mxu0 0
    %1056 = vmatprep.subr.bf16.mxu0 0
    %1057 = vmatpush1.bf16.xpose.msra.mxu0 0
    %1058 = vmatprep.subr.bf16.mxu0 0
    %1059 = vmatpush1.bf16.xpose.msra.mxu0 0
    %1060 = vmatprep.subr.bf16.mxu0 0
    %1061 = vmatpush1.bf16.xpose.msra.mxu0 0
    %1062 = vmatprep.subr.bf16.mxu0 0
    %1063 = vmatpush1.bf16.xpose.msra.mxu0 0
    %1064 = vmatprep.subr.bf16.mxu0 0
    %1065 = vmatpush1.bf16.xpose.msra.mxu0 0
    %1066 = vmatprep.subr.bf16.mxu0 0
    %1067 = vmatpush1.bf16.xpose.msra.mxu0 0
    %1068 = vmatprep.subr.bf16.mxu0 0
    %1069 = vmatpush1.bf16.xpose.msra.mxu0 0
    %1070 = vmatprep.subr.bf16.mxu0 0
    %1071 = vmatpush1.bf16.xpose.msra.mxu0 0
    %1072 = vmatprep.subr.bf16.mxu0 0
    %1073 = vmatpush1.bf16.xpose.msra.mxu0 0
    %1074 = vmatprep.subr.bf16.mxu0 0
    %1075 = vmatpush1.bf16.xpose.msra.mxu0 0
    %1076 = vmatprep.subr.bf16.mxu0 0
    %1077 = vmatpush1.bf16.xpose.msra.mxu0 0
    %1078 = vmatprep.subr.bf16.mxu0 0
    %1079 = vmatpush1.bf16.xpose.msra.mxu0 0
    %1080 = vmatprep.subr.bf16.mxu0 0
    %1081 = vmatpush1.bf16.xpose.msra.mxu0 0
    %1082 = vmatprep.mubr.bf16.mxu0 0
    %1083 = vmatmul.mubr.bf16.gmra.mrb[0].mxu0 %v1045
    %v1084 = vpop.f32.mrb[0].mxu0
    %v1085 = vadd.f32 0.0, %v1084
    %v1086 = vpop.f32.mrb[0].mxu0
    %v1087 = vpop.f32.mrb[0].mxu0
    %v1088 = vadd.f32 0.0, %v1087
    %v1089 = vpop.f32.mrb[0].mxu0
    %1090 = vdwg.mxu0
    %v1092 = vsel %vm358, %v1041, 0
    %v1095 = vsel %vm358, %v1043, 0
    %1097 = vmatprep.subr.bf16.mxu0 0
    %1098 = vmatpush1.bf16.xpose.msra.mxu0 %v1095
    %1099 = vmatprep.subr.bf16.mxu0 0
    %1100 = vmatpush1.bf16.xpose.msra.mxu0 0
    %1101 = vmatprep.subr.bf16.mxu0 0
    %1102 = vmatpush1.bf16.xpose.msra.mxu0 0
    %1103 = vmatprep.subr.bf16.mxu0 0
    %1104 = vmatpush1.bf16.xpose.msra.mxu0 0
    %1105 = vmatprep.subr.bf16.mxu0 0
    %1106 = vmatpush1.bf16.xpose.msra.mxu0 0
    %1107 = vmatprep.subr.bf16.mxu0 0
    %1108 = vmatpush1.bf16.xpose.msra.mxu0 0
    %1109 = vmatprep.subr.bf16.mxu0 0
    %1110 = vmatpush1.bf16.xpose.msra.mxu0 0
    %1111 = vmatprep.subr.bf16.mxu0 0
    %1112 = vmatpush1.bf16.xpose.msra.mxu0 0
    %1113 = vmatprep.subr.bf16.mxu0 0
    %1114 = vmatpush1.bf16.xpose.msra.mxu0 0
    %1115 = vmatprep.subr.bf16.mxu0 0
    %1116 = vmatpush1.bf16.xpose.msra.mxu0 0
    %1117 = vmatprep.subr.bf16.mxu0 0
    %1118 = vmatpush1.bf16.xpose.msra.mxu0 0
    %1119 = vmatprep.subr.bf16.mxu0 0
    %1120 = vmatpush1.bf16.xpose.msra.mxu0 0
    %1121 = vmatprep.subr.bf16.mxu0 0
    %1122 = vmatpush1.bf16.xpose.msra.mxu0 0
    %1123 = vmatprep.subr.bf16.mxu0 0
    %1124 = vmatpush1.bf16.xpose.msra.mxu0 0
    %1125 = vmatprep.subr.bf16.mxu0 0
    %1126 = vmatpush1.bf16.xpose.msra.mxu0 0
    %1127 = vmatprep.subr.bf16.mxu0 0
    %1128 = vmatpush1.bf16.xpose.msra.mxu0 0
    %1129 = vmatprep.mubr.bf16.mxu0 0
    %1130 = vmatmul.mubr.bf16.gmra.mrb[0].mxu0 %v1092
    %v1131 = vpop.f32.mrb[0].mxu0
    %v1132 = vadd.f32 0.0, %v1131
    %v1133 = vpop.f32.mrb[0].mxu0
    %v1134 = vpop.f32.mrb[0].mxu0
    %v1135 = vadd.f32 0.0, %v1134
    %v1136 = vpop.f32.mrb[0].mxu0
    %1137 = vdwg.mxu0
    %v1138 = vsel %vm368, %v1085, -inf
    %1139 = vmax.xlane.f32.xlu0 %v1138
    %v1140 = vpop.xlane.xlu0 %1139
    %v1141 = vsel %vm368, %v1088, -inf
    %1142 = vmax.xlane.f32.xlu0 %v1141
    %v1143 = vpop.xlane.xlu0 %1142
    %v1144 = vsel %vm368, %v1132, -inf
    %1145 = vmax.xlane.f32.xlu0 %v1144
    %v1146 = vpop.xlane.xlu0 %1145
    %v1147 = vsel %vm368, %v1135, -inf
    %1148 = vmax.xlane.f32.xlu0 %v1147
    %v1149 = vpop.xlane.xlu0 %1148
    %v1150 = vsub.f32 %v1085, %v1140
    %v1151 = vsub.f32 %v1088, %v1143
    %v1152 = vsub.f32 %v1132, %v1146
    %v1153 = vsub.f32 %v1135, %v1149
    %v1154 = vmul.f32 %v1150, 1.442695
    %v1155 = vpow.pop %v1154
    %v1156 = vmul.f32 %v1151, 1.442695
    %v1157 = vpow.pop %v1156
    %v1158 = vmul.f32 %v1152, 1.442695
    %v1159 = vpow.pop %v1158
    %v1160 = vmul.f32 %v1153, 1.442695
    %v1161 = vpow.pop %v1160
    %v1162 = vsel %vm368, %v1155, 0.0
    %1163 = vadd.xlane.f32.xlu0 %v1162
    %v1164 = vpop.xlane.xlu0 %1163
    %v1165 = vsel %vm368, %v1157, 0.0
    %1166 = vadd.xlane.f32.xlu0 %v1165
    %v1167 = vpop.xlane.xlu0 %1166
    %v1168 = vsel %vm368, %v1159, 0.0
    %1169 = vadd.xlane.f32.xlu0 %v1168
    %v1170 = vpop.xlane.xlu0 %1169
    %v1171 = vsel %vm368, %v1161, 0.0
    %1172 = vadd.xlane.f32.xlu0 %v1171
    %v1173 = vpop.xlane.xlu0 %1172
    %v1174 = vrcp.pop %v1164
    %v1175 = vrcp.pop %v1167
    %v1176 = vrcp.pop %v1170
    %v1177 = vrcp.pop %v1173
    %v1178 = vmul.f32 %v1155, %v1174
    %v1179 = vmul.f32 %v1157, %v1175
    %v1180 = vmul.f32 %v1159, %v1176
    %v1181 = vmul.f32 %v1161, %v1177
    %v1182 = vpack.c.bf16 %v1179, %v1178
    %v1183 = vpack.c.bf16 %v1181, %v1180
    %v1184 = vpack.c.bf16 %v1029, %v1026
    %v1185 = vpack.c.bf16 %v1037, %v1034
    %v1187 = vsel %vm368, %v1182, 0
    %1189 = vmatprep.subr.bf16.mxu0 0
    %1190 = vmatpush1.bf16.msra.mxu0 %v1184
    %1191 = vmatprep.subr.bf16.mxu0 0
    %1192 = vmatpush1.bf16.msra.mxu0 0
    %1193 = vmatprep.subr.bf16.mxu0 0
    %1194 = vmatpush1.bf16.msra.mxu0 0
    %1195 = vmatprep.subr.bf16.mxu0 0
    %1196 = vmatpush1.bf16.msra.mxu0 0
    %1197 = vmatprep.subr.bf16.mxu0 0
    %1198 = vmatpush1.bf16.msra.mxu0 0
    %1199 = vmatprep.subr.bf16.mxu0 0
    %1200 = vmatpush1.bf16.msra.mxu0 0
    %1201 = vmatprep.subr.bf16.mxu0 0
    %1202 = vmatpush1.bf16.msra.mxu0 0
    %1203 = vmatprep.subr.bf16.mxu0 0
    %1204 = vmatpush1.bf16.msra.mxu0 0
    %1205 = vmatprep.subr.bf16.mxu0 0
    %1206 = vmatpush1.bf16.msra.mxu0 0
    %1207 = vmatprep.subr.bf16.mxu0 0
    %1208 = vmatpush1.bf16.msra.mxu0 0
    %1209 = vmatprep.subr.bf16.mxu0 0
    %1210 = vmatpush1.bf16.msra.mxu0 0
    %1211 = vmatprep.subr.bf16.mxu0 0
    %1212 = vmatpush1.bf16.msra.mxu0 0
    %1213 = vmatprep.subr.bf16.mxu0 0
    %1214 = vmatpush1.bf16.msra.mxu0 0
    %1215 = vmatprep.subr.bf16.mxu0 0
    %1216 = vmatpush1.bf16.msra.mxu0 0
    %1217 = vmatprep.subr.bf16.mxu0 0
    %1218 = vmatpush1.bf16.msra.mxu0 0
    %1219 = vmatprep.subr.bf16.mxu0 0
    %1220 = vmatpush1.bf16.msra.mxu0 0
    %1221 = vmatprep.mubr.bf16.mxu0 0
    %1222 = vmatmul.mubr.bf16.gmra.mrb[0].mxu0 %v1187
    %v1223 = vpop.f32.mrb[0].mxu0
    %v1224 = vadd.f32 0.0, %v1223
    %v1225 = vpop.f32.mrb[0].mxu0
    %v1226 = vpop.f32.mrb[0].mxu0
    %v1227 = vadd.f32 0.0, %v1226
    %v1228 = vpop.f32.mrb[0].mxu0
    %1229 = vdwg.mxu0
    %v1231 = vsel %vm368, %v1183, 0
    %1233 = vmatprep.subr.bf16.mxu0 0
    %1234 = vmatpush1.bf16.msra.mxu0 %v1185
    %1235 = vmatprep.subr.bf16.mxu0 0
    %1236 = vmatpush1.bf16.msra.mxu0 0
    %1237 = vmatprep.subr.bf16.mxu0 0
    %1238 = vmatpush1.bf16.msra.mxu0 0
    %1239 = vmatprep.subr.bf16.mxu0 0
    %1240 = vmatpush1.bf16.msra.mxu0 0
    %1241 = vmatprep.subr.bf16.mxu0 0
    %1242 = vmatpush1.bf16.msra.mxu0 0
    %1243 = vmatprep.subr.bf16.mxu0 0
    %1244 = vmatpush1.bf16.msra.mxu0 0
    %1245 = vmatprep.subr.bf16.mxu0 0
    %1246 = vmatpush1.bf16.msra.mxu0 0
    %1247 = vmatprep.subr.bf16.mxu0 0
    %1248 = vmatpush1.bf16.msra.mxu0 0
    %1249 = vmatprep.subr.bf16.mxu0 0
    %1250 = vmatpush1.bf16.msra.mxu0 0
    %1251 = vmatprep.subr.bf16.mxu0 0
    %1252 = vmatpush1.bf16.msra.mxu0 0
    %1253 = vmatprep.subr.bf16.mxu0 0
    %1254 = vmatpush1.bf16.msra.mxu0 0
    %1255 = vmatprep.subr.bf16.mxu0 0
    %1256 = vmatpush1.bf16.msra.mxu0 0
    %1257 = vmatprep.subr.bf16.mxu0 0
    %1258 = vmatpush1.bf16.msra.mxu0 0
    %1259 = vmatprep.subr.bf16.mxu0 0
    %1260 = vmatpush1.bf16.msra.mxu0 0
    %1261 = vmatprep.subr.bf16.mxu0 0
    %1262 = vmatpush1.bf16.msra.mxu0 0
    %1263 = vmatprep.subr.bf16.mxu0 0
    %1264 = vmatpush1.bf16.msra.mxu0 0
    %1265 = vmatprep.mubr.bf16.mxu0 0
    %1266 = vmatmul.mubr.bf16.gmra.mrb[0].mxu0 %v1231
    %v1267 = vpop.f32.mrb[0].mxu0
    %v1268 = vadd.f32 0.0, %v1267
    %v1269 = vpop.f32.mrb[0].mxu0
    %v1270 = vpop.f32.mrb[0].mxu0
    %v1271 = vadd.f32 0.0, %v1270
    %v1272 = vpop.f32.mrb[0].mxu0
    %1273 = vdwg.mxu0
    %1275 = vrot.lane.b32.xlu0 %v1040, 120
    %v1276 = vpop.permute.xlu0 %1275
    %1278 = vrot.lane.b32.xlu0 %v1042, 120
    %v1279 = vpop.permute.xlu0 %1278
    %v1281 = vsel %vm358, %v1276, 0
    %v1284 = vsel %vm358, %v1279, 0
    %1286 = vmatprep.subr.bf16.mxu0 0
    %1287 = vmatpush1.bf16.xpose.msra.mxu0 %v1284
    %1288 = vmatprep.subr.bf16.mxu0 0
    %1289 = vmatpush1.bf16.xpose.msra.mxu0 0
    %1290 = vmatprep.subr.bf16.mxu0 0
    %1291 = vmatpush1.bf16.xpose.msra.mxu0 0
    %1292 = vmatprep.subr.bf16.mxu0 0
    %1293 = vmatpush1.bf16.xpose.msra.mxu0 0
    %1294 = vmatprep.subr.bf16.mxu0 0
    %1295 = vmatpush1.bf16.xpose.msra.mxu0 0
    %1296 = vmatprep.subr.bf16.mxu0 0
    %1297 = vmatpush1.bf16.xpose.msra.mxu0 0
    %1298 = vmatprep.subr.bf16.mxu0 0
    %1299 = vmatpush1.bf16.xpose.msra.mxu0 0
    %1300 = vmatprep.subr.bf16.mxu0 0
    %1301 = vmatpush1.bf16.xpose.msra.mxu0 0
    %1302 = vmatprep.subr.bf16.mxu0 0
    %1303 = vmatpush1.bf16.xpose.msra.mxu0 0
    %1304 = vmatprep.subr.bf16.mxu0 0
    %1305 = vmatpush1.bf16.xpose.msra.mxu0 0
    %1306 = vmatprep.subr.bf16.mxu0 0
    %1307 = vmatpush1.bf16.xpose.msra.mxu0 0
    %1308 = vmatprep.subr.bf16.mxu0 0
    %1309 = vmatpush1.bf16.xpose.msra.mxu0 0
    %1310 = vmatprep.subr.bf16.mxu0 0
    %1311 = vmatpush1.bf16.xpose.msra.mxu0 0
    %1312 = vmatprep.subr.bf16.mxu0 0
    %1313 = vmatpush1.bf16.xpose.msra.mxu0 0
    %1314 = vmatprep.subr.bf16.mxu0 0
    %1315 = vmatpush1.bf16.xpose.msra.mxu0 0
    %1316 = vmatprep.subr.bf16.mxu0 0
    %1317 = vmatpush1.bf16.xpose.msra.mxu0 0
    %1318 = vmatprep.mubr.bf16.mxu0 0
    %1319 = vmatmul.mubr.bf16.gmra.mrb[0].mxu0 %v1281
    %v1320 = vpop.f32.mrb[0].mxu0
    %v1321 = vadd.f32 0.0, %v1320
    %v1322 = vpop.f32.mrb[0].mxu0
    %v1323 = vpop.f32.mrb[0].mxu0
    %v1324 = vadd.f32 0.0, %v1323
    %v1325 = vpop.f32.mrb[0].mxu0
    %1326 = vdwg.mxu0
    %1328 = vrot.lane.b32.xlu0 %v1041, 120
    %v1329 = vpop.permute.xlu0 %1328
    %1331 = vrot.lane.b32.xlu0 %v1043, 120
    %v1332 = vpop.permute.xlu0 %1331
    %v1334 = vsel %vm358, %v1329, 0
    %v1337 = vsel %vm358, %v1332, 0
    %1339 = vmatprep.subr.bf16.mxu0 0
    %1340 = vmatpush1.bf16.xpose.msra.mxu0 %v1337
    %1341 = vmatprep.subr.bf16.mxu0 0
    %1342 = vmatpush1.bf16.xpose.msra.mxu0 0
    %1343 = vmatprep.subr.bf16.mxu0 0
    %1344 = vmatpush1.bf16.xpose.msra.mxu0 0
    %1345 = vmatprep.subr.bf16.mxu0 0
    %1346 = vmatpush1.bf16.xpose.msra.mxu0 0
    %1347 = vmatprep.subr.bf16.mxu0 0
    %1348 = vmatpush1.bf16.xpose.msra.mxu0 0
    %1349 = vmatprep.subr.bf16.mxu0 0
    %1350 = vmatpush1.bf16.xpose.msra.mxu0 0
    %1351 = vmatprep.subr.bf16.mxu0 0
    %1352 = vmatpush1.bf16.xpose.msra.mxu0 0
    %1353 = vmatprep.subr.bf16.mxu0 0
    %1354 = vmatpush1.bf16.xpose.msra.mxu0 0
    %1355 = vmatprep.subr.bf16.mxu0 0
    %1356 = vmatpush1.bf16.xpose.msra.mxu0 0
    %1357 = vmatprep.subr.bf16.mxu0 0
    %1358 = vmatpush1.bf16.xpose.msra.mxu0 0
    %1359 = vmatprep.subr.bf16.mxu0 0
    %1360 = vmatpush1.bf16.xpose.msra.mxu0 0
    %1361 = vmatprep.subr.bf16.mxu0 0
    %1362 = vmatpush1.bf16.xpose.msra.mxu0 0
    %1363 = vmatprep.subr.bf16.mxu0 0
    %1364 = vmatpush1.bf16.xpose.msra.mxu0 0
    %1365 = vmatprep.subr.bf16.mxu0 0
    %1366 = vmatpush1.bf16.xpose.msra.mxu0 0
    %1367 = vmatprep.subr.bf16.mxu0 0
    %1368 = vmatpush1.bf16.xpose.msra.mxu0 0
    %1369 = vmatprep.subr.bf16.mxu0 0
    %1370 = vmatpush1.bf16.xpose.msra.mxu0 0
    %1371 = vmatprep.mubr.bf16.mxu0 0
    %1372 = vmatmul.mubr.bf16.gmra.mrb[0].mxu0 %v1334
    %v1373 = vpop.f32.mrb[0].mxu0
    %v1374 = vadd.f32 0.0, %v1373
    %v1375 = vpop.f32.mrb[0].mxu0
    %v1376 = vpop.f32.mrb[0].mxu0
    %v1377 = vadd.f32 0.0, %v1376
    %v1378 = vpop.f32.mrb[0].mxu0
    %1379 = vdwg.mxu0
    %v1380 = vsel %vm368, %v1321, -inf
    %1381 = vmax.xlane.f32.xlu0 %v1380
    %v1382 = vpop.xlane.xlu0 %1381
    %v1383 = vsel %vm368, %v1324, -inf
    %1384 = vmax.xlane.f32.xlu0 %v1383
    %v1385 = vpop.xlane.xlu0 %1384
    %v1386 = vsel %vm368, %v1374, -inf
    %1387 = vmax.xlane.f32.xlu0 %v1386
    %v1388 = vpop.xlane.xlu0 %1387
    %v1389 = vsel %vm368, %v1377, -inf
    %1390 = vmax.xlane.f32.xlu0 %v1389
    %v1391 = vpop.xlane.xlu0 %1390
    %v1392 = vsub.f32 %v1321, %v1382
    %v1393 = vsub.f32 %v1324, %v1385
    %v1394 = vsub.f32 %v1374, %v1388
    %v1395 = vsub.f32 %v1377, %v1391
    %v1396 = vmul.f32 %v1392, 1.442695
    %v1397 = vpow.pop %v1396
    %v1398 = vmul.f32 %v1393, 1.442695
    %v1399 = vpow.pop %v1398
    %v1400 = vmul.f32 %v1394, 1.442695
    %v1401 = vpow.pop %v1400
    %v1402 = vmul.f32 %v1395, 1.442695
    %v1403 = vpow.pop %v1402
    %v1404 = vsel %vm368, %v1397, 0.0
    %1405 = vadd.xlane.f32.xlu0 %v1404
    %v1406 = vpop.xlane.xlu0 %1405
    %v1407 = vsel %vm368, %v1399, 0.0
    %1408 = vadd.xlane.f32.xlu0 %v1407
    %v1409 = vpop.xlane.xlu0 %1408
    %v1410 = vsel %vm368, %v1401, 0.0
    %1411 = vadd.xlane.f32.xlu0 %v1410
    %v1412 = vpop.xlane.xlu0 %1411
    %v1413 = vsel %vm368, %v1403, 0.0
    %1414 = vadd.xlane.f32.xlu0 %v1413
    %v1415 = vpop.xlane.xlu0 %1414
    %v1416 = vrcp.pop %v1406
    %v1417 = vrcp.pop %v1409
    %v1418 = vrcp.pop %v1412
    %v1419 = vrcp.pop %v1415
    %v1420 = vmul.f32 %v1397, %v1416
    %v1421 = vmul.f32 %v1399, %v1417
    %v1422 = vmul.f32 %v1401, %v1418
    %v1423 = vmul.f32 %v1403, %v1419
    %v1424 = vpack.c.bf16 %v1421, %v1420
    %v1425 = vpack.c.bf16 %v1423, %v1422
    %1427 = vrot.lane.b32.xlu0 %v1184, 120
    %v1428 = vpop.permute.xlu0 %1427
    %v1431 = vsel %vm368, %v1424, 0
    %1433 = vmatprep.subr.bf16.mxu0 0
    %1434 = vmatpush1.bf16.msra.mxu0 %v1428
    %1435 = vmatprep.subr.bf16.mxu0 0
    %1436 = vmatpush1.bf16.msra.mxu0 0
    %1437 = vmatprep.subr.bf16.mxu0 0
    %1438 = vmatpush1.bf16.msra.mxu0 0
    %1439 = vmatprep.subr.bf16.mxu0 0
    %1440 = vmatpush1.bf16.msra.mxu0 0
    %1441 = vmatprep.subr.bf16.mxu0 0
    %1442 = vmatpush1.bf16.msra.mxu0 0
    %1443 = vmatprep.subr.bf16.mxu0 0
    %1444 = vmatpush1.bf16.msra.mxu0 0
    %1445 = vmatprep.subr.bf16.mxu0 0
    %1446 = vmatpush1.bf16.msra.mxu0 0
    %1447 = vmatprep.subr.bf16.mxu0 0
    %1448 = vmatpush1.bf16.msra.mxu0 0
    %1449 = vmatprep.subr.bf16.mxu0 0
    %1450 = vmatpush1.bf16.msra.mxu0 0
    %1451 = vmatprep.subr.bf16.mxu0 0
    %1452 = vmatpush1.bf16.msra.mxu0 0
    %1453 = vmatprep.subr.bf16.mxu0 0
    %1454 = vmatpush1.bf16.msra.mxu0 0
    %1455 = vmatprep.subr.bf16.mxu0 0
    %1456 = vmatpush1.bf16.msra.mxu0 0
    %1457 = vmatprep.subr.bf16.mxu0 0
    %1458 = vmatpush1.bf16.msra.mxu0 0
    %1459 = vmatprep.subr.bf16.mxu0 0
    %1460 = vmatpush1.bf16.msra.mxu0 0
    %1461 = vmatprep.subr.bf16.mxu0 0
    %1462 = vmatpush1.bf16.msra.mxu0 0
    %1463 = vmatprep.subr.bf16.mxu0 0
    %1464 = vmatpush1.bf16.msra.mxu0 0
    %1465 = vmatprep.mubr.bf16.mxu0 0
    %1466 = vmatmul.mubr.bf16.gmra.mrb[0].mxu0 %v1431
    %v1467 = vpop.f32.mrb[0].mxu0
    %v1468 = vadd.f32 0.0, %v1467
    %v1469 = vpop.f32.mrb[0].mxu0
    %v1470 = vpop.f32.mrb[0].mxu0
    %v1471 = vadd.f32 0.0, %v1470
    %v1472 = vpop.f32.mrb[0].mxu0
    %1473 = vdwg.mxu0
    %1475 = vrot.lane.b32.xlu0 %v1185, 120
    %v1476 = vpop.permute.xlu0 %1475
    %v1479 = vsel %vm368, %v1425, 0
    %1481 = vmatprep.subr.bf16.mxu0 0
    %1482 = vmatpush1.bf16.msra.mxu0 %v1476
    %1483 = vmatprep.subr.bf16.mxu0 0
    %1484 = vmatpush1.bf16.msra.mxu0 0
    %1485 = vmatprep.subr.bf16.mxu0 0
    %1486 = vmatpush1.bf16.msra.mxu0 0
    %1487 = vmatprep.subr.bf16.mxu0 0
    %1488 = vmatpush1.bf16.msra.mxu0 0
    %1489 = vmatprep.subr.bf16.mxu0 0
    %1490 = vmatpush1.bf16.msra.mxu0 0
    %1491 = vmatprep.subr.bf16.mxu0 0
    %1492 = vmatpush1.bf16.msra.mxu0 0
    %1493 = vmatprep.subr.bf16.mxu0 0
    %1494 = vmatpush1.bf16.msra.mxu0 0
    %1495 = vmatprep.subr.bf16.mxu0 0
    %1496 = vmatpush1.bf16.msra.mxu0 0
    %1497 = vmatprep.subr.bf16.mxu0 0
    %1498 = vmatpush1.bf16.msra.mxu0 0
    %1499 = vmatprep.subr.bf16.mxu0 0
    %1500 = vmatpush1.bf16.msra.mxu0 0
    %1501 = vmatprep.subr.bf16.mxu0 0
    %1502 = vmatpush1.bf16.msra.mxu0 0
    %1503 = vmatprep.subr.bf16.mxu0 0
    %1504 = vmatpush1.bf16.msra.mxu0 0
    %1505 = vmatprep.subr.bf16.mxu0 0
    %1506 = vmatpush1.bf16.msra.mxu0 0
    %1507 = vmatprep.subr.bf16.mxu0 0
    %1508 = vmatpush1.bf16.msra.mxu0 0
    %1509 = vmatprep.subr.bf16.mxu0 0
    %1510 = vmatpush1.bf16.msra.mxu0 0
    %1511 = vmatprep.subr.bf16.mxu0 0
    %1512 = vmatpush1.bf16.msra.mxu0 0
    %1513 = vmatprep.mubr.bf16.mxu0 0
    %1514 = vmatmul.mubr.bf16.gmra.mrb[0].mxu0 %v1479
    %v1515 = vpop.f32.mrb[0].mxu0
    %v1516 = vadd.f32 0.0, %v1515
    %v1517 = vpop.f32.mrb[0].mxu0
    %v1518 = vpop.f32.mrb[0].mxu0
    %v1519 = vadd.f32 0.0, %v1518
    %v1520 = vpop.f32.mrb[0].mxu0
    %1521 = vdwg.mxu0
    %1522 = vrot.lane.b32.xlu0 %v1040, 112
    %v1523 = vpop.permute.xlu0 %1522
    %1524 = vrot.lane.b32.xlu0 %v1042, 112
    %v1525 = vpop.permute.xlu0 %1524
    %v1527 = vsel %vm358, %v1523, 0
    %v1530 = vsel %vm358, %v1525, 0
    %1532 = vmatprep.subr.bf16.mxu0 0
    %1533 = vmatpush1.bf16.xpose.msra.mxu0 %v1530
    %1534 = vmatprep.subr.bf16.mxu0 0
    %1535 = vmatpush1.bf16.xpose.msra.mxu0 0
    %1536 = vmatprep.subr.bf16.mxu0 0
    %1537 = vmatpush1.bf16.xpose.msra.mxu0 0
    %1538 = vmatprep.subr.bf16.mxu0 0
    %1539 = vmatpush1.bf16.xpose.msra.mxu0 0
    %1540 = vmatprep.subr.bf16.mxu0 0
    %1541 = vmatpush1.bf16.xpose.msra.mxu0 0
    %1542 = vmatprep.subr.bf16.mxu0 0
    %1543 = vmatpush1.bf16.xpose.msra.mxu0 0
    %1544 = vmatprep.subr.bf16.mxu0 0
    %1545 = vmatpush1.bf16.xpose.msra.mxu0 0
    %1546 = vmatprep.subr.bf16.mxu0 0
    %1547 = vmatpush1.bf16.xpose.msra.mxu0 0
    %1548 = vmatprep.subr.bf16.mxu0 0
    %1549 = vmatpush1.bf16.xpose.msra.mxu0 0
    %1550 = vmatprep.subr.bf16.mxu0 0
    %1551 = vmatpush1.bf16.xpose.msra.mxu0 0
    %1552 = vmatprep.subr.bf16.mxu0 0
    %1553 = vmatpush1.bf16.xpose.msra.mxu0 0
    %1554 = vmatprep.subr.bf16.mxu0 0
    %1555 = vmatpush1.bf16.xpose.msra.mxu0 0
    %1556 = vmatprep.subr.bf16.mxu0 0
    %1557 = vmatpush1.bf16.xpose.msra.mxu0 0
    %1558 = vmatprep.subr.bf16.mxu0 0
    %1559 = vmatpush1.bf16.xpose.msra.mxu0 0
    %1560 = vmatprep.subr.bf16.mxu0 0
    %1561 = vmatpush1.bf16.xpose.msra.mxu0 0
    %1562 = vmatprep.subr.bf16.mxu0 0
    %1563 = vmatpush1.bf16.xpose.msra.mxu0 0
    %1564 = vmatprep.mubr.bf16.mxu0 0
    %1565 = vmatmul.mubr.bf16.gmra.mrb[0].mxu0 %v1527
    %v1566 = vpop.f32.mrb[0].mxu0
    %v1567 = vadd.f32 0.0, %v1566
    %v1568 = vpop.f32.mrb[0].mxu0
    %v1569 = vpop.f32.mrb[0].mxu0
    %v1570 = vadd.f32 0.0, %v1569
    %v1571 = vpop.f32.mrb[0].mxu0
    %1572 = vdwg.mxu0
    %1573 = vrot.lane.b32.xlu0 %v1041, 112
    %v1574 = vpop.permute.xlu0 %1573
    %1575 = vrot.lane.b32.xlu0 %v1043, 112
    %v1576 = vpop.permute.xlu0 %1575
    %v1578 = vsel %vm358, %v1574, 0
    %v1581 = vsel %vm358, %v1576, 0
    %1583 = vmatprep.subr.bf16.mxu0 0
    %1584 = vmatpush1.bf16.xpose.msra.mxu0 %v1581
    %1585 = vmatprep.subr.bf16.mxu0 0
    %1586 = vmatpush1.bf16.xpose.msra.mxu0 0
    %1587 = vmatprep.subr.bf16.mxu0 0
    %1588 = vmatpush1.bf16.xpose.msra.mxu0 0
    %1589 = vmatprep.subr.bf16.mxu0 0
    %1590 = vmatpush1.bf16.xpose.msra.mxu0 0
    %1591 = vmatprep.subr.bf16.mxu0 0
    %1592 = vmatpush1.bf16.xpose.msra.mxu0 0
    %1593 = vmatprep.subr.bf16.mxu0 0
    %1594 = vmatpush1.bf16.xpose.msra.mxu0 0
    %1595 = vmatprep.subr.bf16.mxu0 0
    %1596 = vmatpush1.bf16.xpose.msra.mxu0 0
    %1597 = vmatprep.subr.bf16.mxu0 0
    %1598 = vmatpush1.bf16.xpose.msra.mxu0 0
    %1599 = vmatprep.subr.bf16.mxu0 0
    %1600 = vmatpush1.bf16.xpose.msra.mxu0 0
    %1601 = vmatprep.subr.bf16.mxu0 0
    %1602 = vmatpush1.bf16.xpose.msra.mxu0 0
    %1603 = vmatprep.subr.bf16.mxu0 0
    %1604 = vmatpush1.bf16.xpose.msra.mxu0 0
    %1605 = vmatprep.subr.bf16.mxu0 0
    %1606 = vmatpush1.bf16.xpose.msra.mxu0 0
    %1607 = vmatprep.subr.bf16.mxu0 0
    %1608 = vmatpush1.bf16.xpose.msra.mxu0 0
    %1609 = vmatprep.subr.bf16.mxu0 0
    %1610 = vmatpush1.bf16.xpose.msra.mxu0 0
    %1611 = vmatprep.subr.bf16.mxu0 0
    %1612 = vmatpush1.bf16.xpose.msra.mxu0 0
    %1613 = vmatprep.subr.bf16.mxu0 0
    %1614 = vmatpush1.bf16.xpose.msra.mxu0 0
    %1615 = vmatprep.mubr.bf16.mxu0 0
    %1616 = vmatmul.mubr.bf16.gmra.mrb[0].mxu0 %v1578
    %v1617 = vpop.f32.mrb[0].mxu0
    %v1618 = vadd.f32 0.0, %v1617
    %v1619 = vpop.f32.mrb[0].mxu0
    %v1620 = vpop.f32.mrb[0].mxu0
    %v1621 = vadd.f32 0.0, %v1620
    %v1622 = vpop.f32.mrb[0].mxu0
    %1623 = vdwg.mxu0
    %v1624 = vsel %vm368, %v1567, -inf
    %1625 = vmax.xlane.f32.xlu0 %v1624
    %v1626 = vpop.xlane.xlu0 %1625
    %v1627 = vsel %vm368, %v1570, -inf
    %1628 = vmax.xlane.f32.xlu0 %v1627
    %v1629 = vpop.xlane.xlu0 %1628
    %v1630 = vsel %vm368, %v1618, -inf
    %1631 = vmax.xlane.f32.xlu0 %v1630
    %v1632 = vpop.xlane.xlu0 %1631
    %v1633 = vsel %vm368, %v1621, -inf
    %1634 = vmax.xlane.f32.xlu0 %v1633
    %v1635 = vpop.xlane.xlu0 %1634
    %v1636 = vsub.f32 %v1567, %v1626
    %v1637 = vsub.f32 %v1570, %v1629
    %v1638 = vsub.f32 %v1618, %v1632
    %v1639 = vsub.f32 %v1621, %v1635
    %v1640 = vmul.f32 %v1636, 1.442695
    %v1641 = vpow.pop %v1640
    %v1642 = vmul.f32 %v1637, 1.442695
    %v1643 = vpow.pop %v1642
    %v1644 = vmul.f32 %v1638, 1.442695
    %v1645 = vpow.pop %v1644
    %v1646 = vmul.f32 %v1639, 1.442695
    %v1647 = vpow.pop %v1646
    %v1648 = vsel %vm368, %v1641, 0.0
    %1649 = vadd.xlane.f32.xlu0 %v1648
    %v1650 = vpop.xlane.xlu0 %1649
    %v1651 = vsel %vm368, %v1643, 0.0
    %1652 = vadd.xlane.f32.xlu0 %v1651
    %v1653 = vpop.xlane.xlu0 %1652
    %v1654 = vsel %vm368, %v1645, 0.0
    %1655 = vadd.xlane.f32.xlu0 %v1654
    %v1656 = vpop.xlane.xlu0 %1655
    %v1657 = vsel %vm368, %v1647, 0.0
    %1658 = vadd.xlane.f32.xlu0 %v1657
    %v1659 = vpop.xlane.xlu0 %1658
    %v1660 = vrcp.pop %v1650
    %v1661 = vrcp.pop %v1653
    %v1662 = vrcp.pop %v1656
    %v1663 = vrcp.pop %v1659
    %v1664 = vmul.f32 %v1641, %v1660
    %v1665 = vmul.f32 %v1643, %v1661
    %v1666 = vmul.f32 %v1645, %v1662
    %v1667 = vmul.f32 %v1647, %v1663
    %v1668 = vpack.c.bf16 %v1665, %v1664
    %v1669 = vpack.c.bf16 %v1667, %v1666
    %1670 = vrot.lane.b32.xlu0 %v1184, 112
    %v1671 = vpop.permute.xlu0 %1670
    %v1674 = vsel %vm368, %v1668, 0
    %1676 = vmatprep.subr.bf16.mxu0 0
    %1677 = vmatpush1.bf16.msra.mxu0 %v1671
    %1678 = vmatprep.subr.bf16.mxu0 0
    %1679 = vmatpush1.bf16.msra.mxu0 0
    %1680 = vmatprep.subr.bf16.mxu0 0
    %1681 = vmatpush1.bf16.msra.mxu0 0
    %1682 = vmatprep.subr.bf16.mxu0 0
    %1683 = vmatpush1.bf16.msra.mxu0 0
    %1684 = vmatprep.subr.bf16.mxu0 0
    %1685 = vmatpush1.bf16.msra.mxu0 0
    %1686 = vmatprep.subr.bf16.mxu0 0
    %1687 = vmatpush1.bf16.msra.mxu0 0
    %1688 = vmatprep.subr.bf16.mxu0 0
    %1689 = vmatpush1.bf16.msra.mxu0 0
    %1690 = vmatprep.subr.bf16.mxu0 0
    %1691 = vmatpush1.bf16.msra.mxu0 0
    %1692 = vmatprep.subr.bf16.mxu0 0
    %1693 = vmatpush1.bf16.msra.mxu0 0
    %1694 = vmatprep.subr.bf16.mxu0 0
    %1695 = vmatpush1.bf16.msra.mxu0 0
    %1696 = vmatprep.subr.bf16.mxu0 0
    %1697 = vmatpush1.bf16.msra.mxu0 0
    %1698 = vmatprep.subr.bf16.mxu0 0
    %1699 = vmatpush1.bf16.msra.mxu0 0
    %1700 = vmatprep.subr.bf16.mxu0 0
    %1701 = vmatpush1.bf16.msra.mxu0 0
    %1702 = vmatprep.subr.bf16.mxu0 0
    %1703 = vmatpush1.bf16.msra.mxu0 0
    %1704 = vmatprep.subr.bf16.mxu0 0
    %1705 = vmatpush1.bf16.msra.mxu0 0
    %1706 = vmatprep.subr.bf16.mxu0 0
    %1707 = vmatpush1.bf16.msra.mxu0 0
    %1708 = vmatprep.mubr.bf16.mxu0 0
    %1709 = vmatmul.mubr.bf16.gmra.mrb[0].mxu0 %v1674
    %v1710 = vpop.f32.mrb[0].mxu0
    %v1711 = vadd.f32 0.0, %v1710
    %v1712 = vpop.f32.mrb[0].mxu0
    %v1713 = vpop.f32.mrb[0].mxu0
    %v1714 = vadd.f32 0.0, %v1713
    %v1715 = vpop.f32.mrb[0].mxu0
    %1716 = vdwg.mxu0
    %1717 = vrot.lane.b32.xlu0 %v1185, 112
    %v1718 = vpop.permute.xlu0 %1717
    %v1721 = vsel %vm368, %v1669, 0
    %1723 = vmatprep.subr.bf16.mxu0 0
    %1724 = vmatpush1.bf16.msra.mxu0 %v1718
    %1725 = vmatprep.subr.bf16.mxu0 0
    %1726 = vmatpush1.bf16.msra.mxu0 0
    %1727 = vmatprep.subr.bf16.mxu0 0
    %1728 = vmatpush1.bf16.msra.mxu0 0
    %1729 = vmatprep.subr.bf16.mxu0 0
    %1730 = vmatpush1.bf16.msra.mxu0 0
    %1731 = vmatprep.subr.bf16.mxu0 0
    %1732 = vmatpush1.bf16.msra.mxu0 0
    %1733 = vmatprep.subr.bf16.mxu0 0
    %1734 = vmatpush1.bf16.msra.mxu0 0
    %1735 = vmatprep.subr.bf16.mxu0 0
    %1736 = vmatpush1.bf16.msra.mxu0 0
    %1737 = vmatprep.subr.bf16.mxu0 0
    %1738 = vmatpush1.bf16.msra.mxu0 0
    %1739 = vmatprep.subr.bf16.mxu0 0
    %1740 = vmatpush1.bf16.msra.mxu0 0
    %1741 = vmatprep.subr.bf16.mxu0 0
    %1742 = vmatpush1.bf16.msra.mxu0 0
    %1743 = vmatprep.subr.bf16.mxu0 0
    %1744 = vmatpush1.bf16.msra.mxu0 0
    %1745 = vmatprep.subr.bf16.mxu0 0
    %1746 = vmatpush1.bf16.msra.mxu0 0
    %1747 = vmatprep.subr.bf16.mxu0 0
    %1748 = vmatpush1.bf16.msra.mxu0 0
    %1749 = vmatprep.subr.bf16.mxu0 0
    %1750 = vmatpush1.bf16.msra.mxu0 0
    %1751 = vmatprep.subr.bf16.mxu0 0
    %1752 = vmatpush1.bf16.msra.mxu0 0
    %1753 = vmatprep.subr.bf16.mxu0 0
    %1754 = vmatpush1.bf16.msra.mxu0 0
    %1755 = vmatprep.mubr.bf16.mxu0 0
    %1756 = vmatmul.mubr.bf16.gmra.mrb[0].mxu0 %v1721
    %v1757 = vpop.f32.mrb[0].mxu0
    %v1758 = vadd.f32 0.0, %v1757
    %v1759 = vpop.f32.mrb[0].mxu0
    %v1760 = vpop.f32.mrb[0].mxu0
    %v1761 = vadd.f32 0.0, %v1760
    %v1762 = vpop.f32.mrb[0].mxu0
    %1763 = vdwg.mxu0
    %1764 = vrot.lane.b32.xlu0 %v1040, 104
    %v1765 = vpop.permute.xlu0 %1764
    %1766 = vrot.lane.b32.xlu0 %v1042, 104
    %v1767 = vpop.permute.xlu0 %1766
    %v1769 = vsel %vm358, %v1765, 0
    %v1772 = vsel %vm358, %v1767, 0
    %1774 = vmatprep.subr.bf16.mxu0 0
    %1775 = vmatpush1.bf16.xpose.msra.mxu0 %v1772
    %1776 = vmatprep.subr.bf16.mxu0 0
    %1777 = vmatpush1.bf16.xpose.msra.mxu0 0
    %1778 = vmatprep.subr.bf16.mxu0 0
    %1779 = vmatpush1.bf16.xpose.msra.mxu0 0
    %1780 = vmatprep.subr.bf16.mxu0 0
    %1781 = vmatpush1.bf16.xpose.msra.mxu0 0
    %1782 = vmatprep.subr.bf16.mxu0 0
    %1783 = vmatpush1.bf16.xpose.msra.mxu0 0
    %1784 = vmatprep.subr.bf16.mxu0 0
    %1785 = vmatpush1.bf16.xpose.msra.mxu0 0
    %1786 = vmatprep.subr.bf16.mxu0 0
    %1787 = vmatpush1.bf16.xpose.msra.mxu0 0
    %1788 = vmatprep.subr.bf16.mxu0 0
    %1789 = vmatpush1.bf16.xpose.msra.mxu0 0
    %1790 = vmatprep.subr.bf16.mxu0 0
    %1791 = vmatpush1.bf16.xpose.msra.mxu0 0
    %1792 = vmatprep.subr.bf16.mxu0 0
    %1793 = vmatpush1.bf16.xpose.msra.mxu0 0
    %1794 = vmatprep.subr.bf16.mxu0 0
    %1795 = vmatpush1.bf16.xpose.msra.mxu0 0
    %1796 = vmatprep.subr.bf16.mxu0 0
    %1797 = vmatpush1.bf16.xpose.msra.mxu0 0
    %1798 = vmatprep.subr.bf16.mxu0 0
    %1799 = vmatpush1.bf16.xpose.msra.mxu0 0
    %1800 = vmatprep.subr.bf16.mxu0 0
    %1801 = vmatpush1.bf16.xpose.msra.mxu0 0
    %1802 = vmatprep.subr.bf16.mxu0 0
    %1803 = vmatpush1.bf16.xpose.msra.mxu0 0
    %1804 = vmatprep.subr.bf16.mxu0 0
    %1805 = vmatpush1.bf16.xpose.msra.mxu0 0
    %1806 = vmatprep.mubr.bf16.mxu0 0
    %1807 = vmatmul.mubr.bf16.gmra.mrb[0].mxu0 %v1769
    %v1808 = vpop.f32.mrb[0].mxu0
    %v1809 = vadd.f32 0.0, %v1808
    %v1810 = vpop.f32.mrb[0].mxu0
    %v1811 = vpop.f32.mrb[0].mxu0
    %v1812 = vadd.f32 0.0, %v1811
    %v1813 = vpop.f32.mrb[0].mxu0
    %1814 = vdwg.mxu0
    %1815 = vrot.lane.b32.xlu0 %v1041, 104
    %v1816 = vpop.permute.xlu0 %1815
    %1817 = vrot.lane.b32.xlu0 %v1043, 104
    %v1818 = vpop.permute.xlu0 %1817
    %v1820 = vsel %vm358, %v1816, 0
    %v1823 = vsel %vm358, %v1818, 0
    %1825 = vmatprep.subr.bf16.mxu0 0
    %1826 = vmatpush1.bf16.xpose.msra.mxu0 %v1823
    %1827 = vmatprep.subr.bf16.mxu0 0
    %1828 = vmatpush1.bf16.xpose.msra.mxu0 0
    %1829 = vmatprep.subr.bf16.mxu0 0
    %1830 = vmatpush1.bf16.xpose.msra.mxu0 0
    %1831 = vmatprep.subr.bf16.mxu0 0
    %1832 = vmatpush1.bf16.xpose.msra.mxu0 0
    %1833 = vmatprep.subr.bf16.mxu0 0
    %1834 = vmatpush1.bf16.xpose.msra.mxu0 0
    %1835 = vmatprep.subr.bf16.mxu0 0
    %1836 = vmatpush1.bf16.xpose.msra.mxu0 0
    %1837 = vmatprep.subr.bf16.mxu0 0
    %1838 = vmatpush1.bf16.xpose.msra.mxu0 0
    %1839 = vmatprep.subr.bf16.mxu0 0
    %1840 = vmatpush1.bf16.xpose.msra.mxu0 0
    %1841 = vmatprep.subr.bf16.mxu0 0
    %1842 = vmatpush1.bf16.xpose.msra.mxu0 0
    %1843 = vmatprep.subr.bf16.mxu0 0
    %1844 = vmatpush1.bf16.xpose.msra.mxu0 0
    %1845 = vmatprep.subr.bf16.mxu0 0
    %1846 = vmatpush1.bf16.xpose.msra.mxu0 0
    %1847 = vmatprep.subr.bf16.mxu0 0
    %1848 = vmatpush1.bf16.xpose.msra.mxu0 0
    %1849 = vmatprep.subr.bf16.mxu0 0
    %1850 = vmatpush1.bf16.xpose.msra.mxu0 0
    %1851 = vmatprep.subr.bf16.mxu0 0
    %1852 = vmatpush1.bf16.xpose.msra.mxu0 0
    %1853 = vmatprep.subr.bf16.mxu0 0
    %1854 = vmatpush1.bf16.xpose.msra.mxu0 0
    %1855 = vmatprep.subr.bf16.mxu0 0
    %1856 = vmatpush1.bf16.xpose.msra.mxu0 0
    %1857 = vmatprep.mubr.bf16.mxu0 0
    %1858 = vmatmul.mubr.bf16.gmra.mrb[0].mxu0 %v1820
    %v1859 = vpop.f32.mrb[0].mxu0
    %v1860 = vadd.f32 0.0, %v1859
    %v1861 = vpop.f32.mrb[0].mxu0
    %v1862 = vpop.f32.mrb[0].mxu0
    %v1863 = vadd.f32 0.0, %v1862
    %v1864 = vpop.f32.mrb[0].mxu0
    %1865 = vdwg.mxu0
    %v1866 = vsel %vm368, %v1809, -inf
    %1867 = vmax.xlane.f32.xlu0 %v1866
    %v1868 = vpop.xlane.xlu0 %1867
    %v1869 = vsel %vm368, %v1812, -inf
    %1870 = vmax.xlane.f32.xlu0 %v1869
    %v1871 = vpop.xlane.xlu0 %1870
    %v1872 = vsel %vm368, %v1860, -inf
    %1873 = vmax.xlane.f32.xlu0 %v1872
    %v1874 = vpop.xlane.xlu0 %1873
    %v1875 = vsel %vm368, %v1863, -inf
    %1876 = vmax.xlane.f32.xlu0 %v1875
    %v1877 = vpop.xlane.xlu0 %1876
    %v1878 = vsub.f32 %v1809, %v1868
    %v1879 = vsub.f32 %v1812, %v1871
    %v1880 = vsub.f32 %v1860, %v1874
    %v1881 = vsub.f32 %v1863, %v1877
    %v1882 = vmul.f32 %v1878, 1.442695
    %v1883 = vpow.pop %v1882
    %v1884 = vmul.f32 %v1879, 1.442695
    %v1885 = vpow.pop %v1884
    %v1886 = vmul.f32 %v1880, 1.442695
    %v1887 = vpow.pop %v1886
    %v1888 = vmul.f32 %v1881, 1.442695
    %v1889 = vpow.pop %v1888
    %v1890 = vsel %vm368, %v1883, 0.0
    %1891 = vadd.xlane.f32.xlu0 %v1890
    %v1892 = vpop.xlane.xlu0 %1891
    %v1893 = vsel %vm368, %v1885, 0.0
    %1894 = vadd.xlane.f32.xlu0 %v1893
    %v1895 = vpop.xlane.xlu0 %1894
    %v1896 = vsel %vm368, %v1887, 0.0
    %1897 = vadd.xlane.f32.xlu0 %v1896
    %v1898 = vpop.xlane.xlu0 %1897
    %v1899 = vsel %vm368, %v1889, 0.0
    %1900 = vadd.xlane.f32.xlu0 %v1899
    %v1901 = vpop.xlane.xlu0 %1900
    %v1902 = vrcp.pop %v1892
    %v1903 = vrcp.pop %v1895
    %v1904 = vrcp.pop %v1898
    %v1905 = vrcp.pop %v1901
    %v1906 = vmul.f32 %v1883, %v1902
    %v1907 = vmul.f32 %v1885, %v1903
    %v1908 = vmul.f32 %v1887, %v1904
    %v1909 = vmul.f32 %v1889, %v1905
    %v1910 = vpack.c.bf16 %v1907, %v1906
    %v1911 = vpack.c.bf16 %v1909, %v1908
    %1912 = vrot.lane.b32.xlu0 %v1184, 104
    %v1913 = vpop.permute.xlu0 %1912
    %v1916 = vsel %vm368, %v1910, 0
    %1918 = vmatprep.subr.bf16.mxu0 0
    %1919 = vmatpush1.bf16.msra.mxu0 %v1913
    %1920 = vmatprep.subr.bf16.mxu0 0
    %1921 = vmatpush1.bf16.msra.mxu0 0
    %1922 = vmatprep.subr.bf16.mxu0 0
    %1923 = vmatpush1.bf16.msra.mxu0 0
    %1924 = vmatprep.subr.bf16.mxu0 0
    %1925 = vmatpush1.bf16.msra.mxu0 0
    %1926 = vmatprep.subr.bf16.mxu0 0
    %1927 = vmatpush1.bf16.msra.mxu0 0
    %1928 = vmatprep.subr.bf16.mxu0 0
    %1929 = vmatpush1.bf16.msra.mxu0 0
    %1930 = vmatprep.subr.bf16.mxu0 0
    %1931 = vmatpush1.bf16.msra.mxu0 0
    %1932 = vmatprep.subr.bf16.mxu0 0
    %1933 = vmatpush1.bf16.msra.mxu0 0
    %1934 = vmatprep.subr.bf16.mxu0 0
    %1935 = vmatpush1.bf16.msra.mxu0 0
    %1936 = vmatprep.subr.bf16.mxu0 0
    %1937 = vmatpush1.bf16.msra.mxu0 0
    %1938 = vmatprep.subr.bf16.mxu0 0
    %1939 = vmatpush1.bf16.msra.mxu0 0
    %1940 = vmatprep.subr.bf16.mxu0 0
    %1941 = vmatpush1.bf16.msra.mxu0 0
    %1942 = vmatprep.subr.bf16.mxu0 0
    %1943 = vmatpush1.bf16.msra.mxu0 0
    %1944 = vmatprep.subr.bf16.mxu0 0
    %1945 = vmatpush1.bf16.msra.mxu0 0
    %1946 = vmatprep.subr.bf16.mxu0 0
    %1947 = vmatpush1.bf16.msra.mxu0 0
    %1948 = vmatprep.subr.bf16.mxu0 0
    %1949 = vmatpush1.bf16.msra.mxu0 0
    %1950 = vmatprep.mubr.bf16.mxu0 0
    %1951 = vmatmul.mubr.bf16.gmra.mrb[0].mxu0 %v1916
    %v1952 = vpop.f32.mrb[0].mxu0
    %v1953 = vadd.f32 0.0, %v1952
    %v1954 = vpop.f32.mrb[0].mxu0
    %v1955 = vpop.f32.mrb[0].mxu0
    %v1956 = vadd.f32 0.0, %v1955
    %v1957 = vpop.f32.mrb[0].mxu0
    %1958 = vdwg.mxu0
    %1959 = vrot.lane.b32.xlu0 %v1185, 104
    %v1960 = vpop.permute.xlu0 %1959
    %v1963 = vsel %vm368, %v1911, 0
    %1965 = vmatprep.subr.bf16.mxu0 0
    %1966 = vmatpush1.bf16.msra.mxu0 %v1960
    %1967 = vmatprep.subr.bf16.mxu0 0
    %1968 = vmatpush1.bf16.msra.mxu0 0
    %1969 = vmatprep.subr.bf16.mxu0 0
    %1970 = vmatpush1.bf16.msra.mxu0 0
    %1971 = vmatprep.subr.bf16.mxu0 0
    %1972 = vmatpush1.bf16.msra.mxu0 0
    %1973 = vmatprep.subr.bf16.mxu0 0
    %1974 = vmatpush1.bf16.msra.mxu0 0
    %1975 = vmatprep.subr.bf16.mxu0 0
    %1976 = vmatpush1.bf16.msra.mxu0 0
    %1977 = vmatprep.subr.bf16.mxu0 0
    %1978 = vmatpush1.bf16.msra.mxu0 0
    %1979 = vmatprep.subr.bf16.mxu0 0
    %1980 = vmatpush1.bf16.msra.mxu0 0
    %1981 = vmatprep.subr.bf16.mxu0 0
    %1982 = vmatpush1.bf16.msra.mxu0 0
    %1983 = vmatprep.subr.bf16.mxu0 0
    %1984 = vmatpush1.bf16.msra.mxu0 0
    %1985 = vmatprep.subr.bf16.mxu0 0
    %1986 = vmatpush1.bf16.msra.mxu0 0
    %1987 = vmatprep.subr.bf16.mxu0 0
    %1988 = vmatpush1.bf16.msra.mxu0 0
    %1989 = vmatprep.subr.bf16.mxu0 0
    %1990 = vmatpush1.bf16.msra.mxu0 0
    %1991 = vmatprep.subr.bf16.mxu0 0
    %1992 = vmatpush1.bf16.msra.mxu0 0
    %1993 = vmatprep.subr.bf16.mxu0 0
    %1994 = vmatpush1.bf16.msra.mxu0 0
    %1995 = vmatprep.subr.bf16.mxu0 0
    %1996 = vmatpush1.bf16.msra.mxu0 0
    %1997 = vmatprep.mubr.bf16.mxu0 0
    %1998 = vmatmul.mubr.bf16.gmra.mrb[0].mxu0 %v1963
    %v1999 = vpop.f32.mrb[0].mxu0
    %v2000 = vadd.f32 0.0, %v1999
    %v2001 = vpop.f32.mrb[0].mxu0
    %v2002 = vpop.f32.mrb[0].mxu0
    %v2003 = vadd.f32 0.0, %v2002
    %v2004 = vpop.f32.mrb[0].mxu0
    %2005 = vdwg.mxu0
    %2010 = vrot.lane.b32.xlu0 %v1468, 8
    %v2011 = vpop.permute.xlu0 %2010
    %2012 = vrot.lane.b32.xlu0 %v1471, 8
    %v2013 = vpop.permute.xlu0 %2012
    %2014 = vrot.lane.b32.xlu0 %v1516, 8
    %v2015 = vpop.permute.xlu0 %2014
    %2016 = vrot.lane.b32.xlu0 %v1519, 8
    %v2017 = vpop.permute.xlu0 %2016
    %2026 = vrot.lane.b32.xlu0 %v1711, 16
    %v2027 = vpop.permute.xlu0 %2026
    %2028 = vrot.lane.b32.xlu0 %v1714, 16
    %v2029 = vpop.permute.xlu0 %2028
    %2030 = vrot.lane.b32.xlu0 %v1758, 16
    %v2031 = vpop.permute.xlu0 %2030
    %2032 = vrot.lane.b32.xlu0 %v1761, 16
    %v2033 = vpop.permute.xlu0 %2032
    %2042 = vrot.lane.b32.xlu0 %v1953, 24
    %v2043 = vpop.permute.xlu0 %2042
    %2044 = vrot.lane.b32.xlu0 %v1956, 24
    %v2045 = vpop.permute.xlu0 %2044
    %2046 = vrot.lane.b32.xlu0 %v2000, 24
    %v2047 = vpop.permute.xlu0 %2046
    %2048 = vrot.lane.b32.xlu0 %v2003, 24
    %v2049 = vpop.permute.xlu0 %2048
    %v2054 = vsel %vm358, %v1224, %v2011
    %v2055 = vsel %vm358, %v1227, %v2013
    %v2056 = vsel %vm358, %v1268, %v2015
    %v2057 = vsel %vm358, %v1271, %v2017
    %v2058 = vsel %vm368, %v2054, %v2027
    %v2059 = vsel %vm368, %v2055, %v2029
    %v2060 = vsel %vm368, %v2056, %v2031
    %v2061 = vsel %vm368, %v2057, %v2033
    %v2062 = vsel %vm551, %v2058, %v2043
    %v2063 = vsel %vm551, %v2059, %v2045
    %v2064 = vsel %vm551, %v2060, %v2047
    %v2065 = vsel %vm551, %v2061, %v2049
    %v2066 = vpack.c.bf16 %v2063, %v2062
    %v2067 = vpack.c.bf16 %v2065, %v2064
    %v2068 = vld [vmem:[%s35] sm:$0xf]
    %v2069 = vld [vmem:[%s35 + $0x4] sm:$0xf]
    %v2070 = vld [vmem:[%s35 + $0x8] sm:$0xf]
    %v2071 = vld [vmem:[%s35 + $0xc] sm:$0xf]
    %v2072 = vld [vmem:[%s37] sm:$0x1]
    %v2074 = vlaneseq
    %v2075 = vshrl.u32 %v2074, 7
    %v2076 = vsub.s32 0, %v2075
    %v2077 = vrot.slane %v2072, %v2076
    %v2083 = vunpack.c.l.b16 %v2068
    %v2084 = vunpack.c.l.b16 %v2069
    %v2085 = vunpack.c.l.b16 %v2070
    %v2086 = vunpack.c.l.b16 %v2071
    %v2087 = vpack.c.b16 %v2084, %v2083
    %v2088 = vpack.c.b16 %v2086, %v2085
    %v2092 = vsel %vm697, %v2066, 0
    %v2095 = vsel %vm697, %v2067, 0
    %2097 = vmatprep.subr.bf16.mxu0 0
    %2098 = vmatpush1.bf16.msra.mxu0 %v2087
    %2099 = vmatprep.subr.bf16.mxu0 0
    %2100 = vmatpush1.bf16.msra.mxu0 %v2088
    %2101 = vmatprep.subr.bf16.mxu0 0
    %2102 = vmatpush1.bf16.msra.mxu0 0
    %2103 = vmatprep.subr.bf16.mxu0 0
    %2104 = vmatpush1.bf16.msra.mxu0 0
    %2105 = vmatprep.subr.bf16.mxu0 0
    %2106 = vmatpush1.bf16.msra.mxu0 0
    %2107 = vmatprep.subr.bf16.mxu0 0
    %2108 = vmatpush1.bf16.msra.mxu0 0
    %2109 = vmatprep.subr.bf16.mxu0 0
    %2110 = vmatpush1.bf16.msra.mxu0 0
    %2111 = vmatprep.subr.bf16.mxu0 0
    %2112 = vmatpush1.bf16.msra.mxu0 0
    %2113 = vmatprep.subr.bf16.mxu0 0
    %2114 = vmatpush1.bf16.msra.mxu0 0
    %2115 = vmatprep.subr.bf16.mxu0 0
    %2116 = vmatpush1.bf16.msra.mxu0 0
    %2117 = vmatprep.subr.bf16.mxu0 0
    %2118 = vmatpush1.bf16.msra.mxu0 0
    %2119 = vmatprep.subr.bf16.mxu0 0
    %2120 = vmatpush1.bf16.msra.mxu0 0
    %2121 = vmatprep.subr.bf16.mxu0 0
    %2122 = vmatpush1.bf16.msra.mxu0 0
    %2123 = vmatprep.subr.bf16.mxu0 0
    %2124 = vmatpush1.bf16.msra.mxu0 0
    %2125 = vmatprep.subr.bf16.mxu0 0
    %2126 = vmatpush1.bf16.msra.mxu0 0
    %2127 = vmatprep.subr.bf16.mxu0 0
    %2128 = vmatpush1.bf16.msra.mxu0 0
    %2129 = vmatprep.mubr.bf16.mxu0 0
    %2130 = vmatmul.mubr.bf16.gmra.mrb[0].mxu0 %v2092
    %v2131 = vpop.f32.mrb[0].mxu0
    %v2132 = vadd.f32 %v2077, %v2131
    %v2133 = vpop.f32.mrb[0].mxu0
    %v2134 = vpop.f32.mrb[0].mxu0
    %v2135 = vadd.f32 %v2077, %v2134
    %v2136 = vpop.f32.mrb[0].mxu0
    %2137 = vmatprep.mubr.bf16.mxu0 0
    %2138 = vmatmul.mubr.bf16.gmra.mrb[0].mxu0 %v2095
    %v2139 = vpop.f32.mrb[0].mxu0
    %v2140 = vadd.f32 %v2077, %v2139
    %v2141 = vpop.f32.mrb[0].mxu0
    %v2142 = vpop.f32.mrb[0].mxu0
    %v2143 = vadd.f32 %v2077, %v2142
    %v2144 = vpop.f32.mrb[0].mxu0
    %2145 = vdwg.mxu0
    %v2146 = vadd.f32 %v812, %v2132
    %v2147 = vadd.f32 %v813, %v2135
    %v2148 = vadd.f32 %v814, %v2140
    %v2149 = vadd.f32 %v815, %v2143
    %v2150 = vld [vmem:[%s39] sm:$0x1]
    %v2151 = vld [vmem:[%s41] sm:$0x1]
    %v2152 = vsel %vm697, %v2146, 0.0
    %2153 = vadd.xlane.f32.xlu0 %v2152
    %v2154 = vpop.xlane.xlu0 %2153
    %v2155 = vsel %vm697, %v2147, 0.0
    %2156 = vadd.xlane.f32.xlu0 %v2155
    %v2157 = vpop.xlane.xlu0 %2156
    %v2158 = vsel %vm697, %v2148, 0.0
    %2159 = vadd.xlane.f32.xlu0 %v2158
    %v2160 = vpop.xlane.xlu0 %2159
    %v2161 = vsel %vm697, %v2149, 0.0
    %2162 = vadd.xlane.f32.xlu0 %v2161
    %v2163 = vpop.xlane.xlu0 %2162
    %v2164 = vrcp.pop 32.0
    %v2165 = vmul.f32 %v2154, %v2164
    %v2166 = vmul.f32 %v2157, %v2164
    %v2167 = vmul.f32 %v2160, %v2164
    %v2168 = vmul.f32 %v2163, %v2164
    %v2169 = vsub.f32 %v2146, %v2165
    %v2170 = vsub.f32 %v2147, %v2166
    %v2171 = vsub.f32 %v2148, %v2167
    %v2172 = vsub.f32 %v2149, %v2168
    %v2173 = vmul.f32 %v2169, %v2169
    %v2174 = vmul.f32 %v2170, %v2170
    %v2175 = vmul.f32 %v2171, %v2171
    %v2176 = vmul.f32 %v2172, %v2172
    %v2177 = vsel %vm697, %v2173, 0.0
    %2178 = vadd.xlane.f32.xlu0 %v2177
    %v2179 = vpop.xlane.xlu0 %2178
    %v2180 = vsel %vm697, %v2174, 0.0
    %2181 = vadd.xlane.f32.xlu0 %v2180
    %v2182 = vpop.xlane.xlu0 %2181
    %v2183 = vsel %vm697, %v2175, 0.0
    %2184 = vadd.xlane.f32.xlu0 %v2183
    %v2185 = vpop.xlane.xlu0 %2184
    %v2186 = vsel %vm697, %v2176, 0.0
    %2187 = vadd.xlane.f32.xlu0 %v2186
    %v2188 = vpop.xlane.xlu0 %2187
    %v2189 = vmul.f32 %v2179, %v2164
    %v2190 = vmul.f32 %v2182, %v2164
    %v2191 = vmul.f32 %v2185, %v2164
    %v2192 = vmul.f32 %v2188, %v2164
    %v2193 = vadd.f32 %v2189, 1e-05
    %v2194 = vadd.f32 %v2190, 1e-05
    %v2195 = vadd.f32 %v2191, 1e-05
    %v2196 = vadd.f32 %v2192, 1e-05
    %v2197 = vrsqrt.pop %v2193
    %v2198 = vrsqrt.pop %v2194
    %v2199 = vrsqrt.pop %v2195
    %v2200 = vrsqrt.pop %v2196
    %v2201 = vmul.f32 %v2169, %v2197
    %v2202 = vmul.f32 %v2170, %v2198
    %v2203 = vmul.f32 %v2171, %v2199
    %v2204 = vmul.f32 %v2172, %v2200
    %v2206 = vlaneseq
    %v2207 = vshrl.u32 %v2206, 7
    %v2208 = vsub.s32 0, %v2207
    %v2209 = vrot.slane %v2150, %v2208
    %v2211 = vmul.f32 %v2201, %v2209
    %v2212 = vmul.f32 %v2202, %v2209
    %v2213 = vmul.f32 %v2203, %v2209
    %v2214 = vmul.f32 %v2204, %v2209
    %v2216 = vlaneseq
    %v2217 = vshrl.u32 %v2216, 7
    %v2218 = vsub.s32 0, %v2217
    %v2219 = vrot.slane %v2151, %v2218
    %v2221 = vadd.f32 %v2211, %v2219
    %v2222 = vadd.f32 %v2212, %v2219
    %v2223 = vadd.f32 %v2213, %v2219
    %v2224 = vadd.f32 %v2214, %v2219
    %v2225 = vpack.c.bf16 %v2222, %v2221
    %v2226 = vpack.c.bf16 %v2224, %v2223
    %v2227 = vld [vmem:[%s43] sm:$0xf]
    %v2228 = vld [vmem:[%s43 + $0x4] sm:$0xf]
    %v2229 = vld [vmem:[%s43 + $0x8] sm:$0xf]
    %v2230 = vld [vmem:[%s43 + $0xc] sm:$0xf]
    %v2231 = vld [vmem:[%s45] sm:$0x1]
    %v2233 = vlaneseq
    %v2234 = vshrl.u32 %v2233, 7
    %v2235 = vsub.s32 0, %v2234
    %v2236 = vrot.slane %v2231, %v2235
    %v2242 = vunpack.c.l.b16 %v2227
    %v2243 = vunpack.c.l.b16 %v2228
    %v2244 = vunpack.c.l.b16 %v2229
    %v2245 = vunpack.c.l.b16 %v2230
    %v2246 = vpack.c.b16 %v2243, %v2242
    %v2247 = vpack.c.b16 %v2245, %v2244
    %v2251 = vsel %vm697, %v2225, 0
    %v2254 = vsel %vm697, %v2226, 0
    %2256 = vmatprep.subr.bf16.mxu0 0
    %2257 = vmatpush1.bf16.msra.mxu0 %v2246
    %2258 = vmatprep.subr.bf16.mxu0 0
    %2259 = vmatpush1.bf16.msra.mxu0 %v2247
    %2260 = vmatprep.subr.bf16.mxu0 0
    %2261 = vmatpush1.bf16.msra.mxu0 0
    %2262 = vmatprep.subr.bf16.mxu0 0
    %2263 = vmatpush1.bf16.msra.mxu0 0
    %2264 = vmatprep.subr.bf16.mxu0 0
    %2265 = vmatpush1.bf16.msra.mxu0 0
    %2266 = vmatprep.subr.bf16.mxu0 0
    %2267 = vmatpush1.bf16.msra.mxu0 0
    %2268 = vmatprep.subr.bf16.mxu0 0
    %2269 = vmatpush1.bf16.msra.mxu0 0
    %2270 = vmatprep.subr.bf16.mxu0 0
    %2271 = vmatpush1.bf16.msra.mxu0 0
    %2272 = vmatprep.subr.bf16.mxu0 0
    %2273 = vmatpush1.bf16.msra.mxu0 0
    %2274 = vmatprep.subr.bf16.mxu0 0
    %2275 = vmatpush1.bf16.msra.mxu0 0
    %2276 = vmatprep.subr.bf16.mxu0 0
    %2277 = vmatpush1.bf16.msra.mxu0 0
    %2278 = vmatprep.subr.bf16.mxu0 0
    %2279 = vmatpush1.bf16.msra.mxu0 0
    %2280 = vmatprep.subr.bf16.mxu0 0
    %2281 = vmatpush1.bf16.msra.mxu0 0
    %2282 = vmatprep.subr.bf16.mxu0 0
    %2283 = vmatpush1.bf16.msra.mxu0 0
    %2284 = vmatprep.subr.bf16.mxu0 0
    %2285 = vmatpush1.bf16.msra.mxu0 0
    %2286 = vmatprep.subr.bf16.mxu0 0
    %2287 = vmatpush1.bf16.msra.mxu0 0
    %2288 = vmatprep.mubr.bf16.mxu0 0
    %2289 = vmatmul.mubr.bf16.gmra.mrb[0].mxu0 %v2251
    %v2290 = vpop.f32.mrb[0].mxu0
    %v2291 = vadd.f32 %v2236, %v2290
    %v2292 = vpop.f32.mrb[0].mxu0
    %v2293 = vpop.f32.mrb[0].mxu0
    %v2294 = vadd.f32 %v2236, %v2293
    %v2295 = vpop.f32.mrb[0].mxu0
    %2296 = vmatprep.mubr.bf16.mxu0 0
    %2297 = vmatmul.mubr.bf16.gmra.mrb[0].mxu0 %v2254
    %v2298 = vpop.f32.mrb[0].mxu0
    %v2299 = vadd.f32 %v2236, %v2298
    %v2300 = vpop.f32.mrb[0].mxu0
    %v2301 = vpop.f32.mrb[0].mxu0
    %v2302 = vadd.f32 %v2236, %v2301
    %v2303 = vpop.f32.mrb[0].mxu0
    %2304 = vdwg.mxu0
    %v2305 = vmax.f32 %v2291, 0.0
    %v2306 = vmax.f32 %v2294, 0.0
    %v2307 = vmax.f32 %v2299, 0.0
    %v2308 = vmax.f32 %v2302, 0.0
    %v2309 = vpack.c.bf16 %v2306, %v2305
    %v2310 = vpack.c.bf16 %v2308, %v2307
    %v2311 = vld [vmem:[%s47] sm:$0xf]
    %v2312 = vld [vmem:[%s47 + $0x4] sm:$0xf]
    %v2313 = vld [vmem:[%s47 + $0x8] sm:$0xf]
    %v2314 = vld [vmem:[%s47 + $0xc] sm:$0xf]
    %v2315 = vld [vmem:[%s47 + $0x10] sm:$0xf]
    %v2316 = vld [vmem:[%s47 + $0x14] sm:$0xf]
    %v2317 = vld [vmem:[%s47 + $0x18] sm:$0xf]
    %v2318 = vld [vmem:[%s47 + $0x1c] sm:$0xf]
    %v2319 = vld [vmem:[%s49] sm:$0x1]
    %v2321 = vlaneseq
    %v2322 = vshrl.u32 %v2321, 7
    %v2323 = vsub.s32 0, %v2322
    %v2324 = vrot.slane %v2319, %v2323
    %v2334 = vunpack.c.l.b16 %v2311
    %v2335 = vunpack.c.l.b16 %v2312
    %v2336 = vunpack.c.l.b16 %v2313
    %v2337 = vunpack.c.l.b16 %v2314
    %v2338 = vunpack.c.l.b16 %v2315
    %v2339 = vunpack.c.l.b16 %v2316
    %v2340 = vunpack.c.l.b16 %v2317
    %v2341 = vunpack.c.l.b16 %v2318
    %v2342 = vpack.c.b16 %v2335, %v2334
    %v2343 = vpack.c.b16 %v2337, %v2336
    %v2344 = vpack.c.b16 %v2339, %v2338
    %v2345 = vpack.c.b16 %v2341, %v2340
    %vm2350 = vcmask 523264
    %v2352 = vsel %vm2350, %v2309, 0
    %v2355 = vsel %vm2350, %v2310, 0
    %2357 = vmatprep.subr.bf16.mxu0 0
    %2358 = vmatpush1.bf16.msra.mxu0 %v2342
    %2359 = vmatprep.subr.bf16.mxu0 0
    %2360 = vmatpush1.bf16.msra.mxu0 %v2343
    %2361 = vmatprep.subr.bf16.mxu0 0
    %2362 = vmatpush1.bf16.msra.mxu0 %v2344
    %2363 = vmatprep.subr.bf16.mxu0 0
    %2364 = vmatpush1.bf16.msra.mxu0 %v2345
    %2365 = vmatprep.subr.bf16.mxu0 0
    %2366 = vmatpush1.bf16.msra.mxu0 0
    %2367 = vmatprep.subr.bf16.mxu0 0
    %2368 = vmatpush1.bf16.msra.mxu0 0
    %2369 = vmatprep.subr.bf16.mxu0 0
    %2370 = vmatpush1.bf16.msra.mxu0 0
    %2371 = vmatprep.subr.bf16.mxu0 0
    %2372 = vmatpush1.bf16.msra.mxu0 0
    %2373 = vmatprep.subr.bf16.mxu0 0
    %2374 = vmatpush1.bf16.msra.mxu0 0
    %2375 = vmatprep.subr.bf16.mxu0 0
    %2376 = vmatpush1.bf16.msra.mxu0 0
    %2377 = vmatprep.subr.bf16.mxu0 0
    %2378 = vmatpush1.bf16.msra.mxu0 0
    %2379 = vmatprep.subr.bf16.mxu0 0
    %2380 = vmatpush1.bf16.msra.mxu0 0
    %2381 = vmatprep.subr.bf16.mxu0 0
    %2382 = vmatpush1.bf16.msra.mxu0 0
    %2383 = vmatprep.subr.bf16.mxu0 0
    %2384 = vmatpush1.bf16.msra.mxu0 0
    %2385 = vmatprep.subr.bf16.mxu0 0
    %2386 = vmatpush1.bf16.msra.mxu0 0
    %2387 = vmatprep.subr.bf16.mxu0 0
    %2388 = vmatpush1.bf16.msra.mxu0 0
    %2389 = vmatprep.mubr.bf16.mxu0 0
    %2390 = vmatmul.mubr.bf16.gmra.mrb[0].mxu0 %v2352
    %v2391 = vpop.f32.mrb[0].mxu0
    %v2392 = vadd.f32 %v2324, %v2391
    %v2393 = vpop.f32.mrb[0].mxu0
    %v2394 = vpop.f32.mrb[0].mxu0
    %v2395 = vadd.f32 %v2324, %v2394
    %v2396 = vpop.f32.mrb[0].mxu0
    %2397 = vmatprep.mubr.bf16.mxu0 0
    %2398 = vmatmul.mubr.bf16.gmra.mrb[0].mxu0 %v2355
    %v2399 = vpop.f32.mrb[0].mxu0
    %v2400 = vadd.f32 %v2324, %v2399
    %v2401 = vpop.f32.mrb[0].mxu0
    %v2402 = vpop.f32.mrb[0].mxu0
    %v2403 = vadd.f32 %v2324, %v2402
    %v2404 = vpop.f32.mrb[0].mxu0
    %2405 = vdwg.mxu0
    %v2406 = vadd.f32 %v2221, %v2392
    %v2407 = vadd.f32 %v2222, %v2395
    %v2408 = vadd.f32 %v2223, %v2400
    %v2409 = vadd.f32 %v2224, %v2403
    %v2410 = vld [vmem:[%s51] sm:$0x1]
    %v2411 = vld [vmem:[%s53] sm:$0x1]
    %v2412 = vsel %vm697, %v2406, 0.0
    %2413 = vadd.xlane.f32.xlu0 %v2412
    %v2414 = vpop.xlane.xlu0 %2413
    %v2415 = vsel %vm697, %v2407, 0.0
    %2416 = vadd.xlane.f32.xlu0 %v2415
    %v2417 = vpop.xlane.xlu0 %2416
    %v2418 = vsel %vm697, %v2408, 0.0
    %2419 = vadd.xlane.f32.xlu0 %v2418
    %v2420 = vpop.xlane.xlu0 %2419
    %v2421 = vsel %vm697, %v2409, 0.0
    %2422 = vadd.xlane.f32.xlu0 %v2421
    %v2423 = vpop.xlane.xlu0 %2422
    %v2424 = vmul.f32 %v2414, %v2164
    %v2425 = vmul.f32 %v2417, %v2164
    %v2426 = vmul.f32 %v2420, %v2164
    %v2427 = vmul.f32 %v2423, %v2164
    %v2428 = vsub.f32 %v2406, %v2424
    %v2429 = vsub.f32 %v2407, %v2425
    %v2430 = vsub.f32 %v2408, %v2426
    %v2431 = vsub.f32 %v2409, %v2427
    %v2432 = vmul.f32 %v2428, %v2428
    %v2433 = vmul.f32 %v2429, %v2429
    %v2434 = vmul.f32 %v2430, %v2430
    %v2435 = vmul.f32 %v2431, %v2431
    %v2436 = vsel %vm697, %v2432, 0.0
    %2437 = vadd.xlane.f32.xlu0 %v2436
    %v2438 = vpop.xlane.xlu0 %2437
    %v2439 = vsel %vm697, %v2433, 0.0
    %2440 = vadd.xlane.f32.xlu0 %v2439
    %v2441 = vpop.xlane.xlu0 %2440
    %v2442 = vsel %vm697, %v2434, 0.0
    %2443 = vadd.xlane.f32.xlu0 %v2442
    %v2444 = vpop.xlane.xlu0 %2443
    %v2445 = vsel %vm697, %v2435, 0.0
    %2446 = vadd.xlane.f32.xlu0 %v2445
    %v2447 = vpop.xlane.xlu0 %2446
    %v2448 = vmul.f32 %v2438, %v2164
    %v2449 = vmul.f32 %v2441, %v2164
    %v2450 = vmul.f32 %v2444, %v2164
    %v2451 = vmul.f32 %v2447, %v2164
    %v2452 = vadd.f32 %v2448, 1e-05
    %v2453 = vadd.f32 %v2449, 1e-05
    %v2454 = vadd.f32 %v2450, 1e-05
    %v2455 = vadd.f32 %v2451, 1e-05
    %v2456 = vrsqrt.pop %v2452
    %v2457 = vrsqrt.pop %v2453
    %v2458 = vrsqrt.pop %v2454
    %v2459 = vrsqrt.pop %v2455
    %v2460 = vmul.f32 %v2428, %v2456
    %v2461 = vmul.f32 %v2429, %v2457
    %v2462 = vmul.f32 %v2430, %v2458
    %v2463 = vmul.f32 %v2431, %v2459
    %v2465 = vlaneseq
    %v2466 = vshrl.u32 %v2465, 7
    %v2467 = vsub.s32 0, %v2466
    %v2468 = vrot.slane %v2410, %v2467
    %v2470 = vmul.f32 %v2460, %v2468
    %v2471 = vmul.f32 %v2461, %v2468
    %v2472 = vmul.f32 %v2462, %v2468
    %v2473 = vmul.f32 %v2463, %v2468
    %v2475 = vlaneseq
    %v2476 = vshrl.u32 %v2475, 7
    %v2477 = vsub.s32 0, %v2476
    %v2478 = vrot.slane %v2411, %v2477
    %v2480 = vadd.f32 %v2470, %v2478
    %v2481 = vadd.f32 %v2471, %v2478
    %v2482 = vadd.f32 %v2472, %v2478
    %v2483 = vadd.f32 %v2473, %v2478
    %v2484 = vpack.c.bf16 %v2481, %v2480
    %v2485 = vpack.c.bf16 %v2483, %v2482
    %s2486 = scalar_lea.vmem %s23, 16
    %v2487 = vld [vmem:[%s2486] sm:$0xf]
    %v2488 = vld [vmem:[%s2486 + $0x4] sm:$0xf]
    %v2489 = vld [vmem:[%s2486 + $0x8] sm:$0xf]
    %v2490 = vld [vmem:[%s2486 + $0xc] sm:$0xf]
    %s2491 = scalar_lea.vmem %s25, 1
    %v2492 = vld [vmem:[%s2491] sm:$0x1]
    %v2494 = vlaneseq
    %v2495 = vshrl.u32 %v2494, 7
    %v2496 = vsub.s32 0, %v2495
    %v2497 = vrot.slane %v2492, %v2496
    %v2503 = vunpack.c.l.b16 %v2487
    %v2504 = vunpack.c.l.b16 %v2488
    %v2505 = vunpack.c.l.b16 %v2489
    %v2506 = vunpack.c.l.b16 %v2490
    %v2507 = vpack.c.b16 %v2504, %v2503
    %v2508 = vpack.c.b16 %v2506, %v2505
    %v2512 = vsel %vm697, %v2484, 0
    %v2515 = vsel %vm697, %v2485, 0
    %2517 = vmatprep.subr.bf16.mxu0 0
    %2518 = vmatpush1.bf16.msra.mxu0 %v2507
    %2519 = vmatprep.subr.bf16.mxu0 0
    %2520 = vmatpush1.bf16.msra.mxu0 %v2508
    %2521 = vmatprep.subr.bf16.mxu0 0
    %2522 = vmatpush1.bf16.msra.mxu0 0
    %2523 = vmatprep.subr.bf16.mxu0 0
    %2524 = vmatpush1.bf16.msra.mxu0 0
    %2525 = vmatprep.subr.bf16.mxu0 0
    %2526 = vmatpush1.bf16.msra.mxu0 0
    %2527 = vmatprep.subr.bf16.mxu0 0
    %2528 = vmatpush1.bf16.msra.mxu0 0
    %2529 = vmatprep.subr.bf16.mxu0 0
    %2530 = vmatpush1.bf16.msra.mxu0 0
    %2531 = vmatprep.subr.bf16.mxu0 0
    %2532 = vmatpush1.bf16.msra.mxu0 0
    %2533 = vmatprep.subr.bf16.mxu0 0
    %2534 = vmatpush1.bf16.msra.mxu0 0
    %2535 = vmatprep.subr.bf16.mxu0 0
    %2536 = vmatpush1.bf16.msra.mxu0 0
    %2537 = vmatprep.subr.bf16.mxu0 0
    %2538 = vmatpush1.bf16.msra.mxu0 0
    %2539 = vmatprep.subr.bf16.mxu0 0
    %2540 = vmatpush1.bf16.msra.mxu0 0
    %2541 = vmatprep.subr.bf16.mxu0 0
    %2542 = vmatpush1.bf16.msra.mxu0 0
    %2543 = vmatprep.subr.bf16.mxu0 0
    %2544 = vmatpush1.bf16.msra.mxu0 0
    %2545 = vmatprep.subr.bf16.mxu0 0
    %2546 = vmatpush1.bf16.msra.mxu0 0
    %2547 = vmatprep.subr.bf16.mxu0 0
    %2548 = vmatpush1.bf16.msra.mxu0 0
    %2549 = vmatprep.mubr.bf16.mxu0 0
    %2550 = vmatmul.mubr.bf16.gmra.mrb[0].mxu0 %v2512
    %v2551 = vpop.f32.mrb[0].mxu0
    %v2552 = vadd.f32 %v2497, %v2551
    %v2553 = vpop.f32.mrb[0].mxu0
    %v2554 = vpop.f32.mrb[0].mxu0
    %v2555 = vadd.f32 %v2497, %v2554
    %v2556 = vpop.f32.mrb[0].mxu0
    %2557 = vmatprep.mubr.bf16.mxu0 0
    %2558 = vmatmul.mubr.bf16.gmra.mrb[0].mxu0 %v2515
    %v2559 = vpop.f32.mrb[0].mxu0
    %v2560 = vadd.f32 %v2497, %v2559
    %v2561 = vpop.f32.mrb[0].mxu0
    %v2562 = vpop.f32.mrb[0].mxu0
    %v2563 = vadd.f32 %v2497, %v2562
    %v2564 = vpop.f32.mrb[0].mxu0
    %2565 = vdwg.mxu0
    %s2566 = scalar_lea.vmem %s27, 16
    %v2567 = vld [vmem:[%s2566] sm:$0xf]
    %v2568 = vld [vmem:[%s2566 + $0x4] sm:$0xf]
    %v2569 = vld [vmem:[%s2566 + $0x8] sm:$0xf]
    %v2570 = vld [vmem:[%s2566 + $0xc] sm:$0xf]
    %s2571 = scalar_lea.vmem %s29, 1
    %v2572 = vld [vmem:[%s2571] sm:$0x1]
    %v2574 = vlaneseq
    %v2575 = vshrl.u32 %v2574, 7
    %v2576 = vsub.s32 0, %v2575
    %v2577 = vrot.slane %v2572, %v2576
    %v2583 = vunpack.c.l.b16 %v2567
    %v2584 = vunpack.c.l.b16 %v2568
    %v2585 = vunpack.c.l.b16 %v2569
    %v2586 = vunpack.c.l.b16 %v2570
    %v2587 = vpack.c.b16 %v2584, %v2583
    %v2588 = vpack.c.b16 %v2586, %v2585
    %2591 = vmatprep.subr.bf16.mxu0 0
    %2592 = vmatpush1.bf16.msra.mxu0 %v2587
    %2593 = vmatprep.subr.bf16.mxu0 0
    %2594 = vmatpush1.bf16.msra.mxu0 %v2588
    %2595 = vmatprep.subr.bf16.mxu0 0
    %2596 = vmatpush1.bf16.msra.mxu0 0
    %2597 = vmatprep.subr.bf16.mxu0 0
    %2598 = vmatpush1.bf16.msra.mxu0 0
    %2599 = vmatprep.subr.bf16.mxu0 0
    %2600 = vmatpush1.bf16.msra.mxu0 0
    %2601 = vmatprep.subr.bf16.mxu0 0
    %2602 = vmatpush1.bf16.msra.mxu0 0
    %2603 = vmatprep.subr.bf16.mxu0 0
    %2604 = vmatpush1.bf16.msra.mxu0 0
    %2605 = vmatprep.subr.bf16.mxu0 0
    %2606 = vmatpush1.bf16.msra.mxu0 0
    %2607 = vmatprep.subr.bf16.mxu0 0
    %2608 = vmatpush1.bf16.msra.mxu0 0
    %2609 = vmatprep.subr.bf16.mxu0 0
    %2610 = vmatpush1.bf16.msra.mxu0 0
    %2611 = vmatprep.subr.bf16.mxu0 0
    %2612 = vmatpush1.bf16.msra.mxu0 0
    %2613 = vmatprep.subr.bf16.mxu0 0
    %2614 = vmatpush1.bf16.msra.mxu0 0
    %2615 = vmatprep.subr.bf16.mxu0 0
    %2616 = vmatpush1.bf16.msra.mxu0 0
    %2617 = vmatprep.subr.bf16.mxu0 0
    %2618 = vmatpush1.bf16.msra.mxu0 0
    %2619 = vmatprep.subr.bf16.mxu0 0
    %2620 = vmatpush1.bf16.msra.mxu0 0
    %2621 = vmatprep.subr.bf16.mxu0 0
    %2622 = vmatpush1.bf16.msra.mxu0 0
    %2623 = vmatprep.mubr.bf16.mxu0 0
    %2624 = vmatmul.mubr.bf16.gmra.mrb[0].mxu0 %v2512
    %v2625 = vpop.f32.mrb[0].mxu0
    %v2626 = vadd.f32 %v2577, %v2625
    %v2627 = vpop.f32.mrb[0].mxu0
    %v2628 = vpop.f32.mrb[0].mxu0
    %v2629 = vadd.f32 %v2577, %v2628
    %v2630 = vpop.f32.mrb[0].mxu0
    %2631 = vmatprep.mubr.bf16.mxu0 0
    %2632 = vmatmul.mubr.bf16.gmra.mrb[0].mxu0 %v2515
    %v2633 = vpop.f32.mrb[0].mxu0
    %v2634 = vadd.f32 %v2577, %v2633
    %v2635 = vpop.f32.mrb[0].mxu0
    %v2636 = vpop.f32.mrb[0].mxu0
    %v2637 = vadd.f32 %v2577, %v2636
    %v2638 = vpop.f32.mrb[0].mxu0
    %2639 = vdwg.mxu0
    %s2640 = scalar_lea.vmem %s31, 16
    %v2641 = vld [vmem:[%s2640] sm:$0xf]
    %v2642 = vld [vmem:[%s2640 + $0x4] sm:$0xf]
    %v2643 = vld [vmem:[%s2640 + $0x8] sm:$0xf]
    %v2644 = vld [vmem:[%s2640 + $0xc] sm:$0xf]
    %s2645 = scalar_lea.vmem %s33, 1
    %v2646 = vld [vmem:[%s2645] sm:$0x1]
    %v2648 = vlaneseq
    %v2649 = vshrl.u32 %v2648, 7
    %v2650 = vsub.s32 0, %v2649
    %v2651 = vrot.slane %v2646, %v2650
    %v2657 = vunpack.c.l.b16 %v2641
    %v2658 = vunpack.c.l.b16 %v2642
    %v2659 = vunpack.c.l.b16 %v2643
    %v2660 = vunpack.c.l.b16 %v2644
    %v2661 = vpack.c.b16 %v2658, %v2657
    %v2662 = vpack.c.b16 %v2660, %v2659
    %2665 = vmatprep.subr.bf16.mxu0 0
    %2666 = vmatpush1.bf16.msra.mxu0 %v2661
    %2667 = vmatprep.subr.bf16.mxu0 0
    %2668 = vmatpush1.bf16.msra.mxu0 %v2662
    %2669 = vmatprep.subr.bf16.mxu0 0
    %2670 = vmatpush1.bf16.msra.mxu0 0
    %2671 = vmatprep.subr.bf16.mxu0 0
    %2672 = vmatpush1.bf16.msra.mxu0 0
    %2673 = vmatprep.subr.bf16.mxu0 0
    %2674 = vmatpush1.bf16.msra.mxu0 0
    %2675 = vmatprep.subr.bf16.mxu0 0
    %2676 = vmatpush1.bf16.msra.mxu0 0
    %2677 = vmatprep.subr.bf16.mxu0 0
    %2678 = vmatpush1.bf16.msra.mxu0 0
    %2679 = vmatprep.subr.bf16.mxu0 0
    %2680 = vmatpush1.bf16.msra.mxu0 0
    %2681 = vmatprep.subr.bf16.mxu0 0
    %2682 = vmatpush1.bf16.msra.mxu0 0
    %2683 = vmatprep.subr.bf16.mxu0 0
    %2684 = vmatpush1.bf16.msra.mxu0 0
    %2685 = vmatprep.subr.bf16.mxu0 0
    %2686 = vmatpush1.bf16.msra.mxu0 0
    %2687 = vmatprep.subr.bf16.mxu0 0
    %2688 = vmatpush1.bf16.msra.mxu0 0
    %2689 = vmatprep.subr.bf16.mxu0 0
    %2690 = vmatpush1.bf16.msra.mxu0 0
    %2691 = vmatprep.subr.bf16.mxu0 0
    %2692 = vmatpush1.bf16.msra.mxu0 0
    %2693 = vmatprep.subr.bf16.mxu0 0
    %2694 = vmatpush1.bf16.msra.mxu0 0
    %2695 = vmatprep.subr.bf16.mxu0 0
    %2696 = vmatpush1.bf16.msra.mxu0 0
    %2697 = vmatprep.mubr.bf16.mxu0 0
    %2698 = vmatmul.mubr.bf16.gmra.mrb[0].mxu0 %v2512
    %v2699 = vpop.f32.mrb[0].mxu0
    %v2700 = vadd.f32 %v2651, %v2699
    %v2701 = vpop.f32.mrb[0].mxu0
    %v2702 = vpop.f32.mrb[0].mxu0
    %v2703 = vadd.f32 %v2651, %v2702
    %v2704 = vpop.f32.mrb[0].mxu0
    %2705 = vmatprep.mubr.bf16.mxu0 0
    %2706 = vmatmul.mubr.bf16.gmra.mrb[0].mxu0 %v2515
    %v2707 = vpop.f32.mrb[0].mxu0
    %v2708 = vadd.f32 %v2651, %v2707
    %v2709 = vpop.f32.mrb[0].mxu0
    %v2710 = vpop.f32.mrb[0].mxu0
    %v2711 = vadd.f32 %v2651, %v2710
    %v2712 = vpop.f32.mrb[0].mxu0
    %2713 = vdwg.mxu0
    %v2714 = vpack.c.bf16 %v2555, %v2552
    %v2715 = vpack.c.bf16 %v2563, %v2560
    %v2716 = vpack.c.bf16 %v2629, %v2626
    %v2717 = vpack.c.bf16 %v2637, %v2634
    %v2719 = vsel %vm358, %v2714, 0
    %v2722 = vsel %vm358, %v2716, 0
    %2724 = vmatprep.subr.bf16.mxu0 0
    %2725 = vmatpush1.bf16.xpose.msra.mxu0 %v2722
    %2726 = vmatprep.subr.bf16.mxu0 0
    %2727 = vmatpush1.bf16.xpose.msra.mxu0 0
    %2728 = vmatprep.subr.bf16.mxu0 0
    %2729 = vmatpush1.bf16.xpose.msra.mxu0 0
    %2730 = vmatprep.subr.bf16.mxu0 0
    %2731 = vmatpush1.bf16.xpose.msra.mxu0 0
    %2732 = vmatprep.subr.bf16.mxu0 0
    %2733 = vmatpush1.bf16.xpose.msra.mxu0 0
    %2734 = vmatprep.subr.bf16.mxu0 0
    %2735 = vmatpush1.bf16.xpose.msra.mxu0 0
    %2736 = vmatprep.subr.bf16.mxu0 0
    %2737 = vmatpush1.bf16.xpose.msra.mxu0 0
    %2738 = vmatprep.subr.bf16.mxu0 0
    %2739 = vmatpush1.bf16.xpose.msra.mxu0 0
    %2740 = vmatprep.subr.bf16.mxu0 0
    %2741 = vmatpush1.bf16.xpose.msra.mxu0 0
    %2742 = vmatprep.subr.bf16.mxu0 0
    %2743 = vmatpush1.bf16.xpose.msra.mxu0 0
    %2744 = vmatprep.subr.bf16.mxu0 0
    %2745 = vmatpush1.bf16.xpose.msra.mxu0 0
    %2746 = vmatprep.subr.bf16.mxu0 0
    %2747 = vmatpush1.bf16.xpose.msra.mxu0 0
    %2748 = vmatprep.subr.bf16.mxu0 0
    %2749 = vmatpush1.bf16.xpose.msra.mxu0 0
    %2750 = vmatprep.subr.bf16.mxu0 0
    %2751 = vmatpush1.bf16.xpose.msra.mxu0 0
    %2752 = vmatprep.subr.bf16.mxu0 0
    %2753 = vmatpush1.bf16.xpose.msra.mxu0 0
    %2754 = vmatprep.subr.bf16.mxu0 0
    %2755 = vmatpush1.bf16.xpose.msra.mxu0 0
    %2756 = vmatprep.mubr.bf16.mxu0 0
    %2757 = vmatmul.mubr.bf16.gmra.mrb[0].mxu0 %v2719
    %v2758 = vpop.f32.mrb[0].mxu0
    %v2759 = vadd.f32 0.0, %v2758
    %v2760 = vpop.f32.mrb[0].mxu0
    %v2761 = vpop.f32.mrb[0].mxu0
    %v2762 = vadd.f32 0.0, %v2761
    %v2763 = vpop.f32.mrb[0].mxu0
    %2764 = vdwg.mxu0
    %v2766 = vsel %vm358, %v2715, 0
    %v2769 = vsel %vm358, %v2717, 0
    %2771 = vmatprep.subr.bf16.mxu0 0
    %2772 = vmatpush1.bf16.xpose.msra.mxu0 %v2769
    %2773 = vmatprep.subr.bf16.mxu0 0
    %2774 = vmatpush1.bf16.xpose.msra.mxu0 0
    %2775 = vmatprep.subr.bf16.mxu0 0
    %2776 = vmatpush1.bf16.xpose.msra.mxu0 0
    %2777 = vmatprep.subr.bf16.mxu0 0
    %2778 = vmatpush1.bf16.xpose.msra.mxu0 0
    %2779 = vmatprep.subr.bf16.mxu0 0
    %2780 = vmatpush1.bf16.xpose.msra.mxu0 0
    %2781 = vmatprep.subr.bf16.mxu0 0
    %2782 = vmatpush1.bf16.xpose.msra.mxu0 0
    %2783 = vmatprep.subr.bf16.mxu0 0
    %2784 = vmatpush1.bf16.xpose.msra.mxu0 0
    %2785 = vmatprep.subr.bf16.mxu0 0
    %2786 = vmatpush1.bf16.xpose.msra.mxu0 0
    %2787 = vmatprep.subr.bf16.mxu0 0
    %2788 = vmatpush1.bf16.xpose.msra.mxu0 0
    %2789 = vmatprep.subr.bf16.mxu0 0
    %2790 = vmatpush1.bf16.xpose.msra.mxu0 0
    %2791 = vmatprep.subr.bf16.mxu0 0
    %2792 = vmatpush1.bf16.xpose.msra.mxu0 0
    %2793 = vmatprep.subr.bf16.mxu0 0
    %2794 = vmatpush1.bf16.xpose.msra.mxu0 0
    %2795 = vmatprep.subr.bf16.mxu0 0
    %2796 = vmatpush1.bf16.xpose.msra.mxu0 0
    %2797 = vmatprep.subr.bf16.mxu0 0
    %2798 = vmatpush1.bf16.xpose.msra.mxu0 0
    %2799 = vmatprep.subr.bf16.mxu0 0
    %2800 = vmatpush1.bf16.xpose.msra.mxu0 0
    %2801 = vmatprep.subr.bf16.mxu0 0
    %2802 = vmatpush1.bf16.xpose.msra.mxu0 0
    %2803 = vmatprep.mubr.bf16.mxu0 0
    %2804 = vmatmul.mubr.bf16.gmra.mrb[0].mxu0 %v2766
    %v2805 = vpop.f32.mrb[0].mxu0
    %v2806 = vadd.f32 0.0, %v2805
    %v2807 = vpop.f32.mrb[0].mxu0
    %v2808 = vpop.f32.mrb[0].mxu0
    %v2809 = vadd.f32 0.0, %v2808
    %v2810 = vpop.f32.mrb[0].mxu0
    %2811 = vdwg.mxu0
    %v2812 = vsel %vm368, %v2759, -inf
    %2813 = vmax.xlane.f32.xlu0 %v2812
    %v2814 = vpop.xlane.xlu0 %2813
    %v2815 = vsel %vm368, %v2762, -inf
    %2816 = vmax.xlane.f32.xlu0 %v2815
    %v2817 = vpop.xlane.xlu0 %2816
    %v2818 = vsel %vm368, %v2806, -inf
    %2819 = vmax.xlane.f32.xlu0 %v2818
    %v2820 = vpop.xlane.xlu0 %2819
    %v2821 = vsel %vm368, %v2809, -inf
    %2822 = vmax.xlane.f32.xlu0 %v2821
    %v2823 = vpop.xlane.xlu0 %2822
    %v2824 = vsub.f32 %v2759, %v2814
    %v2825 = vsub.f32 %v2762, %v2817
    %v2826 = vsub.f32 %v2806, %v2820
    %v2827 = vsub.f32 %v2809, %v2823
    %v2828 = vmul.f32 %v2824, 1.442695
    %v2829 = vpow.pop %v2828
    %v2830 = vmul.f32 %v2825, 1.442695
    %v2831 = vpow.pop %v2830
    %v2832 = vmul.f32 %v2826, 1.442695
    %v2833 = vpow.pop %v2832
    %v2834 = vmul.f32 %v2827, 1.442695
    %v2835 = vpow.pop %v2834
    %v2836 = vsel %vm368, %v2829, 0.0
    %2837 = vadd.xlane.f32.xlu0 %v2836
    %v2838 = vpop.xlane.xlu0 %2837
    %v2839 = vsel %vm368, %v2831, 0.0
    %2840 = vadd.xlane.f32.xlu0 %v2839
    %v2841 = vpop.xlane.xlu0 %2840
    %v2842 = vsel %vm368, %v2833, 0.0
    %2843 = vadd.xlane.f32.xlu0 %v2842
    %v2844 = vpop.xlane.xlu0 %2843
    %v2845 = vsel %vm368, %v2835, 0.0
    %2846 = vadd.xlane.f32.xlu0 %v2845
    %v2847 = vpop.xlane.xlu0 %2846
    %v2848 = vrcp.pop %v2838
    %v2849 = vrcp.pop %v2841
    %v2850 = vrcp.pop %v2844
    %v2851 = vrcp.pop %v2847
    %v2852 = vmul.f32 %v2829, %v2848
    %v2853 = vmul.f32 %v2831, %v2849
    %v2854 = vmul.f32 %v2833, %v2850
    %v2855 = vmul.f32 %v2835, %v2851
    %v2856 = vpack.c.bf16 %v2853, %v2852
    %v2857 = vpack.c.bf16 %v2855, %v2854
    %v2858 = vpack.c.bf16 %v2703, %v2700
    %v2859 = vpack.c.bf16 %v2711, %v2708
    %v2861 = vsel %vm368, %v2856, 0
    %2863 = vmatprep.subr.bf16.mxu0 0
    %2864 = vmatpush1.bf16.msra.mxu0 %v2858
    %2865 = vmatprep.subr.bf16.mxu0 0
    %2866 = vmatpush1.bf16.msra.mxu0 0
    %2867 = vmatprep.subr.bf16.mxu0 0
    %2868 = vmatpush1.bf16.msra.mxu0 0
    %2869 = vmatprep.subr.bf16.mxu0 0
    %2870 = vmatpush1.bf16.msra.mxu0 0
    %2871 = vmatprep.subr.bf16.mxu0 0
    %2872 = vmatpush1.bf16.msra.mxu0 0
    %2873 = vmatprep.subr.bf16.mxu0 0
    %2874 = vmatpush1.bf16.msra.mxu0 0
    %2875 = vmatprep.subr.bf16.mxu0 0
    %2876 = vmatpush1.bf16.msra.mxu0 0
    %2877 = vmatprep.subr.bf16.mxu0 0
    %2878 = vmatpush1.bf16.msra.mxu0 0
    %2879 = vmatprep.subr.bf16.mxu0 0
    %2880 = vmatpush1.bf16.msra.mxu0 0
    %2881 = vmatprep.subr.bf16.mxu0 0
    %2882 = vmatpush1.bf16.msra.mxu0 0
    %2883 = vmatprep.subr.bf16.mxu0 0
    %2884 = vmatpush1.bf16.msra.mxu0 0
    %2885 = vmatprep.subr.bf16.mxu0 0
    %2886 = vmatpush1.bf16.msra.mxu0 0
    %2887 = vmatprep.subr.bf16.mxu0 0
    %2888 = vmatpush1.bf16.msra.mxu0 0
    %2889 = vmatprep.subr.bf16.mxu0 0
    %2890 = vmatpush1.bf16.msra.mxu0 0
    %2891 = vmatprep.subr.bf16.mxu0 0
    %2892 = vmatpush1.bf16.msra.mxu0 0
    %2893 = vmatprep.subr.bf16.mxu0 0
    %2894 = vmatpush1.bf16.msra.mxu0 0
    %2895 = vmatprep.mubr.bf16.mxu0 0
    %2896 = vmatmul.mubr.bf16.gmra.mrb[0].mxu0 %v2861
    %v2897 = vpop.f32.mrb[0].mxu0
    %v2898 = vadd.f32 0.0, %v2897
    %v2899 = vpop.f32.mrb[0].mxu0
    %v2900 = vpop.f32.mrb[0].mxu0
    %v2901 = vadd.f32 0.0, %v2900
    %v2902 = vpop.f32.mrb[0].mxu0
    %2903 = vdwg.mxu0
    %v2905 = vsel %vm368, %v2857, 0
    %2907 = vmatprep.subr.bf16.mxu0 0
    %2908 = vmatpush1.bf16.msra.mxu0 %v2859
    %2909 = vmatprep.subr.bf16.mxu0 0
    %2910 = vmatpush1.bf16.msra.mxu0 0
    %2911 = vmatprep.subr.bf16.mxu0 0
    %2912 = vmatpush1.bf16.msra.mxu0 0
    %2913 = vmatprep.subr.bf16.mxu0 0
    %2914 = vmatpush1.bf16.msra.mxu0 0
    %2915 = vmatprep.subr.bf16.mxu0 0
    %2916 = vmatpush1.bf16.msra.mxu0 0
    %2917 = vmatprep.subr.bf16.mxu0 0
    %2918 = vmatpush1.bf16.msra.mxu0 0
    %2919 = vmatprep.subr.bf16.mxu0 0
    %2920 = vmatpush1.bf16.msra.mxu0 0
    %2921 = vmatprep.subr.bf16.mxu0 0
    %2922 = vmatpush1.bf16.msra.mxu0 0
    %2923 = vmatprep.subr.bf16.mxu0 0
    %2924 = vmatpush1.bf16.msra.mxu0 0
    %2925 = vmatprep.subr.bf16.mxu0 0
    %2926 = vmatpush1.bf16.msra.mxu0 0
    %2927 = vmatprep.subr.bf16.mxu0 0
    %2928 = vmatpush1.bf16.msra.mxu0 0
    %2929 = vmatprep.subr.bf16.mxu0 0
    %2930 = vmatpush1.bf16.msra.mxu0 0
    %2931 = vmatprep.subr.bf16.mxu0 0
    %2932 = vmatpush1.bf16.msra.mxu0 0
    %2933 = vmatprep.subr.bf16.mxu0 0
    %2934 = vmatpush1.bf16.msra.mxu0 0
    %2935 = vmatprep.subr.bf16.mxu0 0
    %2936 = vmatpush1.bf16.msra.mxu0 0
    %2937 = vmatprep.subr.bf16.mxu0 0
    %2938 = vmatpush1.bf16.msra.mxu0 0
    %2939 = vmatprep.mubr.bf16.mxu0 0
    %2940 = vmatmul.mubr.bf16.gmra.mrb[0].mxu0 %v2905
    %v2941 = vpop.f32.mrb[0].mxu0
    %v2942 = vadd.f32 0.0, %v2941
    %v2943 = vpop.f32.mrb[0].mxu0
    %v2944 = vpop.f32.mrb[0].mxu0
    %v2945 = vadd.f32 0.0, %v2944
    %v2946 = vpop.f32.mrb[0].mxu0
    %2947 = vdwg.mxu0
    %2949 = vrot.lane.b32.xlu0 %v2714, 120
    %v2950 = vpop.permute.xlu0 %2949
    %2952 = vrot.lane.b32.xlu0 %v2716, 120
    %v2953 = vpop.permute.xlu0 %2952
    %v2955 = vsel %vm358, %v2950, 0
    %v2958 = vsel %vm358, %v2953, 0
    %2960 = vmatprep.subr.bf16.mxu0 0
    %2961 = vmatpush1.bf16.xpose.msra.mxu0 %v2958
    %2962 = vmatprep.subr.bf16.mxu0 0
    %2963 = vmatpush1.bf16.xpose.msra.mxu0 0
    %2964 = vmatprep.subr.bf16.mxu0 0
    %2965 = vmatpush1.bf16.xpose.msra.mxu0 0
    %2966 = vmatprep.subr.bf16.mxu0 0
    %2967 = vmatpush1.bf16.xpose.msra.mxu0 0
    %2968 = vmatprep.subr.bf16.mxu0 0
    %2969 = vmatpush1.bf16.xpose.msra.mxu0 0
    %2970 = vmatprep.subr.bf16.mxu0 0
    %2971 = vmatpush1.bf16.xpose.msra.mxu0 0
    %2972 = vmatprep.subr.bf16.mxu0 0
    %2973 = vmatpush1.bf16.xpose.msra.mxu0 0
    %2974 = vmatprep.subr.bf16.mxu0 0
    %2975 = vmatpush1.bf16.xpose.msra.mxu0 0
    %2976 = vmatprep.subr.bf16.mxu0 0
    %2977 = vmatpush1.bf16.xpose.msra.mxu0 0
    %2978 = vmatprep.subr.bf16.mxu0 0
    %2979 = vmatpush1.bf16.xpose.msra.mxu0 0
    %2980 = vmatprep.subr.bf16.mxu0 0
    %2981 = vmatpush1.bf16.xpose.msra.mxu0 0
    %2982 = vmatprep.subr.bf16.mxu0 0
    %2983 = vmatpush1.bf16.xpose.msra.mxu0 0
    %2984 = vmatprep.subr.bf16.mxu0 0
    %2985 = vmatpush1.bf16.xpose.msra.mxu0 0
    %2986 = vmatprep.subr.bf16.mxu0 0
    %2987 = vmatpush1.bf16.xpose.msra.mxu0 0
    %2988 = vmatprep.subr.bf16.mxu0 0
    %2989 = vmatpush1.bf16.xpose.msra.mxu0 0
    %2990 = vmatprep.subr.bf16.mxu0 0
    %2991 = vmatpush1.bf16.xpose.msra.mxu0 0
    %2992 = vmatprep.mubr.bf16.mxu0 0
    %2993 = vmatmul.mubr.bf16.gmra.mrb[0].mxu0 %v2955
    %v2994 = vpop.f32.mrb[0].mxu0
    %v2995 = vadd.f32 0.0, %v2994
    %v2996 = vpop.f32.mrb[0].mxu0
    %v2997 = vpop.f32.mrb[0].mxu0
    %v2998 = vadd.f32 0.0, %v2997
    %v2999 = vpop.f32.mrb[0].mxu0
    %3000 = vdwg.mxu0
    %3002 = vrot.lane.b32.xlu0 %v2715, 120
    %v3003 = vpop.permute.xlu0 %3002
    %3005 = vrot.lane.b32.xlu0 %v2717, 120
    %v3006 = vpop.permute.xlu0 %3005
    %v3008 = vsel %vm358, %v3003, 0
    %v3011 = vsel %vm358, %v3006, 0
    %3013 = vmatprep.subr.bf16.mxu0 0
    %3014 = vmatpush1.bf16.xpose.msra.mxu0 %v3011
    %3015 = vmatprep.subr.bf16.mxu0 0
    %3016 = vmatpush1.bf16.xpose.msra.mxu0 0
    %3017 = vmatprep.subr.bf16.mxu0 0
    %3018 = vmatpush1.bf16.xpose.msra.mxu0 0
    %3019 = vmatprep.subr.bf16.mxu0 0
    %3020 = vmatpush1.bf16.xpose.msra.mxu0 0
    %3021 = vmatprep.subr.bf16.mxu0 0
    %3022 = vmatpush1.bf16.xpose.msra.mxu0 0
    %3023 = vmatprep.subr.bf16.mxu0 0
    %3024 = vmatpush1.bf16.xpose.msra.mxu0 0
    %3025 = vmatprep.subr.bf16.mxu0 0
    %3026 = vmatpush1.bf16.xpose.msra.mxu0 0
    %3027 = vmatprep.subr.bf16.mxu0 0
    %3028 = vmatpush1.bf16.xpose.msra.mxu0 0
    %3029 = vmatprep.subr.bf16.mxu0 0
    %3030 = vmatpush1.bf16.xpose.msra.mxu0 0
    %3031 = vmatprep.subr.bf16.mxu0 0
    %3032 = vmatpush1.bf16.xpose.msra.mxu0 0
    %3033 = vmatprep.subr.bf16.mxu0 0
    %3034 = vmatpush1.bf16.xpose.msra.mxu0 0
    %3035 = vmatprep.subr.bf16.mxu0 0
    %3036 = vmatpush1.bf16.xpose.msra.mxu0 0
    %3037 = vmatprep.subr.bf16.mxu0 0
    %3038 = vmatpush1.bf16.xpose.msra.mxu0 0
    %3039 = vmatprep.subr.bf16.mxu0 0
    %3040 = vmatpush1.bf16.xpose.msra.mxu0 0
    %3041 = vmatprep.subr.bf16.mxu0 0
    %3042 = vmatpush1.bf16.xpose.msra.mxu0 0
    %3043 = vmatprep.subr.bf16.mxu0 0
    %3044 = vmatpush1.bf16.xpose.msra.mxu0 0
    %3045 = vmatprep.mubr.bf16.mxu0 0
    %3046 = vmatmul.mubr.bf16.gmra.mrb[0].mxu0 %v3008
    %v3047 = vpop.f32.mrb[0].mxu0
    %v3048 = vadd.f32 0.0, %v3047
    %v3049 = vpop.f32.mrb[0].mxu0
    %v3050 = vpop.f32.mrb[0].mxu0
    %v3051 = vadd.f32 0.0, %v3050
    %v3052 = vpop.f32.mrb[0].mxu0
    %3053 = vdwg.mxu0
    %v3054 = vsel %vm368, %v2995, -inf
    %3055 = vmax.xlane.f32.xlu0 %v3054
    %v3056 = vpop.xlane.xlu0 %3055
    %v3057 = vsel %vm368, %v2998, -inf
    %3058 = vmax.xlane.f32.xlu0 %v3057
    %v3059 = vpop.xlane.xlu0 %3058
    %v3060 = vsel %vm368, %v3048, -inf
    %3061 = vmax.xlane.f32.xlu0 %v3060
    %v3062 = vpop.xlane.xlu0 %3061
    %v3063 = vsel %vm368, %v3051, -inf
    %3064 = vmax.xlane.f32.xlu0 %v3063
    %v3065 = vpop.xlane.xlu0 %3064
    %v3066 = vsub.f32 %v2995, %v3056
    %v3067 = vsub.f32 %v2998, %v3059
    %v3068 = vsub.f32 %v3048, %v3062
    %v3069 = vsub.f32 %v3051, %v3065
    %v3070 = vmul.f32 %v3066, 1.442695
    %v3071 = vpow.pop %v3070
    %v3072 = vmul.f32 %v3067, 1.442695
    %v3073 = vpow.pop %v3072
    %v3074 = vmul.f32 %v3068, 1.442695
    %v3075 = vpow.pop %v3074
    %v3076 = vmul.f32 %v3069, 1.442695
    %v3077 = vpow.pop %v3076
    %v3078 = vsel %vm368, %v3071, 0.0
    %3079 = vadd.xlane.f32.xlu0 %v3078
    %v3080 = vpop.xlane.xlu0 %3079
    %v3081 = vsel %vm368, %v3073, 0.0
    %3082 = vadd.xlane.f32.xlu0 %v3081
    %v3083 = vpop.xlane.xlu0 %3082
    %v3084 = vsel %vm368, %v3075, 0.0
    %3085 = vadd.xlane.f32.xlu0 %v3084
    %v3086 = vpop.xlane.xlu0 %3085
    %v3087 = vsel %vm368, %v3077, 0.0
    %3088 = vadd.xlane.f32.xlu0 %v3087
    %v3089 = vpop.xlane.xlu0 %3088
    %v3090 = vrcp.pop %v3080
    %v3091 = vrcp.pop %v3083
    %v3092 = vrcp.pop %v3086
    %v3093 = vrcp.pop %v3089
    %v3094 = vmul.f32 %v3071, %v3090
    %v3095 = vmul.f32 %v3073, %v3091
    %v3096 = vmul.f32 %v3075, %v3092
    %v3097 = vmul.f32 %v3077, %v3093
    %v3098 = vpack.c.bf16 %v3095, %v3094
    %v3099 = vpack.c.bf16 %v3097, %v3096
    %3101 = vrot.lane.b32.xlu0 %v2858, 120
    %v3102 = vpop.permute.xlu0 %3101
    %v3105 = vsel %vm368, %v3098, 0
    %3107 = vmatprep.subr.bf16.mxu0 0
    %3108 = vmatpush1.bf16.msra.mxu0 %v3102
    %3109 = vmatprep.subr.bf16.mxu0 0
    %3110 = vmatpush1.bf16.msra.mxu0 0
    %3111 = vmatprep.subr.bf16.mxu0 0
    %3112 = vmatpush1.bf16.msra.mxu0 0
    %3113 = vmatprep.subr.bf16.mxu0 0
    %3114 = vmatpush1.bf16.msra.mxu0 0
    %3115 = vmatprep.subr.bf16.mxu0 0
    %3116 = vmatpush1.bf16.msra.mxu0 0
    %3117 = vmatprep.subr.bf16.mxu0 0
    %3118 = vmatpush1.bf16.msra.mxu0 0
    %3119 = vmatprep.subr.bf16.mxu0 0
    %3120 = vmatpush1.bf16.msra.mxu0 0
    %3121 = vmatprep.subr.bf16.mxu0 0
    %3122 = vmatpush1.bf16.msra.mxu0 0
    %3123 = vmatprep.subr.bf16.mxu0 0
    %3124 = vmatpush1.bf16.msra.mxu0 0
    %3125 = vmatprep.subr.bf16.mxu0 0
    %3126 = vmatpush1.bf16.msra.mxu0 0
    %3127 = vmatprep.subr.bf16.mxu0 0
    %3128 = vmatpush1.bf16.msra.mxu0 0
    %3129 = vmatprep.subr.bf16.mxu0 0
    %3130 = vmatpush1.bf16.msra.mxu0 0
    %3131 = vmatprep.subr.bf16.mxu0 0
    %3132 = vmatpush1.bf16.msra.mxu0 0
    %3133 = vmatprep.subr.bf16.mxu0 0
    %3134 = vmatpush1.bf16.msra.mxu0 0
    %3135 = vmatprep.subr.bf16.mxu0 0
    %3136 = vmatpush1.bf16.msra.mxu0 0
    %3137 = vmatprep.subr.bf16.mxu0 0
    %3138 = vmatpush1.bf16.msra.mxu0 0
    %3139 = vmatprep.mubr.bf16.mxu0 0
    %3140 = vmatmul.mubr.bf16.gmra.mrb[0].mxu0 %v3105
    %v3141 = vpop.f32.mrb[0].mxu0
    %v3142 = vadd.f32 0.0, %v3141
    %v3143 = vpop.f32.mrb[0].mxu0
    %v3144 = vpop.f32.mrb[0].mxu0
    %v3145 = vadd.f32 0.0, %v3144
    %v3146 = vpop.f32.mrb[0].mxu0
    %3147 = vdwg.mxu0
    %3149 = vrot.lane.b32.xlu0 %v2859, 120
    %v3150 = vpop.permute.xlu0 %3149
    %v3153 = vsel %vm368, %v3099, 0
    %3155 = vmatprep.subr.bf16.mxu0 0
    %3156 = vmatpush1.bf16.msra.mxu0 %v3150
    %3157 = vmatprep.subr.bf16.mxu0 0
    %3158 = vmatpush1.bf16.msra.mxu0 0
    %3159 = vmatprep.subr.bf16.mxu0 0
    %3160 = vmatpush1.bf16.msra.mxu0 0
    %3161 = vmatprep.subr.bf16.mxu0 0
    %3162 = vmatpush1.bf16.msra.mxu0 0
    %3163 = vmatprep.subr.bf16.mxu0 0
    %3164 = vmatpush1.bf16.msra.mxu0 0
    %3165 = vmatprep.subr.bf16.mxu0 0
    %3166 = vmatpush1.bf16.msra.mxu0 0
    %3167 = vmatprep.subr.bf16.mxu0 0
    %3168 = vmatpush1.bf16.msra.mxu0 0
    %3169 = vmatprep.subr.bf16.mxu0 0
    %3170 = vmatpush1.bf16.msra.mxu0 0
    %3171 = vmatprep.subr.bf16.mxu0 0
    %3172 = vmatpush1.bf16.msra.mxu0 0
    %3173 = vmatprep.subr.bf16.mxu0 0
    %3174 = vmatpush1.bf16.msra.mxu0 0
    %3175 = vmatprep.subr.bf16.mxu0 0
    %3176 = vmatpush1.bf16.msra.mxu0 0
    %3177 = vmatprep.subr.bf16.mxu0 0
    %3178 = vmatpush1.bf16.msra.mxu0 0
    %3179 = vmatprep.subr.bf16.mxu0 0
    %3180 = vmatpush1.bf16.msra.mxu0 0
    %3181 = vmatprep.subr.bf16.mxu0 0
    %3182 = vmatpush1.bf16.msra.mxu0 0
    %3183 = vmatprep.subr.bf16.mxu0 0
    %3184 = vmatpush1.bf16.msra.mxu0 0
    %3185 = vmatprep.subr.bf16.mxu0 0
    %3186 = vmatpush1.bf16.msra.mxu0 0
    %3187 = vmatprep.mubr.bf16.mxu0 0
    %3188 = vmatmul.mubr.bf16.gmra.mrb[0].mxu0 %v3153
    %v3189 = vpop.f32.mrb[0].mxu0
    %v3190 = vadd.f32 0.0, %v3189
    %v3191 = vpop.f32.mrb[0].mxu0
    %v3192 = vpop.f32.mrb[0].mxu0
    %v3193 = vadd.f32 0.0, %v3192
    %v3194 = vpop.f32.mrb[0].mxu0
    %3195 = vdwg.mxu0
    %3196 = vrot.lane.b32.xlu0 %v2714, 112
    %v3197 = vpop.permute.xlu0 %3196
    %3198 = vrot.lane.b32.xlu0 %v2716, 112
    %v3199 = vpop.permute.xlu0 %3198
    %v3201 = vsel %vm358, %v3197, 0
    %v3204 = vsel %vm358, %v3199, 0
    %3206 = vmatprep.subr.bf16.mxu0 0
    %3207 = vmatpush1.bf16.xpose.msra.mxu0 %v3204
    %3208 = vmatprep.subr.bf16.mxu0 0
    %3209 = vmatpush1.bf16.xpose.msra.mxu0 0
    %3210 = vmatprep.subr.bf16.mxu0 0
    %3211 = vmatpush1.bf16.xpose.msra.mxu0 0
    %3212 = vmatprep.subr.bf16.mxu0 0
    %3213 = vmatpush1.bf16.xpose.msra.mxu0 0
    %3214 = vmatprep.subr.bf16.mxu0 0
    %3215 = vmatpush1.bf16.xpose.msra.mxu0 0
    %3216 = vmatprep.subr.bf16.mxu0 0
    %3217 = vmatpush1.bf16.xpose.msra.mxu0 0
    %3218 = vmatprep.subr.bf16.mxu0 0
    %3219 = vmatpush1.bf16.xpose.msra.mxu0 0
    %3220 = vmatprep.subr.bf16.mxu0 0
    %3221 = vmatpush1.bf16.xpose.msra.mxu0 0
    %3222 = vmatprep.subr.bf16.mxu0 0
    %3223 = vmatpush1.bf16.xpose.msra.mxu0 0
    %3224 = vmatprep.subr.bf16.mxu0 0
    %3225 = vmatpush1.bf16.xpose.msra.mxu0 0
    %3226 = vmatprep.subr.bf16.mxu0 0
    %3227 = vmatpush1.bf16.xpose.msra.mxu0 0
    %3228 = vmatprep.subr.bf16.mxu0 0
    %3229 = vmatpush1.bf16.xpose.msra.mxu0 0
    %3230 = vmatprep.subr.bf16.mxu0 0
    %3231 = vmatpush1.bf16.xpose.msra.mxu0 0
    %3232 = vmatprep.subr.bf16.mxu0 0
    %3233 = vmatpush1.bf16.xpose.msra.mxu0 0
    %3234 = vmatprep.subr.bf16.mxu0 0
    %3235 = vmatpush1.bf16.xpose.msra.mxu0 0
    %3236 = vmatprep.subr.bf16.mxu0 0
    %3237 = vmatpush1.bf16.xpose.msra.mxu0 0
    %3238 = vmatprep.mubr.bf16.mxu0 0
    %3239 = vmatmul.mubr.bf16.gmra.mrb[0].mxu0 %v3201
    %v3240 = vpop.f32.mrb[0].mxu0
    %v3241 = vadd.f32 0.0, %v3240
    %v3242 = vpop.f32.mrb[0].mxu0
    %v3243 = vpop.f32.mrb[0].mxu0
    %v3244 = vadd.f32 0.0, %v3243
    %v3245 = vpop.f32.mrb[0].mxu0
    %3246 = vdwg.mxu0
    %3247 = vrot.lane.b32.xlu0 %v2715, 112
    %v3248 = vpop.permute.xlu0 %3247
    %3249 = vrot.lane.b32.xlu0 %v2717, 112
    %v3250 = vpop.permute.xlu0 %3249
    %v3252 = vsel %vm358, %v3248, 0
    %v3255 = vsel %vm358, %v3250, 0
    %3257 = vmatprep.subr.bf16.mxu0 0
    %3258 = vmatpush1.bf16.xpose.msra.mxu0 %v3255
    %3259 = vmatprep.subr.bf16.mxu0 0
    %3260 = vmatpush1.bf16.xpose.msra.mxu0 0
    %3261 = vmatprep.subr.bf16.mxu0 0
    %3262 = vmatpush1.bf16.xpose.msra.mxu0 0
    %3263 = vmatprep.subr.bf16.mxu0 0
    %3264 = vmatpush1.bf16.xpose.msra.mxu0 0
    %3265 = vmatprep.subr.bf16.mxu0 0
    %3266 = vmatpush1.bf16.xpose.msra.mxu0 0
    %3267 = vmatprep.subr.bf16.mxu0 0
    %3268 = vmatpush1.bf16.xpose.msra.mxu0 0
    %3269 = vmatprep.subr.bf16.mxu0 0
    %3270 = vmatpush1.bf16.xpose.msra.mxu0 0
    %3271 = vmatprep.subr.bf16.mxu0 0
    %3272 = vmatpush1.bf16.xpose.msra.mxu0 0
    %3273 = vmatprep.subr.bf16.mxu0 0
    %3274 = vmatpush1.bf16.xpose.msra.mxu0 0
    %3275 = vmatprep.subr.bf16.mxu0 0
    %3276 = vmatpush1.bf16.xpose.msra.mxu0 0
    %3277 = vmatprep.subr.bf16.mxu0 0
    %3278 = vmatpush1.bf16.xpose.msra.mxu0 0
    %3279 = vmatprep.subr.bf16.mxu0 0
    %3280 = vmatpush1.bf16.xpose.msra.mxu0 0
    %3281 = vmatprep.subr.bf16.mxu0 0
    %3282 = vmatpush1.bf16.xpose.msra.mxu0 0
    %3283 = vmatprep.subr.bf16.mxu0 0
    %3284 = vmatpush1.bf16.xpose.msra.mxu0 0
    %3285 = vmatprep.subr.bf16.mxu0 0
    %3286 = vmatpush1.bf16.xpose.msra.mxu0 0
    %3287 = vmatprep.subr.bf16.mxu0 0
    %3288 = vmatpush1.bf16.xpose.msra.mxu0 0
    %3289 = vmatprep.mubr.bf16.mxu0 0
    %3290 = vmatmul.mubr.bf16.gmra.mrb[0].mxu0 %v3252
    %v3291 = vpop.f32.mrb[0].mxu0
    %v3292 = vadd.f32 0.0, %v3291
    %v3293 = vpop.f32.mrb[0].mxu0
    %v3294 = vpop.f32.mrb[0].mxu0
    %v3295 = vadd.f32 0.0, %v3294
    %v3296 = vpop.f32.mrb[0].mxu0
    %3297 = vdwg.mxu0
    %v3298 = vsel %vm368, %v3241, -inf
    %3299 = vmax.xlane.f32.xlu0 %v3298
    %v3300 = vpop.xlane.xlu0 %3299
    %v3301 = vsel %vm368, %v3244, -inf
    %3302 = vmax.xlane.f32.xlu0 %v3301
    %v3303 = vpop.xlane.xlu0 %3302
    %v3304 = vsel %vm368, %v3292, -inf
    %3305 = vmax.xlane.f32.xlu0 %v3304
    %v3306 = vpop.xlane.xlu0 %3305
    %v3307 = vsel %vm368, %v3295, -inf
    %3308 = vmax.xlane.f32.xlu0 %v3307
    %v3309 = vpop.xlane.xlu0 %3308
    %v3310 = vsub.f32 %v3241, %v3300
    %v3311 = vsub.f32 %v3244, %v3303
    %v3312 = vsub.f32 %v3292, %v3306
    %v3313 = vsub.f32 %v3295, %v3309
    %v3314 = vmul.f32 %v3310, 1.442695
    %v3315 = vpow.pop %v3314
    %v3316 = vmul.f32 %v3311, 1.442695
    %v3317 = vpow.pop %v3316
    %v3318 = vmul.f32 %v3312, 1.442695
    %v3319 = vpow.pop %v3318
    %v3320 = vmul.f32 %v3313, 1.442695
    %v3321 = vpow.pop %v3320
    %v3322 = vsel %vm368, %v3315, 0.0
    %3323 = vadd.xlane.f32.xlu0 %v3322
    %v3324 = vpop.xlane.xlu0 %3323
    %v3325 = vsel %vm368, %v3317, 0.0
    %3326 = vadd.xlane.f32.xlu0 %v3325
    %v3327 = vpop.xlane.xlu0 %3326
    %v3328 = vsel %vm368, %v3319, 0.0
    %3329 = vadd.xlane.f32.xlu0 %v3328
    %v3330 = vpop.xlane.xlu0 %3329
    %v3331 = vsel %vm368, %v3321, 0.0
    %3332 = vadd.xlane.f32.xlu0 %v3331
    %v3333 = vpop.xlane.xlu0 %3332
    %v3334 = vrcp.pop %v3324
    %v3335 = vrcp.pop %v3327
    %v3336 = vrcp.pop %v3330
    %v3337 = vrcp.pop %v3333
    %v3338 = vmul.f32 %v3315, %v3334
    %v3339 = vmul.f32 %v3317, %v3335
    %v3340 = vmul.f32 %v3319, %v3336
    %v3341 = vmul.f32 %v3321, %v3337
    %v3342 = vpack.c.bf16 %v3339, %v3338
    %v3343 = vpack.c.bf16 %v3341, %v3340
    %3344 = vrot.lane.b32.xlu0 %v2858, 112
    %v3345 = vpop.permute.xlu0 %3344
    %v3348 = vsel %vm368, %v3342, 0
    %3350 = vmatprep.subr.bf16.mxu0 0
    %3351 = vmatpush1.bf16.msra.mxu0 %v3345
    %3352 = vmatprep.subr.bf16.mxu0 0
    %3353 = vmatpush1.bf16.msra.mxu0 0
    %3354 = vmatprep.subr.bf16.mxu0 0
    %3355 = vmatpush1.bf16.msra.mxu0 0
    %3356 = vmatprep.subr.bf16.mxu0 0
    %3357 = vmatpush1.bf16.msra.mxu0 0
    %3358 = vmatprep.subr.bf16.mxu0 0
    %3359 = vmatpush1.bf16.msra.mxu0 0
    %3360 = vmatprep.subr.bf16.mxu0 0
    %3361 = vmatpush1.bf16.msra.mxu0 0
    %3362 = vmatprep.subr.bf16.mxu0 0
    %3363 = vmatpush1.bf16.msra.mxu0 0
    %3364 = vmatprep.subr.bf16.mxu0 0
    %3365 = vmatpush1.bf16.msra.mxu0 0
    %3366 = vmatprep.subr.bf16.mxu0 0
    %3367 = vmatpush1.bf16.msra.mxu0 0
    %3368 = vmatprep.subr.bf16.mxu0 0
    %3369 = vmatpush1.bf16.msra.mxu0 0
    %3370 = vmatprep.subr.bf16.mxu0 0
    %3371 = vmatpush1.bf16.msra.mxu0 0
    %3372 = vmatprep.subr.bf16.mxu0 0
    %3373 = vmatpush1.bf16.msra.mxu0 0
    %3374 = vmatprep.subr.bf16.mxu0 0
    %3375 = vmatpush1.bf16.msra.mxu0 0
    %3376 = vmatprep.subr.bf16.mxu0 0
    %3377 = vmatpush1.bf16.msra.mxu0 0
    %3378 = vmatprep.subr.bf16.mxu0 0
    %3379 = vmatpush1.bf16.msra.mxu0 0
    %3380 = vmatprep.subr.bf16.mxu0 0
    %3381 = vmatpush1.bf16.msra.mxu0 0
    %3382 = vmatprep.mubr.bf16.mxu0 0
    %3383 = vmatmul.mubr.bf16.gmra.mrb[0].mxu0 %v3348
    %v3384 = vpop.f32.mrb[0].mxu0
    %v3385 = vadd.f32 0.0, %v3384
    %v3386 = vpop.f32.mrb[0].mxu0
    %v3387 = vpop.f32.mrb[0].mxu0
    %v3388 = vadd.f32 0.0, %v3387
    %v3389 = vpop.f32.mrb[0].mxu0
    %3390 = vdwg.mxu0
    %3391 = vrot.lane.b32.xlu0 %v2859, 112
    %v3392 = vpop.permute.xlu0 %3391
    %v3395 = vsel %vm368, %v3343, 0
    %3397 = vmatprep.subr.bf16.mxu0 0
    %3398 = vmatpush1.bf16.msra.mxu0 %v3392
    %3399 = vmatprep.subr.bf16.mxu0 0
    %3400 = vmatpush1.bf16.msra.mxu0 0
    %3401 = vmatprep.subr.bf16.mxu0 0
    %3402 = vmatpush1.bf16.msra.mxu0 0
    %3403 = vmatprep.subr.bf16.mxu0 0
    %3404 = vmatpush1.bf16.msra.mxu0 0
    %3405 = vmatprep.subr.bf16.mxu0 0
    %3406 = vmatpush1.bf16.msra.mxu0 0
    %3407 = vmatprep.subr.bf16.mxu0 0
    %3408 = vmatpush1.bf16.msra.mxu0 0
    %3409 = vmatprep.subr.bf16.mxu0 0
    %3410 = vmatpush1.bf16.msra.mxu0 0
    %3411 = vmatprep.subr.bf16.mxu0 0
    %3412 = vmatpush1.bf16.msra.mxu0 0
    %3413 = vmatprep.subr.bf16.mxu0 0
    %3414 = vmatpush1.bf16.msra.mxu0 0
    %3415 = vmatprep.subr.bf16.mxu0 0
    %3416 = vmatpush1.bf16.msra.mxu0 0
    %3417 = vmatprep.subr.bf16.mxu0 0
    %3418 = vmatpush1.bf16.msra.mxu0 0
    %3419 = vmatprep.subr.bf16.mxu0 0
    %3420 = vmatpush1.bf16.msra.mxu0 0
    %3421 = vmatprep.subr.bf16.mxu0 0
    %3422 = vmatpush1.bf16.msra.mxu0 0
    %3423 = vmatprep.subr.bf16.mxu0 0
    %3424 = vmatpush1.bf16.msra.mxu0 0
    %3425 = vmatprep.subr.bf16.mxu0 0
    %3426 = vmatpush1.bf16.msra.mxu0 0
    %3427 = vmatprep.subr.bf16.mxu0 0
    %3428 = vmatpush1.bf16.msra.mxu0 0
    %3429 = vmatprep.mubr.bf16.mxu0 0
    %3430 = vmatmul.mubr.bf16.gmra.mrb[0].mxu0 %v3395
    %v3431 = vpop.f32.mrb[0].mxu0
    %v3432 = vadd.f32 0.0, %v3431
    %v3433 = vpop.f32.mrb[0].mxu0
    %v3434 = vpop.f32.mrb[0].mxu0
    %v3435 = vadd.f32 0.0, %v3434
    %v3436 = vpop.f32.mrb[0].mxu0
    %3437 = vdwg.mxu0
    %3438 = vrot.lane.b32.xlu0 %v2714, 104
    %v3439 = vpop.permute.xlu0 %3438
    %3440 = vrot.lane.b32.xlu0 %v2716, 104
    %v3441 = vpop.permute.xlu0 %3440
    %v3443 = vsel %vm358, %v3439, 0
    %v3446 = vsel %vm358, %v3441, 0
    %3448 = vmatprep.subr.bf16.mxu0 0
    %3449 = vmatpush1.bf16.xpose.msra.mxu0 %v3446
    %3450 = vmatprep.subr.bf16.mxu0 0
    %3451 = vmatpush1.bf16.xpose.msra.mxu0 0
    %3452 = vmatprep.subr.bf16.mxu0 0
    %3453 = vmatpush1.bf16.xpose.msra.mxu0 0
    %3454 = vmatprep.subr.bf16.mxu0 0
    %3455 = vmatpush1.bf16.xpose.msra.mxu0 0
    %3456 = vmatprep.subr.bf16.mxu0 0
    %3457 = vmatpush1.bf16.xpose.msra.mxu0 0
    %3458 = vmatprep.subr.bf16.mxu0 0
    %3459 = vmatpush1.bf16.xpose.msra.mxu0 0
    %3460 = vmatprep.subr.bf16.mxu0 0
    %3461 = vmatpush1.bf16.xpose.msra.mxu0 0
    %3462 = vmatprep.subr.bf16.mxu0 0
    %3463 = vmatpush1.bf16.xpose.msra.mxu0 0
    %3464 = vmatprep.subr.bf16.mxu0 0
    %3465 = vmatpush1.bf16.xpose.msra.mxu0 0
    %3466 = vmatprep.subr.bf16.mxu0 0
    %3467 = vmatpush1.bf16.xpose.msra.mxu0 0
    %3468 = vmatprep.subr.bf16.mxu0 0
    %3469 = vmatpush1.bf16.xpose.msra.mxu0 0
    %3470 = vmatprep.subr.bf16.mxu0 0
    %3471 = vmatpush1.bf16.xpose.msra.mxu0 0
    %3472 = vmatprep.subr.bf16.mxu0 0
    %3473 = vmatpush1.bf16.xpose.msra.mxu0 0
    %3474 = vmatprep.subr.bf16.mxu0 0
    %3475 = vmatpush1.bf16.xpose.msra.mxu0 0
    %3476 = vmatprep.subr.bf16.mxu0 0
    %3477 = vmatpush1.bf16.xpose.msra.mxu0 0
    %3478 = vmatprep.subr.bf16.mxu0 0
    %3479 = vmatpush1.bf16.xpose.msra.mxu0 0
    %3480 = vmatprep.mubr.bf16.mxu0 0
    %3481 = vmatmul.mubr.bf16.gmra.mrb[0].mxu0 %v3443
    %v3482 = vpop.f32.mrb[0].mxu0
    %v3483 = vadd.f32 0.0, %v3482
    %v3484 = vpop.f32.mrb[0].mxu0
    %v3485 = vpop.f32.mrb[0].mxu0
    %v3486 = vadd.f32 0.0, %v3485
    %v3487 = vpop.f32.mrb[0].mxu0
    %3488 = vdwg.mxu0
    %3489 = vrot.lane.b32.xlu0 %v2715, 104
    %v3490 = vpop.permute.xlu0 %3489
    %3491 = vrot.lane.b32.xlu0 %v2717, 104
    %v3492 = vpop.permute.xlu0 %3491
    %v3494 = vsel %vm358, %v3490, 0
    %v3497 = vsel %vm358, %v3492, 0
    %3499 = vmatprep.subr.bf16.mxu0 0
    %3500 = vmatpush1.bf16.xpose.msra.mxu0 %v3497
    %3501 = vmatprep.subr.bf16.mxu0 0
    %3502 = vmatpush1.bf16.xpose.msra.mxu0 0
    %3503 = vmatprep.subr.bf16.mxu0 0
    %3504 = vmatpush1.bf16.xpose.msra.mxu0 0
    %3505 = vmatprep.subr.bf16.mxu0 0
    %3506 = vmatpush1.bf16.xpose.msra.mxu0 0
    %3507 = vmatprep.subr.bf16.mxu0 0
    %3508 = vmatpush1.bf16.xpose.msra.mxu0 0
    %3509 = vmatprep.subr.bf16.mxu0 0
    %3510 = vmatpush1.bf16.xpose.msra.mxu0 0
    %3511 = vmatprep.subr.bf16.mxu0 0
    %3512 = vmatpush1.bf16.xpose.msra.mxu0 0
    %3513 = vmatprep.subr.bf16.mxu0 0
    %3514 = vmatpush1.bf16.xpose.msra.mxu0 0
    %3515 = vmatprep.subr.bf16.mxu0 0
    %3516 = vmatpush1.bf16.xpose.msra.mxu0 0
    %3517 = vmatprep.subr.bf16.mxu0 0
    %3518 = vmatpush1.bf16.xpose.msra.mxu0 0
    %3519 = vmatprep.subr.bf16.mxu0 0
    %3520 = vmatpush1.bf16.xpose.msra.mxu0 0
    %3521 = vmatprep.subr.bf16.mxu0 0
    %3522 = vmatpush1.bf16.xpose.msra.mxu0 0
    %3523 = vmatprep.subr.bf16.mxu0 0
    %3524 = vmatpush1.bf16.xpose.msra.mxu0 0
    %3525 = vmatprep.subr.bf16.mxu0 0
    %3526 = vmatpush1.bf16.xpose.msra.mxu0 0
    %3527 = vmatprep.subr.bf16.mxu0 0
    %3528 = vmatpush1.bf16.xpose.msra.mxu0 0
    %3529 = vmatprep.subr.bf16.mxu0 0
    %3530 = vmatpush1.bf16.xpose.msra.mxu0 0
    %3531 = vmatprep.mubr.bf16.mxu0 0
    %3532 = vmatmul.mubr.bf16.gmra.mrb[0].mxu0 %v3494
    %v3533 = vpop.f32.mrb[0].mxu0
    %v3534 = vadd.f32 0.0, %v3533
    %v3535 = vpop.f32.mrb[0].mxu0
    %v3536 = vpop.f32.mrb[0].mxu0
    %v3537 = vadd.f32 0.0, %v3536
    %v3538 = vpop.f32.mrb[0].mxu0
    %3539 = vdwg.mxu0
    %v3540 = vsel %vm368, %v3483, -inf
    %3541 = vmax.xlane.f32.xlu0 %v3540
    %v3542 = vpop.xlane.xlu0 %3541
    %v3543 = vsel %vm368, %v3486, -inf
    %3544 = vmax.xlane.f32.xlu0 %v3543
    %v3545 = vpop.xlane.xlu0 %3544
    %v3546 = vsel %vm368, %v3534, -inf
    %3547 = vmax.xlane.f32.xlu0 %v3546
    %v3548 = vpop.xlane.xlu0 %3547
    %v3549 = vsel %vm368, %v3537, -inf
    %3550 = vmax.xlane.f32.xlu0 %v3549
    %v3551 = vpop.xlane.xlu0 %3550
    %v3552 = vsub.f32 %v3483, %v3542
    %v3553 = vsub.f32 %v3486, %v3545
    %v3554 = vsub.f32 %v3534, %v3548
    %v3555 = vsub.f32 %v3537, %v3551
    %v3556 = vmul.f32 %v3552, 1.442695
    %v3557 = vpow.pop %v3556
    %v3558 = vmul.f32 %v3553, 1.442695
    %v3559 = vpow.pop %v3558
    %v3560 = vmul.f32 %v3554, 1.442695
    %v3561 = vpow.pop %v3560
    %v3562 = vmul.f32 %v3555, 1.442695
    %v3563 = vpow.pop %v3562
    %v3564 = vsel %vm368, %v3557, 0.0
    %3565 = vadd.xlane.f32.xlu0 %v3564
    %v3566 = vpop.xlane.xlu0 %3565
    %v3567 = vsel %vm368, %v3559, 0.0
    %3568 = vadd.xlane.f32.xlu0 %v3567
    %v3569 = vpop.xlane.xlu0 %3568
    %v3570 = vsel %vm368, %v3561, 0.0
    %3571 = vadd.xlane.f32.xlu0 %v3570
    %v3572 = vpop.xlane.xlu0 %3571
    %v3573 = vsel %vm368, %v3563, 0.0
    %3574 = vadd.xlane.f32.xlu0 %v3573
    %v3575 = vpop.xlane.xlu0 %3574
    %v3576 = vrcp.pop %v3566
    %v3577 = vrcp.pop %v3569
    %v3578 = vrcp.pop %v3572
    %v3579 = vrcp.pop %v3575
    %v3580 = vmul.f32 %v3557, %v3576
    %v3581 = vmul.f32 %v3559, %v3577
    %v3582 = vmul.f32 %v3561, %v3578
    %v3583 = vmul.f32 %v3563, %v3579
    %v3584 = vpack.c.bf16 %v3581, %v3580
    %v3585 = vpack.c.bf16 %v3583, %v3582
    %3586 = vrot.lane.b32.xlu0 %v2858, 104
    %v3587 = vpop.permute.xlu0 %3586
    %v3590 = vsel %vm368, %v3584, 0
    %3592 = vmatprep.subr.bf16.mxu0 0
    %3593 = vmatpush1.bf16.msra.mxu0 %v3587
    %3594 = vmatprep.subr.bf16.mxu0 0
    %3595 = vmatpush1.bf16.msra.mxu0 0
    %3596 = vmatprep.subr.bf16.mxu0 0
    %3597 = vmatpush1.bf16.msra.mxu0 0
    %3598 = vmatprep.subr.bf16.mxu0 0
    %3599 = vmatpush1.bf16.msra.mxu0 0
    %3600 = vmatprep.subr.bf16.mxu0 0
    %3601 = vmatpush1.bf16.msra.mxu0 0
    %3602 = vmatprep.subr.bf16.mxu0 0
    %3603 = vmatpush1.bf16.msra.mxu0 0
    %3604 = vmatprep.subr.bf16.mxu0 0
    %3605 = vmatpush1.bf16.msra.mxu0 0
    %3606 = vmatprep.subr.bf16.mxu0 0
    %3607 = vmatpush1.bf16.msra.mxu0 0
    %3608 = vmatprep.subr.bf16.mxu0 0
    %3609 = vmatpush1.bf16.msra.mxu0 0
    %3610 = vmatprep.subr.bf16.mxu0 0
    %3611 = vmatpush1.bf16.msra.mxu0 0
    %3612 = vmatprep.subr.bf16.mxu0 0
    %3613 = vmatpush1.bf16.msra.mxu0 0
    %3614 = vmatprep.subr.bf16.mxu0 0
    %3615 = vmatpush1.bf16.msra.mxu0 0
    %3616 = vmatprep.subr.bf16.mxu0 0
    %3617 = vmatpush1.bf16.msra.mxu0 0
    %3618 = vmatprep.subr.bf16.mxu0 0
    %3619 = vmatpush1.bf16.msra.mxu0 0
    %3620 = vmatprep.subr.bf16.mxu0 0
    %3621 = vmatpush1.bf16.msra.mxu0 0
    %3622 = vmatprep.subr.bf16.mxu0 0
    %3623 = vmatpush1.bf16.msra.mxu0 0
    %3624 = vmatprep.mubr.bf16.mxu0 0
    %3625 = vmatmul.mubr.bf16.gmra.mrb[0].mxu0 %v3590
    %v3626 = vpop.f32.mrb[0].mxu0
    %v3627 = vadd.f32 0.0, %v3626
    %v3628 = vpop.f32.mrb[0].mxu0
    %v3629 = vpop.f32.mrb[0].mxu0
    %v3630 = vadd.f32 0.0, %v3629
    %v3631 = vpop.f32.mrb[0].mxu0
    %3632 = vdwg.mxu0
    %3633 = vrot.lane.b32.xlu0 %v2859, 104
    %v3634 = vpop.permute.xlu0 %3633
    %v3637 = vsel %vm368, %v3585, 0
    %3639 = vmatprep.subr.bf16.mxu0 0
    %3640 = vmatpush1.bf16.msra.mxu0 %v3634
    %3641 = vmatprep.subr.bf16.mxu0 0
    %3642 = vmatpush1.bf16.msra.mxu0 0
    %3643 = vmatprep.subr.bf16.mxu0 0
    %3644 = vmatpush1.bf16.msra.mxu0 0
    %3645 = vmatprep.subr.bf16.mxu0 0
    %3646 = vmatpush1.bf16.msra.mxu0 0
    %3647 = vmatprep.subr.bf16.mxu0 0
    %3648 = vmatpush1.bf16.msra.mxu0 0
    %3649 = vmatprep.subr.bf16.mxu0 0
    %3650 = vmatpush1.bf16.msra.mxu0 0
    %3651 = vmatprep.subr.bf16.mxu0 0
    %3652 = vmatpush1.bf16.msra.mxu0 0
    %3653 = vmatprep.subr.bf16.mxu0 0
    %3654 = vmatpush1.bf16.msra.mxu0 0
    %3655 = vmatprep.subr.bf16.mxu0 0
    %3656 = vmatpush1.bf16.msra.mxu0 0
    %3657 = vmatprep.subr.bf16.mxu0 0
    %3658 = vmatpush1.bf16.msra.mxu0 0
    %3659 = vmatprep.subr.bf16.mxu0 0
    %3660 = vmatpush1.bf16.msra.mxu0 0
    %3661 = vmatprep.subr.bf16.mxu0 0
    %3662 = vmatpush1.bf16.msra.mxu0 0
    %3663 = vmatprep.subr.bf16.mxu0 0
    %3664 = vmatpush1.bf16.msra.mxu0 0
    %3665 = vmatprep.subr.bf16.mxu0 0
    %3666 = vmatpush1.bf16.msra.mxu0 0
    %3667 = vmatprep.subr.bf16.mxu0 0
    %3668 = vmatpush1.bf16.msra.mxu0 0
    %3669 = vmatprep.subr.bf16.mxu0 0
    %3670 = vmatpush1.bf16.msra.mxu0 0
    %3671 = vmatprep.mubr.bf16.mxu0 0
    %3672 = vmatmul.mubr.bf16.gmra.mrb[0].mxu0 %v3637
    %v3673 = vpop.f32.mrb[0].mxu0
    %v3674 = vadd.f32 0.0, %v3673
    %v3675 = vpop.f32.mrb[0].mxu0
    %v3676 = vpop.f32.mrb[0].mxu0
    %v3677 = vadd.f32 0.0, %v3676
    %v3678 = vpop.f32.mrb[0].mxu0
    %3679 = vdwg.mxu0
    %3684 = vrot.lane.b32.xlu0 %v3142, 8
    %v3685 = vpop.permute.xlu0 %3684
    %3686 = vrot.lane.b32.xlu0 %v3145, 8
    %v3687 = vpop.permute.xlu0 %3686
    %3688 = vrot.lane.b32.xlu0 %v3190, 8
    %v3689 = vpop.permute.xlu0 %3688
    %3690 = vrot.lane.b32.xlu0 %v3193, 8
    %v3691 = vpop.permute.xlu0 %3690
    %3700 = vrot.lane.b32.xlu0 %v3385, 16
    %v3701 = vpop.permute.xlu0 %3700
    %3702 = vrot.lane.b32.xlu0 %v3388, 16
    %v3703 = vpop.permute.xlu0 %3702
    %3704 = vrot.lane.b32.xlu0 %v3432, 16
    %v3705 = vpop.permute.xlu0 %3704
    %3706 = vrot.lane.b32.xlu0 %v3435, 16
    %v3707 = vpop.permute.xlu0 %3706
    %3716 = vrot.lane.b32.xlu0 %v3627, 24
    %v3717 = vpop.permute.xlu0 %3716
    %3718 = vrot.lane.b32.xlu0 %v3630, 24
    %v3719 = vpop.permute.xlu0 %3718
    %3720 = vrot.lane.b32.xlu0 %v3674, 24
    %v3721 = vpop.permute.xlu0 %3720
    %3722 = vrot.lane.b32.xlu0 %v3677, 24
    %v3723 = vpop.permute.xlu0 %3722
    %v3728 = vsel %vm358, %v2898, %v3685
    %v3729 = vsel %vm358, %v2901, %v3687
    %v3730 = vsel %vm358, %v2942, %v3689
    %v3731 = vsel %vm358, %v2945, %v3691
    %v3732 = vsel %vm368, %v3728, %v3701
    %v3733 = vsel %vm368, %v3729, %v3703
    %v3734 = vsel %vm368, %v3730, %v3705
    %v3735 = vsel %vm368, %v3731, %v3707
    %v3736 = vsel %vm551, %v3732, %v3717
    %v3737 = vsel %vm551, %v3733, %v3719
    %v3738 = vsel %vm551, %v3734, %v3721
    %v3739 = vsel %vm551, %v3735, %v3723
    %v3740 = vpack.c.bf16 %v3737, %v3736
    %v3741 = vpack.c.bf16 %v3739, %v3738
    %s3742 = scalar_lea.vmem %s35, 16
    %v3743 = vld [vmem:[%s3742] sm:$0xf]
    %v3744 = vld [vmem:[%s3742 + $0x4] sm:$0xf]
    %v3745 = vld [vmem:[%s3742 + $0x8] sm:$0xf]
    %v3746 = vld [vmem:[%s3742 + $0xc] sm:$0xf]
    %s3747 = scalar_lea.vmem %s37, 1
    %v3748 = vld [vmem:[%s3747] sm:$0x1]
    %v3750 = vlaneseq
    %v3751 = vshrl.u32 %v3750, 7
    %v3752 = vsub.s32 0, %v3751
    %v3753 = vrot.slane %v3748, %v3752
    %v3759 = vunpack.c.l.b16 %v3743
    %v3760 = vunpack.c.l.b16 %v3744
    %v3761 = vunpack.c.l.b16 %v3745
    %v3762 = vunpack.c.l.b16 %v3746
    %v3763 = vpack.c.b16 %v3760, %v3759
    %v3764 = vpack.c.b16 %v3762, %v3761
    %v3768 = vsel %vm697, %v3740, 0
    %v3771 = vsel %vm697, %v3741, 0
    %3773 = vmatprep.subr.bf16.mxu0 0
    %3774 = vmatpush1.bf16.msra.mxu0 %v3763
    %3775 = vmatprep.subr.bf16.mxu0 0
    %3776 = vmatpush1.bf16.msra.mxu0 %v3764
    %3777 = vmatprep.subr.bf16.mxu0 0
    %3778 = vmatpush1.bf16.msra.mxu0 0
    %3779 = vmatprep.subr.bf16.mxu0 0
    %3780 = vmatpush1.bf16.msra.mxu0 0
    %3781 = vmatprep.subr.bf16.mxu0 0
    %3782 = vmatpush1.bf16.msra.mxu0 0
    %3783 = vmatprep.subr.bf16.mxu0 0
    %3784 = vmatpush1.bf16.msra.mxu0 0
    %3785 = vmatprep.subr.bf16.mxu0 0
    %3786 = vmatpush1.bf16.msra.mxu0 0
    %3787 = vmatprep.subr.bf16.mxu0 0
    %3788 = vmatpush1.bf16.msra.mxu0 0
    %3789 = vmatprep.subr.bf16.mxu0 0
    %3790 = vmatpush1.bf16.msra.mxu0 0
    %3791 = vmatprep.subr.bf16.mxu0 0
    %3792 = vmatpush1.bf16.msra.mxu0 0
    %3793 = vmatprep.subr.bf16.mxu0 0
    %3794 = vmatpush1.bf16.msra.mxu0 0
    %3795 = vmatprep.subr.bf16.mxu0 0
    %3796 = vmatpush1.bf16.msra.mxu0 0
    %3797 = vmatprep.subr.bf16.mxu0 0
    %3798 = vmatpush1.bf16.msra.mxu0 0
    %3799 = vmatprep.subr.bf16.mxu0 0
    %3800 = vmatpush1.bf16.msra.mxu0 0
    %3801 = vmatprep.subr.bf16.mxu0 0
    %3802 = vmatpush1.bf16.msra.mxu0 0
    %3803 = vmatprep.subr.bf16.mxu0 0
    %3804 = vmatpush1.bf16.msra.mxu0 0
    %3805 = vmatprep.mubr.bf16.mxu0 0
    %3806 = vmatmul.mubr.bf16.gmra.mrb[0].mxu0 %v3768
    %v3807 = vpop.f32.mrb[0].mxu0
    %v3808 = vadd.f32 %v3753, %v3807
    %v3809 = vpop.f32.mrb[0].mxu0
    %v3810 = vpop.f32.mrb[0].mxu0
    %v3811 = vadd.f32 %v3753, %v3810
    %v3812 = vpop.f32.mrb[0].mxu0
    %3813 = vmatprep.mubr.bf16.mxu0 0
    %3814 = vmatmul.mubr.bf16.gmra.mrb[0].mxu0 %v3771
    %v3815 = vpop.f32.mrb[0].mxu0
    %v3816 = vadd.f32 %v3753, %v3815
    %v3817 = vpop.f32.mrb[0].mxu0
    %v3818 = vpop.f32.mrb[0].mxu0
    %v3819 = vadd.f32 %v3753, %v3818
    %v3820 = vpop.f32.mrb[0].mxu0
    %3821 = vdwg.mxu0
    %v3822 = vadd.f32 %v2480, %v3808
    %v3823 = vadd.f32 %v2481, %v3811
    %v3824 = vadd.f32 %v2482, %v3816
    %v3825 = vadd.f32 %v2483, %v3819
    %s3826 = scalar_lea.vmem %s39, 1
    %v3827 = vld [vmem:[%s3826] sm:$0x1]
    %s3828 = scalar_lea.vmem %s41, 1
    %v3829 = vld [vmem:[%s3828] sm:$0x1]
    %v3830 = vsel %vm697, %v3822, 0.0
    %3831 = vadd.xlane.f32.xlu0 %v3830
    %v3832 = vpop.xlane.xlu0 %3831
    %v3833 = vsel %vm697, %v3823, 0.0
    %3834 = vadd.xlane.f32.xlu0 %v3833
    %v3835 = vpop.xlane.xlu0 %3834
    %v3836 = vsel %vm697, %v3824, 0.0
    %3837 = vadd.xlane.f32.xlu0 %v3836
    %v3838 = vpop.xlane.xlu0 %3837
    %v3839 = vsel %vm697, %v3825, 0.0
    %3840 = vadd.xlane.f32.xlu0 %v3839
    %v3841 = vpop.xlane.xlu0 %3840
    %v3842 = vmul.f32 %v3832, %v2164
    %v3843 = vmul.f32 %v3835, %v2164
    %v3844 = vmul.f32 %v3838, %v2164
    %v3845 = vmul.f32 %v3841, %v2164
    %v3846 = vsub.f32 %v3822, %v3842
    %v3847 = vsub.f32 %v3823, %v3843
    %v3848 = vsub.f32 %v3824, %v3844
    %v3849 = vsub.f32 %v3825, %v3845
    %v3850 = vmul.f32 %v3846, %v3846
    %v3851 = vmul.f32 %v3847, %v3847
    %v3852 = vmul.f32 %v3848, %v3848
    %v3853 = vmul.f32 %v3849, %v3849
    %v3854 = vsel %vm697, %v3850, 0.0
    %3855 = vadd.xlane.f32.xlu0 %v3854
    %v3856 = vpop.xlane.xlu0 %3855
    %v3857 = vsel %vm697, %v3851, 0.0
    %3858 = vadd.xlane.f32.xlu0 %v3857
    %v3859 = vpop.xlane.xlu0 %3858
    %v3860 = vsel %vm697, %v3852, 0.0
    %3861 = vadd.xlane.f32.xlu0 %v3860
    %v3862 = vpop.xlane.xlu0 %3861
    %v3863 = vsel %vm697, %v3853, 0.0
    %3864 = vadd.xlane.f32.xlu0 %v3863
    %v3865 = vpop.xlane.xlu0 %3864
    %v3866 = vmul.f32 %v3856, %v2164
    %v3867 = vmul.f32 %v3859, %v2164
    %v3868 = vmul.f32 %v3862, %v2164
    %v3869 = vmul.f32 %v3865, %v2164
    %v3870 = vadd.f32 %v3866, 1e-05
    %v3871 = vadd.f32 %v3867, 1e-05
    %v3872 = vadd.f32 %v3868, 1e-05
    %v3873 = vadd.f32 %v3869, 1e-05
    %v3874 = vrsqrt.pop %v3870
    %v3875 = vrsqrt.pop %v3871
    %v3876 = vrsqrt.pop %v3872
    %v3877 = vrsqrt.pop %v3873
    %v3878 = vmul.f32 %v3846, %v3874
    %v3879 = vmul.f32 %v3847, %v3875
    %v3880 = vmul.f32 %v3848, %v3876
    %v3881 = vmul.f32 %v3849, %v3877
    %v3883 = vlaneseq
    %v3884 = vshrl.u32 %v3883, 7
    %v3885 = vsub.s32 0, %v3884
    %v3886 = vrot.slane %v3827, %v3885
    %v3888 = vmul.f32 %v3878, %v3886
    %v3889 = vmul.f32 %v3879, %v3886
    %v3890 = vmul.f32 %v3880, %v3886
    %v3891 = vmul.f32 %v3881, %v3886
    %v3893 = vlaneseq
    %v3894 = vshrl.u32 %v3893, 7
    %v3895 = vsub.s32 0, %v3894
    %v3896 = vrot.slane %v3829, %v3895
    %v3898 = vadd.f32 %v3888, %v3896
    %v3899 = vadd.f32 %v3889, %v3896
    %v3900 = vadd.f32 %v3890, %v3896
    %v3901 = vadd.f32 %v3891, %v3896
    %v3902 = vpack.c.bf16 %v3899, %v3898
    %v3903 = vpack.c.bf16 %v3901, %v3900
    %s3904 = scalar_lea.vmem %s43, 16
    %v3905 = vld [vmem:[%s3904] sm:$0xf]
    %v3906 = vld [vmem:[%s3904 + $0x4] sm:$0xf]
    %v3907 = vld [vmem:[%s3904 + $0x8] sm:$0xf]
    %v3908 = vld [vmem:[%s3904 + $0xc] sm:$0xf]
    %s3909 = scalar_lea.vmem %s45, 1
    %v3910 = vld [vmem:[%s3909] sm:$0x1]
    %v3912 = vlaneseq
    %v3913 = vshrl.u32 %v3912, 7
    %v3914 = vsub.s32 0, %v3913
    %v3915 = vrot.slane %v3910, %v3914
    %v3921 = vunpack.c.l.b16 %v3905
    %v3922 = vunpack.c.l.b16 %v3906
    %v3923 = vunpack.c.l.b16 %v3907
    %v3924 = vunpack.c.l.b16 %v3908
    %v3925 = vpack.c.b16 %v3922, %v3921
    %v3926 = vpack.c.b16 %v3924, %v3923
    %v3930 = vsel %vm697, %v3902, 0
    %v3933 = vsel %vm697, %v3903, 0
    %3935 = vmatprep.subr.bf16.mxu0 0
    %3936 = vmatpush1.bf16.msra.mxu0 %v3925
    %3937 = vmatprep.subr.bf16.mxu0 0
    %3938 = vmatpush1.bf16.msra.mxu0 %v3926
    %3939 = vmatprep.subr.bf16.mxu0 0
    %3940 = vmatpush1.bf16.msra.mxu0 0
    %3941 = vmatprep.subr.bf16.mxu0 0
    %3942 = vmatpush1.bf16.msra.mxu0 0
    %3943 = vmatprep.subr.bf16.mxu0 0
    %3944 = vmatpush1.bf16.msra.mxu0 0
    %3945 = vmatprep.subr.bf16.mxu0 0
    %3946 = vmatpush1.bf16.msra.mxu0 0
    %3947 = vmatprep.subr.bf16.mxu0 0
    %3948 = vmatpush1.bf16.msra.mxu0 0
    %3949 = vmatprep.subr.bf16.mxu0 0
    %3950 = vmatpush1.bf16.msra.mxu0 0
    %3951 = vmatprep.subr.bf16.mxu0 0
    %3952 = vmatpush1.bf16.msra.mxu0 0
    %3953 = vmatprep.subr.bf16.mxu0 0
    %3954 = vmatpush1.bf16.msra.mxu0 0
    %3955 = vmatprep.subr.bf16.mxu0 0
    %3956 = vmatpush1.bf16.msra.mxu0 0
    %3957 = vmatprep.subr.bf16.mxu0 0
    %3958 = vmatpush1.bf16.msra.mxu0 0
    %3959 = vmatprep.subr.bf16.mxu0 0
    %3960 = vmatpush1.bf16.msra.mxu0 0
    %3961 = vmatprep.subr.bf16.mxu0 0
    %3962 = vmatpush1.bf16.msra.mxu0 0
    %3963 = vmatprep.subr.bf16.mxu0 0
    %3964 = vmatpush1.bf16.msra.mxu0 0
    %3965 = vmatprep.subr.bf16.mxu0 0
    %3966 = vmatpush1.bf16.msra.mxu0 0
    %3967 = vmatprep.mubr.bf16.mxu0 0
    %3968 = vmatmul.mubr.bf16.gmra.mrb[0].mxu0 %v3930
    %v3969 = vpop.f32.mrb[0].mxu0
    %v3970 = vadd.f32 %v3915, %v3969
    %v3971 = vpop.f32.mrb[0].mxu0
    %v3972 = vpop.f32.mrb[0].mxu0
    %v3973 = vadd.f32 %v3915, %v3972
    %v3974 = vpop.f32.mrb[0].mxu0
    %3975 = vmatprep.mubr.bf16.mxu0 0
    %3976 = vmatmul.mubr.bf16.gmra.mrb[0].mxu0 %v3933
    %v3977 = vpop.f32.mrb[0].mxu0
    %v3978 = vadd.f32 %v3915, %v3977
    %v3979 = vpop.f32.mrb[0].mxu0
    %v3980 = vpop.f32.mrb[0].mxu0
    %v3981 = vadd.f32 %v3915, %v3980
    %v3982 = vpop.f32.mrb[0].mxu0
    %3983 = vdwg.mxu0
    %v3984 = vmax.f32 %v3970, 0.0
    %v3985 = vmax.f32 %v3973, 0.0
    %v3986 = vmax.f32 %v3978, 0.0
    %v3987 = vmax.f32 %v3981, 0.0
    %v3988 = vpack.c.bf16 %v3985, %v3984
    %v3989 = vpack.c.bf16 %v3987, %v3986
    %s3990 = scalar_lea.vmem %s47, 32
    %v3991 = vld [vmem:[%s3990] sm:$0xf]
    %v3992 = vld [vmem:[%s3990 + $0x4] sm:$0xf]
    %v3993 = vld [vmem:[%s3990 + $0x8] sm:$0xf]
    %v3994 = vld [vmem:[%s3990 + $0xc] sm:$0xf]
    %v3995 = vld [vmem:[%s3990 + $0x10] sm:$0xf]
    %v3996 = vld [vmem:[%s3990 + $0x14] sm:$0xf]
    %v3997 = vld [vmem:[%s3990 + $0x18] sm:$0xf]
    %v3998 = vld [vmem:[%s3990 + $0x1c] sm:$0xf]
    %s3999 = scalar_lea.vmem %s49, 1
    %v4000 = vld [vmem:[%s3999] sm:$0x1]
    %v4002 = vlaneseq
    %v4003 = vshrl.u32 %v4002, 7
    %v4004 = vsub.s32 0, %v4003
    %v4005 = vrot.slane %v4000, %v4004
    %v4015 = vunpack.c.l.b16 %v3991
    %v4016 = vunpack.c.l.b16 %v3992
    %v4017 = vunpack.c.l.b16 %v3993
    %v4018 = vunpack.c.l.b16 %v3994
    %v4019 = vunpack.c.l.b16 %v3995
    %v4020 = vunpack.c.l.b16 %v3996
    %v4021 = vunpack.c.l.b16 %v3997
    %v4022 = vunpack.c.l.b16 %v3998
    %v4023 = vpack.c.b16 %v4016, %v4015
    %v4024 = vpack.c.b16 %v4018, %v4017
    %v4025 = vpack.c.b16 %v4020, %v4019
    %v4026 = vpack.c.b16 %v4022, %v4021
    %v4032 = vsel %vm2350, %v3988, 0
    %v4035 = vsel %vm2350, %v3989, 0
    %4037 = vmatprep.subr.bf16.mxu0 0
    %4038 = vmatpush1.bf16.msra.mxu0 %v4023
    %4039 = vmatprep.subr.bf16.mxu0 0
    %4040 = vmatpush1.bf16.msra.mxu0 %v4024
    %4041 = vmatprep.subr.bf16.mxu0 0
    %4042 = vmatpush1.bf16.msra.mxu0 %v4025
    %4043 = vmatprep.subr.bf16.mxu0 0
    %4044 = vmatpush1.bf16.msra.mxu0 %v4026
    %4045 = vmatprep.subr.bf16.mxu0 0
    %4046 = vmatpush1.bf16.msra.mxu0 0
    %4047 = vmatprep.subr.bf16.mxu0 0
    %4048 = vmatpush1.bf16.msra.mxu0 0
    %4049 = vmatprep.subr.bf16.mxu0 0
    %4050 = vmatpush1.bf16.msra.mxu0 0
    %4051 = vmatprep.subr.bf16.mxu0 0
    %4052 = vmatpush1.bf16.msra.mxu0 0
    %4053 = vmatprep.subr.bf16.mxu0 0
    %4054 = vmatpush1.bf16.msra.mxu0 0
    %4055 = vmatprep.subr.bf16.mxu0 0
    %4056 = vmatpush1.bf16.msra.mxu0 0
    %4057 = vmatprep.subr.bf16.mxu0 0
    %4058 = vmatpush1.bf16.msra.mxu0 0
    %4059 = vmatprep.subr.bf16.mxu0 0
    %4060 = vmatpush1.bf16.msra.mxu0 0
    %4061 = vmatprep.subr.bf16.mxu0 0
    %4062 = vmatpush1.bf16.msra.mxu0 0
    %4063 = vmatprep.subr.bf16.mxu0 0
    %4064 = vmatpush1.bf16.msra.mxu0 0
    %4065 = vmatprep.subr.bf16.mxu0 0
    %4066 = vmatpush1.bf16.msra.mxu0 0
    %4067 = vmatprep.subr.bf16.mxu0 0
    %4068 = vmatpush1.bf16.msra.mxu0 0
    %4069 = vmatprep.mubr.bf16.mxu0 0
    %4070 = vmatmul.mubr.bf16.gmra.mrb[0].mxu0 %v4032
    %v4071 = vpop.f32.mrb[0].mxu0
    %v4072 = vadd.f32 %v4005, %v4071
    %v4073 = vpop.f32.mrb[0].mxu0
    %v4074 = vpop.f32.mrb[0].mxu0
    %v4075 = vadd.f32 %v4005, %v4074
    %v4076 = vpop.f32.mrb[0].mxu0
    %4077 = vmatprep.mubr.bf16.mxu0 0
    %4078 = vmatmul.mubr.bf16.gmra.mrb[0].mxu0 %v4035
    %v4079 = vpop.f32.mrb[0].mxu0
    %v4080 = vadd.f32 %v4005, %v4079
    %v4081 = vpop.f32.mrb[0].mxu0
    %v4082 = vpop.f32.mrb[0].mxu0
    %v4083 = vadd.f32 %v4005, %v4082
    %v4084 = vpop.f32.mrb[0].mxu0
    %4085 = vdwg.mxu0
    %v4086 = vadd.f32 %v3898, %v4072
    %v4087 = vadd.f32 %v3899, %v4075
    %v4088 = vadd.f32 %v3900, %v4080
    %v4089 = vadd.f32 %v3901, %v4083
    %s4090 = scalar_lea.vmem %s51, 1
    %v4091 = vld [vmem:[%s4090] sm:$0x1]
    %s4092 = scalar_lea.vmem %s53, 1
    %v4093 = vld [vmem:[%s4092] sm:$0x1]
    %v4094 = vsel %vm697, %v4086, 0.0
    %4095 = vadd.xlane.f32.xlu0 %v4094
    %v4096 = vpop.xlane.xlu0 %4095
    %v4097 = vsel %vm697, %v4087, 0.0
    %4098 = vadd.xlane.f32.xlu0 %v4097
    %v4099 = vpop.xlane.xlu0 %4098
    %v4100 = vsel %vm697, %v4088, 0.0
    %4101 = vadd.xlane.f32.xlu0 %v4100
    %v4102 = vpop.xlane.xlu0 %4101
    %v4103 = vsel %vm697, %v4089, 0.0
    %4104 = vadd.xlane.f32.xlu0 %v4103
    %v4105 = vpop.xlane.xlu0 %4104
    %v4106 = vmul.f32 %v4096, %v2164
    %v4107 = vmul.f32 %v4099, %v2164
    %v4108 = vmul.f32 %v4102, %v2164
    %v4109 = vmul.f32 %v4105, %v2164
    %v4110 = vsub.f32 %v4086, %v4106
    %v4111 = vsub.f32 %v4087, %v4107
    %v4112 = vsub.f32 %v4088, %v4108
    %v4113 = vsub.f32 %v4089, %v4109
    %v4114 = vmul.f32 %v4110, %v4110
    %v4115 = vmul.f32 %v4111, %v4111
    %v4116 = vmul.f32 %v4112, %v4112
    %v4117 = vmul.f32 %v4113, %v4113
    %v4118 = vsel %vm697, %v4114, 0.0
    %4119 = vadd.xlane.f32.xlu0 %v4118
    %v4120 = vpop.xlane.xlu0 %4119
    %v4121 = vsel %vm697, %v4115, 0.0
    %4122 = vadd.xlane.f32.xlu0 %v4121
    %v4123 = vpop.xlane.xlu0 %4122
    %v4124 = vsel %vm697, %v4116, 0.0
    %4125 = vadd.xlane.f32.xlu0 %v4124
    %v4126 = vpop.xlane.xlu0 %4125
    %v4127 = vsel %vm697, %v4117, 0.0
    %4128 = vadd.xlane.f32.xlu0 %v4127
    %v4129 = vpop.xlane.xlu0 %4128
    %v4130 = vmul.f32 %v4120, %v2164
    %v4131 = vmul.f32 %v4123, %v2164
    %v4132 = vmul.f32 %v4126, %v2164
    %v4133 = vmul.f32 %v4129, %v2164
    %v4134 = vadd.f32 %v4130, 1e-05
    %v4135 = vadd.f32 %v4131, 1e-05
    %v4136 = vadd.f32 %v4132, 1e-05
    %v4137 = vadd.f32 %v4133, 1e-05
    %v4138 = vrsqrt.pop %v4134
    %v4139 = vrsqrt.pop %v4135
    %v4140 = vrsqrt.pop %v4136
    %v4141 = vrsqrt.pop %v4137
    %v4142 = vmul.f32 %v4110, %v4138
    %v4143 = vmul.f32 %v4111, %v4139
    %v4144 = vmul.f32 %v4112, %v4140
    %v4145 = vmul.f32 %v4113, %v4141
    %v4147 = vlaneseq
    %v4148 = vshrl.u32 %v4147, 7
    %v4149 = vsub.s32 0, %v4148
    %v4150 = vrot.slane %v4091, %v4149
    %v4152 = vmul.f32 %v4142, %v4150
    %v4153 = vmul.f32 %v4143, %v4150
    %v4154 = vmul.f32 %v4144, %v4150
    %v4155 = vmul.f32 %v4145, %v4150
    %v4157 = vlaneseq
    %v4158 = vshrl.u32 %v4157, 7
    %v4159 = vsub.s32 0, %v4158
    %v4160 = vrot.slane %v4093, %v4159
    %v4162 = vadd.f32 %v4152, %v4160
    %v4163 = vadd.f32 %v4153, %v4160
    %v4164 = vadd.f32 %v4154, %v4160
    %v4165 = vadd.f32 %v4155, %v4160
    %v4166 = vsel %vm697, %v4162, -inf
    %v4167 = vsel %vm697, %v4163, -inf
    %v4168 = vmax.f32 %v4166, %v4167
    %v4169 = vrot.slane %v4168, 4
    %v4170 = vmax.f32 %v4168, %v4169
    %v4171 = vrot.slane %v4170, 2
    %v4172 = vmax.f32 %v4170, %v4171
    %v4173 = vrot.slane %v4172, 1
    %v4174 = vmax.f32 %v4172, %v4173
    %v4175 = vsel %vm697, %v4164, -inf
    %v4176 = vsel %vm697, %v4165, -inf
    %v4177 = vmax.f32 %v4175, %v4176
    %v4178 = vrot.slane %v4177, 4
    %v4179 = vmax.f32 %v4177, %v4178
    %v4180 = vrot.slane %v4179, 2
    %v4181 = vmax.f32 %v4179, %v4180
    %v4182 = vrot.slane %v4181, 1
    %v4183 = vmax.f32 %v4181, %v4182
    %v4184 = vpack.c.bf16 %v4174, %v4174
    %v4185 = vpack.c.bf16 %v4183, %v4183
    %v4186 = vld [vmem:[%s55] sm:$0xf]
    %v4187 = vld [vmem:[%s55 + $0x4] sm:$0xf]
    %v4188 = vld [vmem:[%s55 + $0x8] sm:$0xf]
    %v4189 = vld [vmem:[%s55 + $0xc] sm:$0xf]
    %v4190 = vld [vmem:[%s57] sm:$0x1]
    %v4192 = vlaneseq
    %v4193 = vshrl.u32 %v4192, 7
    %v4194 = vsub.s32 0, %v4193
    %v4195 = vrot.slane %v4190, %v4194
    %v4199 = vunpack.c.l.b16 %v4184
    %v4200 = vunpack.c.l.b16 %v4185
    %vm4201 = vcmask 1041409
    %v4202 = vsel %vm4201, %v4200, %v4199
    %v4203 = vpack.c.b16 %v4202, %v4202
    %v4208 = vunpack.c.l.b16 %v4186
    %v4209 = vunpack.c.l.b16 %v4187
    %v4210 = vunpack.c.l.b16 %v4188
    %v4211 = vunpack.c.l.b16 %v4189
    %v4212 = vpack.c.b16 %v4209, %v4208
    %v4213 = vpack.c.b16 %v4211, %v4210
    %v4217 = vsel %vm697, %v4203, 0
    %4219 = vmatprep.subr.bf16.mxu0 0
    %4220 = vmatpush1.bf16.msra.mxu0 %v4212
    %4221 = vmatprep.subr.bf16.mxu0 0
    %4222 = vmatpush1.bf16.msra.mxu0 %v4213
    %4223 = vmatprep.subr.bf16.mxu0 0
    %4224 = vmatpush1.bf16.msra.mxu0 0
    %4225 = vmatprep.subr.bf16.mxu0 0
    %4226 = vmatpush1.bf16.msra.mxu0 0
    %4227 = vmatprep.subr.bf16.mxu0 0
    %4228 = vmatpush1.bf16.msra.mxu0 0
    %4229 = vmatprep.subr.bf16.mxu0 0
    %4230 = vmatpush1.bf16.msra.mxu0 0
    %4231 = vmatprep.subr.bf16.mxu0 0
    %4232 = vmatpush1.bf16.msra.mxu0 0
    %4233 = vmatprep.subr.bf16.mxu0 0
    %4234 = vmatpush1.bf16.msra.mxu0 0
    %4235 = vmatprep.subr.bf16.mxu0 0
    %4236 = vmatpush1.bf16.msra.mxu0 0
    %4237 = vmatprep.subr.bf16.mxu0 0
    %4238 = vmatpush1.bf16.msra.mxu0 0
    %4239 = vmatprep.subr.bf16.mxu0 0
    %4240 = vmatpush1.bf16.msra.mxu0 0
    %4241 = vmatprep.subr.bf16.mxu0 0
    %4242 = vmatpush1.bf16.msra.mxu0 0
    %4243 = vmatprep.subr.bf16.mxu0 0
    %4244 = vmatpush1.bf16.msra.mxu0 0
    %4245 = vmatprep.subr.bf16.mxu0 0
    %4246 = vmatpush1.bf16.msra.mxu0 0
    %4247 = vmatprep.subr.bf16.mxu0 0
    %4248 = vmatpush1.bf16.msra.mxu0 0
    %4249 = vmatprep.subr.bf16.mxu0 0
    %4250 = vmatpush1.bf16.msra.mxu0 0
    %4251 = vmatprep.mubr.bf16.mxu0 0
    %4252 = vmatmul.mubr.bf16.gmra.mrb[0].mxu0 %v4217
    %v4253 = vpop.f32.mrb[0].mxu0
    %v4254 = vadd.f32 %v4195, %v4253
    %v4255 = vpop.f32.mrb[0].mxu0
    %v4256 = vpop.f32.mrb[0].mxu0
    %v4257 = vpop.f32.mrb[0].mxu0
    %4258 = vdwg.mxu0
    %v4261 = vunpack.c.l.s4 1966171168
    %v4262 = vunpack.c.0.s8 %v4261
    %v4263 = vlaneseq
    %v4264 = vshrl.u32 %v4263, 7
    %v4265 = vsub.s32 %v4262, %v4264
    %v4266 = vrot.slane %v4254, %v4265
    %v4267 = vcombine.high %v4266, %v4266
    %v4269 = vunpack.c.l.s4 1966171168
    %v4270 = vunpack.c.0.s8 %v4269
    %v4271 = vlaneseq
    %v4272 = vshrl.u32 %v4271, 7
    %v4273 = vsub.s32 %v4270, %v4272
    %v4274 = vrot.slane %v4266, %v4273
    %v4276 = vunpack.c.l.s4 1966171168
    %v4277 = vunpack.c.0.s8 %v4276
    %v4278 = vlaneseq
    %v4279 = vshrl.u32 %v4278, 7
    %v4280 = vsub.s32 %v4277, %v4279
    %v4281 = vrot.slane %v4267, %v4280
    %4284 = vst [vmem:[#allocation11] sm:$0x1] %v4274
    %4285 = vst [vmem:[#allocation11 + $0x1] sm:$0x1] %v4281
    // Predicated region
    $region138: #{tpu_custom_call.1} parent=1 // pred_check
      _
    $region139: #{tpu_custom_call.1} parent=1 // pred_check_branch
      %4287 = sbr.rel (0) target = $region141
    $region140: #{tpu_custom_call.1} parent=1 // pred_region
      %s4289 = ssub.s32 32, 32
      %4290 = vsyncadd [#allocation4], %s4289
      %s4291 = sshll.u32 [#allocation11], 4
      %s4292 = int_to_ptr.vmem [resolvable:$true] %s4291
      %4297 = dma.vmem_to_hbm [thread:$0]  %s4292, 32, %s59, [#allocation4], 16, 16, 1
    $region141: #{tpu_custom_call.1} parent=1 // pred_fallthru
      _
    // Predicated region
    $region142: #{tpu_custom_call.1} parent=1 // pred_check
      _
    $region143: #{tpu_custom_call.1} parent=1 // pred_check_branch
      %4299 = sbr.rel (0) target = $region145
    $region144: #{tpu_custom_call.1} parent=1 // pred_region
      %4300 = dma.done [#allocation4], 32
    $region145: #{tpu_custom_call.1} parent=1 // pred_fallthru
      _
    %4301 = vsyncpa [#allocation3], 1
    %4302 = vsyncpa [#allocation6], 1
    %4303 = vsyncpa [#allocation9], 1
    %4304 = vsyncpa [#allocation4], 1

</llo_original>
